<compile_context>
chip_gen: v6e
topology: v6e:2x2x1
jax: 0.10.0
libtpu: 0.0.40
codegen_flags: <defaults>
</compile_context>

<pallas_src>
import functools

import jax
import jax.numpy as jnp
from jax import lax
from jax.experimental import pallas as pl
from jax.experimental.pallas import tpu as pltpu


# ----------------------------------------------------------------------------
# Fused kernel: LSTM recurrence (chunk of T per grid step) + dot attention on
# that chunk.  PyTorch gate order (i, f, g, o).
# ----------------------------------------------------------------------------
def seq_decoder_kernel(emb_ref, wih_ref, whh_ref, b_ref, h0_ref, c0_ref,
                       ctx_ref, out_ref, hT_ref, cT_ref, scores_ref, cc_ref,
                       gx_s, h_s, c_s, q_s, *, matmul_dtype):
    B, H = h0_ref.shape
    t_chunk = out_ref.shape[0]
    chunk = pl.program_id(0)

    @pl.when(chunk == 0)
    def _():
        h_s[...] = h0_ref[...]
        c_s[...] = c0_ref[...]

    # ---- LSTM: hoisted input projection for this chunk (one MXU matmul) ----
    gx_s[...] = (jnp.dot(emb_ref[...], wih_ref[...],
                         preferred_element_type=jnp.float32)
                 + b_ref[...])                               # (t_chunk*B, 4H)

    # Recurrent weights stay f32 (tiny matmul, avoids bf16 error compounding
    # over T).  Hoisted out of the time loop.
    # TODO(synk): hold W_hh in the MXU across the recurrence
    # (pltpu.matmul_push_rhs / matmul_acc_lhs) or verify in the bundle dump
    # that Mosaic does not re-push the RHS every unrolled step.
    whh = whh_ref[...]                                       # (H, 4H) f32

    # ---- LSTM recurrence over the chunk ----
    # Static Python loop: indices are static so the batch-major q scratch and
    # the chunk output can be written with plain static slices; the unroll is
    # bounded by t_chunk (the grid axis handles long T).
    for lt in range(t_chunk):
        gx_t = gx_s[lt * B:(lt + 1) * B, :]                  # (B, 4H)
        gates = gx_t + jnp.dot(h_s[...], whh,
                               preferred_element_type=jnp.float32)
        # One whole-vreg sigmoid pass, then lane slices (EUP slot is free).
        # TODO(synk): for H < 128 these are sub-vreg lane slices; a per-gate
        # (4, H)-blocked layout or pltpu.roll alignment would avoid them if
        # the step ever becomes XLU bound.
        sig = jax.nn.sigmoid(gates)
        i_g = sig[:, 0 * H:1 * H]
        f_g = sig[:, 1 * H:2 * H]
        o_g = sig[:, 3 * H:4 * H]
        g_g = jnp.tanh(gates[:, 2 * H:3 * H])
        c_new = f_g * c_s[...] + i_g * g_g
        h_new = o_g * jnp.tanh(c_new)
        c_s[...] = c_new
        h_s[...] = h_new
        out_ref[lt] = h_new                                  # time-major chunk
        q_s[:, lt, :] = h_new                                # batch-major, f32

    # ---- final hidden state: written exactly once, at the last chunk ----
    @pl.when(chunk == pl.num_programs(0) - 1)
    def _():
        hT_ref[...] = h_s[...]
        cT_ref[...] = c_s[...]

    # ---- GlobalAttention("dot") on this chunk (batched MXU matmuls) ----
    qm = q_s[...].astype(matmul_dtype)                       # (B, t_chunk, H)
    km = ctx_ref[...]                                        # (B, S, H)
    scores = jnp.einsum('bth,bsh->bts', qm, km,
                        preferred_element_type=jnp.float32)  # (B, t_chunk, S)
    m = jnp.max(scores, axis=-1, keepdims=True)
    e = jnp.exp(scores - m)
    # Exact reciprocal (still an EUP op) for strict softmax parity.
    align = e * pl.reciprocal(jnp.sum(e, axis=-1, keepdims=True), approx=False)
    c_ctx = jnp.einsum('bts,bsh->bth', align.astype(matmul_dtype), km,
                       preferred_element_type=jnp.float32)   # (B, t_chunk, H)

    # attn_scores in the module's (T, B, S) layout.
    # TODO(synk): for large production B, grid over B (also feeds v7x's second
    # TensorCore) instead of this small static store loop.
    for b in range(B):
        scores_ref[:, b, :] = align[b]

    # concat_c = [c ; rnn_output_bt] laid out (B, T, 2H) so the final
    # (B*T, 2H) view is a free reshape.
    cc_ref[:, :, 0:H] = c_ctx
    cc_ref[:, :, H:2 * H] = q_s[...]
    # TODO(synk): production S should be tiled (online softmax, S tile a
    # multiple of 128 lanes); with H/S multiples of 128 all of the stores above
    # become unmasked lane-dense vst.


# ----------------------------------------------------------------------------
# SeqDecoder.forward (eval mode, embeddings=None, dropouts identity)
# ----------------------------------------------------------------------------
def seq_decoder_forward(inp, context, state_h, state_c, params,
                        matmul_dtype=jnp.float32, t_chunk=8):
    """
    inp:      (T, B, I)  float32  (== emb, embeddings is None; dropouts = id)
    context:  (S, B, H)  float32  (encoder outputs)
    state_h:  (1, B, H)  float32  (RNNDecoderState.hidden[0])
    state_c:  (1, B, H)  float32  (RNNDecoderState.hidden[1])
    matmul_dtype: bf16 recommended on v5e/v6e/v7x (bf16-native MXU); the
      recurrent h @ W_hh and all elementwise gate / softmax math stay f32.
    """
    T, B, I = inp.shape
    S = context.shape[0]
    H = state_h.shape[-1]

    t_chunk = min(t_chunk, T)
    assert T % t_chunk == 0, "pad T to a multiple of t_chunk"
    # BlockSpec (8,128) rule on the chunked second-minor dims:
    assert t_chunk == T or t_chunk % 8 == 0
    n_chunks = T // t_chunk
    # TODO(synk): for v7x (64 MiB VMEM) size t_chunk so that the gx chunk +
    # 2x emb chunk + 2x (out/scores/cc) chunks + resident context + weights
    # stay under ~48 MiB; v5e/v6e (128 MiB) can run ~2x larger chunks.

    # Operand prep outside the kernel (each a single fused XLA pass).
    wih_t = jnp.transpose(params["w_ih"]).astype(matmul_dtype)      # (I, 4H)
    whh_t = jnp.transpose(params["w_hh"]).astype(jnp.float32)       # (H, 4H)
    bias = (params["b_ih"] + params["b_hh"]).astype(jnp.float32)[None, :]
    emb2d = inp.reshape(T * B, I).astype(matmul_dtype)               # (T*B, I)
    # Batch-major context, cast once at the boundary (mirrors the module's
    # context.transpose(0, 1); halves its DMA/VMEM in the bf16 path).
    ctx_bm = jnp.transpose(context, (1, 0, 2)).astype(matmul_dtype)  # (B, S, H)

    out_shapes = (
        jax.ShapeDtypeStruct((T, B, H), jnp.float32),       # rnn_output
        jax.ShapeDtypeStruct((B, H), jnp.float32),          # hT
        jax.ShapeDtypeStruct((B, H), jnp.float32),          # cT
        jax.ShapeDtypeStruct((T, B, S), jnp.float32),       # attn_scores
        jax.ShapeDtypeStruct((B, T, 2 * H), jnp.float32),   # [c ; rnn_out_bt]
    )
    grid_spec = pltpu.PrefetchScalarGridSpec(
        num_scalar_prefetch=0,
        grid=(n_chunks,),
        in_specs=[
            pl.BlockSpec((t_chunk * B, I), lambda i: (i, 0)),     # emb chunk
            # TODO(synk): on v7x single-buffer these grid-invariant operands
            # (pipeline_mode=pl.Buffered(1)) to spend VMEM on larger T chunks.
            pl.BlockSpec((I, 4 * H), lambda i: (0, 0)),           # W_ih^T
            pl.BlockSpec((H, 4 * H), lambda i: (0, 0)),           # W_hh^T (f32)
            pl.BlockSpec((1, 4 * H), lambda i: (0, 0)),           # bias
            pl.BlockSpec((B, H), lambda i: (0, 0)),               # h0
            pl.BlockSpec((B, H), lambda i: (0, 0)),               # c0
            pl.BlockSpec((B, S, H), lambda i: (0, 0, 0)),         # context (bm)
        ],
        out_specs=[
            pl.BlockSpec((t_chunk, B, H), lambda i: (i, 0, 0)),   # rnn chunk
            pl.BlockSpec((B, H), lambda i: (0, 0)),               # hT
            pl.BlockSpec((B, H), lambda i: (0, 0)),               # cT
            pl.BlockSpec((t_chunk, B, S), lambda i: (i, 0, 0)),   # scores chunk
            pl.BlockSpec((B, t_chunk, 2 * H), lambda i: (0, i, 0)),  # cc chunk
        ],
        scratch_shapes=[
            pltpu.VMEM((t_chunk * B, 4 * H), jnp.float32),  # hoisted gates_x
            pltpu.VMEM((B, H), jnp.float32),                # h carry
            pltpu.VMEM((B, H), jnp.float32),                # c carry
            pltpu.VMEM((B, t_chunk, H), jnp.float32),       # batch-major q
        ],
    )
    rnn_output, hT, cT, attn_scores, concat_bt = pl.pallas_call(
        functools.partial(seq_decoder_kernel, matmul_dtype=matmul_dtype),
        out_shape=out_shapes,
        grid_spec=grid_spec,
        compiler_params=pltpu.CompilerParams(
            # Serial T recurrence -> "arbitrary".
            # TODO(synk): at production B, add a leading batch-chunk
            # "parallel" axis so v7x's second TensorCore is used.
            dimension_semantics=("arbitrary",)),
    )(emb2d, wih_t, whh_t, bias, state_h[0], state_c[0], ctx_bm)

    concat_c = concat_bt.reshape(B * T, 2 * H)       # contiguous view, no copy
    hidden = (hT[None], cT[None])                    # (1, B, H) each
    outputs = rnn_output
    # TODO(synk): GlobalAttention.linear_out / tanh produce attn_h, which the
    # module computes internally but does not return from forward(); omitted.
    return outputs, hidden, attn_scores, rnn_output, concat_c


# ----------------------------------------------------------------------------
# Pure-JAX reference (for correctness check)
# ----------------------------------------------------------------------------
def reference_forward(inp, context, state_h, state_c, params):
    H = state_h.shape[-1]

    def cell(carry, x_t):
        h, c = carry
        gates = (x_t @ params["w_ih"].T + params["b_ih"]
                 + h @ params["w_hh"].T + params["b_hh"])
        i = jax.nn.sigmoid(gates[:, 0 * H:1 * H])
        f = jax.nn.sigmoid(gates[:, 1 * H:2 * H])
        g = jnp.tanh(gates[:, 2 * H:3 * H])
        o = jax.nn.sigmoid(gates[:, 3 * H:4 * H])
        c_new = f * c + i * g
        h_new = o * jnp.tanh(c_new)
        return (h_new, c_new), h_new

    (hT, cT), rnn_output = jax.lax.scan(cell, (state_h[0], state_c[0]), inp)
    q_bt = jnp.transpose(rnn_output, (1, 0, 2))
    ctx_bt = jnp.transpose(context, (1, 0, 2))
    scores = jnp.einsum("bth,bsh->bts", q_bt, ctx_bt)
    align = jax.nn.softmax(scores, axis=-1)
    c = jnp.einsum("bts,bsh->bth", align, ctx_bt)
    T, B, _ = inp.shape
    concat_c = jnp.concatenate([c, q_bt], -1).reshape(B * T, 2 * H)
    return (rnn_output, (hT[None], cT[None]),
            jnp.transpose(align, (1, 0, 2)), rnn_output, concat_c)


if __name__ == "__main__":
    # Small deterministic shapes consistent with the module's forward.
    # T=16 with t_chunk=8 exercises the multi-chunk (carried-state) grid path.
    T, B, S = 16, 2, 16        # tgt_len, batch, src_len
    I, H = 32, 32              # input_size, hidden_size (num_layers = 1)

    key = jax.random.PRNGKey(0)
    ks = jax.random.split(key, 8)
    inp = jax.random.normal(ks[0], (T, B, I), jnp.float32)
    context = jax.random.normal(ks[1], (S, B, H), jnp.float32)
    h0 = jax.random.normal(ks[2], (1, B, H), jnp.float32)
    c0 = jax.random.normal(ks[3], (1, B, H), jnp.float32)

    scale = 0.1
    params = {
        "w_ih": scale * jax.random.normal(ks[4], (4 * H, I), jnp.float32),
        "w_hh": scale * jax.random.normal(ks[5], (4 * H, H), jnp.float32),
        "b_ih": scale * jax.random.normal(ks[6], (4 * H,), jnp.float32),
        "b_hh": scale * jax.random.normal(ks[7], (4 * H,), jnp.float32),
    }

    fwd = jax.jit(seq_decoder_forward,
                  static_argnames=("matmul_dtype", "t_chunk"))

    refs = reference_forward(inp, context, h0, c0, params)
    flat_r = [refs[0], refs[1][0], refs[1][1], refs[2], refs[3], refs[4]]

    # f32 matmul-operand path: tight check.
    outs = fwd(inp, context, h0, c0, params, matmul_dtype=jnp.float32)
    outs = jax.block_until_ready(outs)
    flat_o = [outs[0], outs[1][0], outs[1][1], outs[2], outs[3], outs[4]]
    tols = [1e-4, 1e-4, 1e-4, 1e-2, 1e-4, 1e-2]
    for o, r, tol in zip(flat_o, flat_r, tols):
        assert o.shape == r.shape and o.dtype == r.dtype
        assert jnp.max(jnp.abs(o - r)) < tol

    # bf16 MXU-operand path (recommended on v5e/v6e/v7x): f32 accumulation,
    # f32 recurrent h@W_hh and f32 elementwise; loose tolerance for the
    # reduced operand precision of the input projection / attention.
    outs_b = fwd(inp, context, h0, c0, params, matmul_dtype=jnp.bfloat16)
    outs_b = jax.block_until_ready(outs_b)
    flat_b = [outs_b[0], outs_b[1][0], outs_b[1][1], outs_b[2],
              outs_b[3], outs_b[4]]
    for o, r in zip(flat_b, flat_r):
        assert o.shape == r.shape and o.dtype == r.dtype
        assert jnp.max(jnp.abs(o - r)) < 2.5e-1

    print("KERNEL_OK")
</pallas_src>

<mosaic_0001>
module attributes {stable_mosaic.version = 11 : i64} {
  func.func @seq_decoder_kernel(%arg0: i32, %arg1: memref<16x32xf32, #tpu.memory_space<vmem>>, %arg2: memref<32x128xf32, #tpu.memory_space<vmem>>, %arg3: memref<32x128xf32, #tpu.memory_space<vmem>>, %arg4: memref<1x128xf32, #tpu.memory_space<vmem>>, %arg5: memref<2x32xf32, #tpu.memory_space<vmem>>, %arg6: memref<2x32xf32, #tpu.memory_space<vmem>>, %arg7: memref<2x16x32xf32, #tpu.memory_space<vmem>>, %arg8: memref<8x2x32xf32, #tpu.memory_space<vmem>>, %arg9: memref<2x32xf32, #tpu.memory_space<vmem>>, %arg10: memref<2x32xf32, #tpu.memory_space<vmem>>, %arg11: memref<8x2x16xf32, #tpu.memory_space<vmem>>, %arg12: memref<2x8x64xf32, #tpu.memory_space<vmem>>, %arg13: memref<16x128xf32, #tpu.memory_space<vmem>>, %arg14: memref<2x32xf32, #tpu.memory_space<vmem>>, %arg15: memref<2x32xf32, #tpu.memory_space<vmem>>, %arg16: memref<2x8x32xf32, #tpu.memory_space<vmem>>) attributes {dimension_semantics = [#tpu.dimension_semantics<arbitrary>], iteration_bounds = array<i64: 2>, scalar_prefetch = 0 : i64, scratch_operands = 4 : i64, tpu.core_type = #tpu.core_type<tc>, window_params = [{transform_indices = @transform_0, window_bounds = array<i64: 16, 32>}, {pipeline_mode = #tpu.pipeline_mode<synchronous>, transform_indices = @transform_1, window_bounds = array<i64: 32, 128>}, {pipeline_mode = #tpu.pipeline_mode<synchronous>, transform_indices = @transform_2, window_bounds = array<i64: 32, 128>}, {pipeline_mode = #tpu.pipeline_mode<synchronous>, transform_indices = @transform_3, window_bounds = array<i64: 1, 128>}, {pipeline_mode = #tpu.pipeline_mode<synchronous>, transform_indices = @transform_4, window_bounds = array<i64: 2, 32>}, {pipeline_mode = #tpu.pipeline_mode<synchronous>, transform_indices = @transform_5, window_bounds = array<i64: 2, 32>}, {pipeline_mode = #tpu.pipeline_mode<synchronous>, transform_indices = @transform_6, window_bounds = array<i64: 2, 16, 32>}, {transform_indices = @transform_7, window_bounds = array<i64: 8, 2, 32>}, {pipeline_mode = #tpu.pipeline_mode<synchronous>, transform_indices = @transform_8, window_bounds = array<i64: 2, 32>}, {pipeline_mode = #tpu.pipeline_mode<synchronous>, transform_indices = @transform_9, window_bounds = array<i64: 2, 32>}, {transform_indices = @transform_10, window_bounds = array<i64: 8, 2, 16>}, {transform_indices = @transform_11, window_bounds = array<i64: 2, 8, 64>}]} {
    %c0_i32 = arith.constant 0 : i32
    %0 = arith.cmpi eq, %arg0, %c0_i32 : i32
    %1 = arith.extui %0 : i1 to i32
    %c0_i32_0 = arith.constant 0 : i32
    %2 = arith.cmpi ne, %1, %c0_i32_0 : i32
    scf.if %2 {
      %c0_168 = arith.constant 0 : index
      %c0_169 = arith.constant 0 : index
      %265 = vector.load %arg5[%c0_168, %c0_169] : memref<2x32xf32, #tpu.memory_space<vmem>>, vector<2x32xf32>
      %c0_170 = arith.constant 0 : index
      %c0_171 = arith.constant 0 : index
      %266 = vector.load %arg14[%c0_170, %c0_171] : memref<2x32xf32, #tpu.memory_space<vmem>>, vector<2x32xf32>
      tpu.vector_store %arg14[%c0_170, %c0_171], %265 {strides = array<i32>} : memref<2x32xf32, #tpu.memory_space<vmem>>, vector<2x32xf32>,
      %c0_172 = arith.constant 0 : index
      %c0_173 = arith.constant 0 : index
      %267 = vector.load %arg6[%c0_172, %c0_173] : memref<2x32xf32, #tpu.memory_space<vmem>>, vector<2x32xf32>
      %c0_174 = arith.constant 0 : index
      %c0_175 = arith.constant 0 : index
      %268 = vector.load %arg15[%c0_174, %c0_175] : memref<2x32xf32, #tpu.memory_space<vmem>>, vector<2x32xf32>
      tpu.vector_store %arg15[%c0_174, %c0_175], %267 {strides = array<i32>} : memref<2x32xf32, #tpu.memory_space<vmem>>, vector<2x32xf32>,
    } else {
    }
    %c0 = arith.constant 0 : index
    %c0_1 = arith.constant 0 : index
    %3 = vector.load %arg1[%c0, %c0_1] : memref<16x32xf32, #tpu.memory_space<vmem>>, vector<16x32xf32>
    %c0_2 = arith.constant 0 : index
    %c0_3 = arith.constant 0 : index
    %4 = vector.load %arg2[%c0_2, %c0_3] : memref<32x128xf32, #tpu.memory_space<vmem>>, vector<32x128xf32>
    %cst = arith.constant dense<0.000000e+00> : vector<16x128xf32>
    %5 = tpu.matmul %3, %4, %cst {dimension_numbers = #tpu.dot_dimension_numbers<[1], [0], [0], [1], [0, 0, 1, 1], [], []>} : vector<16x32xf32>, vector<32x128xf32>, vector<16x128xf32> -> vector<16x128xf32>
    %c0_4 = arith.constant 0 : index
    %c0_5 = arith.constant 0 : index
    %6 = vector.load %arg4[%c0_4, %c0_5] : memref<1x128xf32, #tpu.memory_space<vmem>>, vector<1x128xf32>
    %7 = vector.broadcast %6 : vector<1x128xf32> to vector<16x128xf32>
    %8 = arith.addf %5, %7 : vector<16x128xf32>
    %c0_6 = arith.constant 0 : index
    %c0_7 = arith.constant 0 : index
    %9 = vector.load %arg13[%c0_6, %c0_7] : memref<16x128xf32, #tpu.memory_space<vmem>>, vector<16x128xf32>
    tpu.vector_store %arg13[%c0_6, %c0_7], %8 {strides = array<i32>} : memref<16x128xf32, #tpu.memory_space<vmem>>, vector<16x128xf32>,
    %c0_8 = arith.constant 0 : index
    %c0_9 = arith.constant 0 : index
    %10 = vector.load %arg3[%c0_8, %c0_9] : memref<32x128xf32, #tpu.memory_space<vmem>>, vector<32x128xf32>
    %c0_10 = arith.constant 0 : index
    %c0_11 = arith.constant 0 : index
    %11 = vector.load %arg13[%c0_10, %c0_11] : memref<16x128xf32, #tpu.memory_space<vmem>>, vector<2x128xf32>
    %c0_12 = arith.constant 0 : index
    %c0_13 = arith.constant 0 : index
    %12 = vector.load %arg14[%c0_12, %c0_13] : memref<2x32xf32, #tpu.memory_space<vmem>>, vector<2x32xf32>
    %cst_14 = arith.constant dense<0.000000e+00> : vector<2x128xf32>
    %13 = tpu.matmul %12, %10, %cst_14 {dimension_numbers = #tpu.dot_dimension_numbers<[1], [0], [0], [1], [0, 0, 1, 1], [], []>} : vector<2x32xf32>, vector<32x128xf32>, vector<2x128xf32> -> vector<2x128xf32>
    %14 = arith.addf %11, %13 : vector<2x128xf32>
    %15 = arith.negf %14 : vector<2x128xf32>
    %16 = math.exp %15 : vector<2x128xf32>
    %cst_15 = arith.constant 1.000000e+00 : f32
    %17 = vector.broadcast %cst_15 : f32 to vector<2x128xf32>
    %18 = arith.addf %17, %16 : vector<2x128xf32>
    %19 = arith.divf %17, %18 : vector<2x128xf32>
    %20 = vector.extract_strided_slice %19 {offsets = [0, 0], sizes = [2, 32], strides = [1, 1]} : vector<2x128xf32> to vector<2x32xf32>
    %21 = vector.extract_strided_slice %19 {offsets = [0, 32], sizes = [2, 32], strides = [1, 1]} : vector<2x128xf32> to vector<2x32xf32>
    %22 = vector.extract_strided_slice %19 {offsets = [0, 96], sizes = [2, 32], strides = [1, 1]} : vector<2x128xf32> to vector<2x32xf32>
    %23 = vector.extract_strided_slice %14 {offsets = [0, 64], sizes = [2, 32], strides = [1, 1]} : vector<2x128xf32> to vector<2x32xf32>
    %24 = math.tanh %23 : vector<2x32xf32>
    %c0_16 = arith.constant 0 : index
    %c0_17 = arith.constant 0 : index
    %25 = vector.load %arg15[%c0_16, %c0_17] : memref<2x32xf32, #tpu.memory_space<vmem>>, vector<2x32xf32>
    %26 = arith.mulf %21, %25 : vector<2x32xf32>
    %27 = arith.mulf %20, %24 : vector<2x32xf32>
    %28 = arith.addf %26, %27 : vector<2x32xf32>
    %29 = math.tanh %28 : vector<2x32xf32>
    %30 = arith.mulf %22, %29 : vector<2x32xf32>
    %c0_18 = arith.constant 0 : index
    %c0_19 = arith.constant 0 : index
    %31 = vector.load %arg15[%c0_18, %c0_19] : memref<2x32xf32, #tpu.memory_space<vmem>>, vector<2x32xf32>
    tpu.vector_store %arg15[%c0_18, %c0_19], %28 {strides = array<i32>} : memref<2x32xf32, #tpu.memory_space<vmem>>, vector<2x32xf32>,
    %c0_20 = arith.constant 0 : index
    %c0_21 = arith.constant 0 : index
    %32 = vector.load %arg14[%c0_20, %c0_21] : memref<2x32xf32, #tpu.memory_space<vmem>>, vector<2x32xf32>
    tpu.vector_store %arg14[%c0_20, %c0_21], %30 {strides = array<i32>} : memref<2x32xf32, #tpu.memory_space<vmem>>, vector<2x32xf32>,
    %c0_22 = arith.constant 0 : index
    %c0_23 = arith.constant 0 : index
    %c0_24 = arith.constant 0 : index
    %33 = vector.load %arg8[%c0_22, %c0_23, %c0_24] : memref<8x2x32xf32, #tpu.memory_space<vmem>>, vector<1x2x32xf32>
    %34 = vector.shape_cast %33 : vector<1x2x32xf32> to vector<2x32xf32>
    %35 = vector.shape_cast %30 : vector<2x32xf32> to vector<1x2x32xf32>
    tpu.vector_store %arg8[%c0_22, %c0_23, %c0_24], %35 {strides = array<i32>} : memref<8x2x32xf32, #tpu.memory_space<vmem>>, vector<1x2x32xf32>,
    %c0_25 = arith.constant 0 : index
    %c0_26 = arith.constant 0 : index
    %c0_27 = arith.constant 0 : index
    %36 = vector.load %arg16[%c0_25, %c0_26, %c0_27] : memref<2x8x32xf32, #tpu.memory_space<vmem>>, vector<2x1x32xf32>
    %37 = vector.shape_cast %36 : vector<2x1x32xf32> to vector<2x32xf32>
    %38 = vector.shape_cast %30 : vector<2x32xf32> to vector<2x1x32xf32>
    tpu.vector_store %arg16[%c0_25, %c0_26, %c0_27], %38 {strides = array<i32>} : memref<2x8x32xf32, #tpu.memory_space<vmem>>, vector<2x1x32xf32>,
    %c2 = arith.constant 2 : index
    %c0_28 = arith.constant 0 : index
    %39 = vector.load %arg13[%c2, %c0_28] : memref<16x128xf32, #tpu.memory_space<vmem>>, vector<2x128xf32>
    %c0_29 = arith.constant 0 : index
    %c0_30 = arith.constant 0 : index
    %40 = vector.load %arg14[%c0_29, %c0_30] : memref<2x32xf32, #tpu.memory_space<vmem>>, vector<2x32xf32>
    %cst_31 = arith.constant dense<0.000000e+00> : vector<2x128xf32>
    %41 = tpu.matmul %40, %10, %cst_31 {dimension_numbers = #tpu.dot_dimension_numbers<[1], [0], [0], [1], [0, 0, 1, 1], [], []>} : vector<2x32xf32>, vector<32x128xf32>, vector<2x128xf32> -> vector<2x128xf32>
    %42 = arith.addf %39, %41 : vector<2x128xf32>
    %43 = arith.negf %42 : vector<2x128xf32>
    %44 = math.exp %43 : vector<2x128xf32>
    %cst_32 = arith.constant 1.000000e+00 : f32
    %45 = vector.broadcast %cst_32 : f32 to vector<2x128xf32>
    %46 = arith.addf %45, %44 : vector<2x128xf32>
    %47 = arith.divf %45, %46 : vector<2x128xf32>
    %48 = vector.extract_strided_slice %47 {offsets = [0, 0], sizes = [2, 32], strides = [1, 1]} : vector<2x128xf32> to vector<2x32xf32>
    %49 = vector.extract_strided_slice %47 {offsets = [0, 32], sizes = [2, 32], strides = [1, 1]} : vector<2x128xf32> to vector<2x32xf32>
    %50 = vector.extract_strided_slice %47 {offsets = [0, 96], sizes = [2, 32], strides = [1, 1]} : vector<2x128xf32> to vector<2x32xf32>
    %51 = vector.extract_strided_slice %42 {offsets = [0, 64], sizes = [2, 32], strides = [1, 1]} : vector<2x128xf32> to vector<2x32xf32>
    %52 = math.tanh %51 : vector<2x32xf32>
    %c0_33 = arith.constant 0 : index
    %c0_34 = arith.constant 0 : index
    %53 = vector.load %arg15[%c0_33, %c0_34] : memref<2x32xf32, #tpu.memory_space<vmem>>, vector<2x32xf32>
    %54 = arith.mulf %49, %53 : vector<2x32xf32>
    %55 = arith.mulf %48, %52 : vector<2x32xf32>
    %56 = arith.addf %54, %55 : vector<2x32xf32>
    %57 = math.tanh %56 : vector<2x32xf32>
    %58 = arith.mulf %50, %57 : vector<2x32xf32>
    %c0_35 = arith.constant 0 : index
    %c0_36 = arith.constant 0 : index
    %59 = vector.load %arg15[%c0_35, %c0_36] : memref<2x32xf32, #tpu.memory_space<vmem>>, vector<2x32xf32>
    tpu.vector_store %arg15[%c0_35, %c0_36], %56 {strides = array<i32>} : memref<2x32xf32, #tpu.memory_space<vmem>>, vector<2x32xf32>,
    %c0_37 = arith.constant 0 : index
    %c0_38 = arith.constant 0 : index
    %60 = vector.load %arg14[%c0_37, %c0_38] : memref<2x32xf32, #tpu.memory_space<vmem>>, vector<2x32xf32>
    tpu.vector_store %arg14[%c0_37, %c0_38], %58 {strides = array<i32>} : memref<2x32xf32, #tpu.memory_space<vmem>>, vector<2x32xf32>,
    %c1 = arith.constant 1 : index
    %c0_39 = arith.constant 0 : index
    %c0_40 = arith.constant 0 : index
    %61 = vector.load %arg8[%c1, %c0_39, %c0_40] : memref<8x2x32xf32, #tpu.memory_space<vmem>>, vector<1x2x32xf32>
    %62 = vector.shape_cast %61 : vector<1x2x32xf32> to vector<2x32xf32>
    %63 = vector.shape_cast %58 : vector<2x32xf32> to vector<1x2x32xf32>
    tpu.vector_store %arg8[%c1, %c0_39, %c0_40], %63 {strides = array<i32>} : memref<8x2x32xf32, #tpu.memory_space<vmem>>, vector<1x2x32xf32>,
    %c0_41 = arith.constant 0 : index
    %c1_42 = arith.constant 1 : index
    %c0_43 = arith.constant 0 : index
    %64 = vector.load %arg16[%c0_41, %c1_42, %c0_43] : memref<2x8x32xf32, #tpu.memory_space<vmem>>, vector<2x1x32xf32>
    %65 = vector.shape_cast %64 : vector<2x1x32xf32> to vector<2x32xf32>
    %66 = vector.shape_cast %58 : vector<2x32xf32> to vector<2x1x32xf32>
    tpu.vector_store %arg16[%c0_41, %c1_42, %c0_43], %66 {strides = array<i32>} : memref<2x8x32xf32, #tpu.memory_space<vmem>>, vector<2x1x32xf32>,
    %c4 = arith.constant 4 : index
    %c0_44 = arith.constant 0 : index
    %67 = vector.load %arg13[%c4, %c0_44] : memref<16x128xf32, #tpu.memory_space<vmem>>, vector<2x128xf32>
    %c0_45 = arith.constant 0 : index
    %c0_46 = arith.constant 0 : index
    %68 = vector.load %arg14[%c0_45, %c0_46] : memref<2x32xf32, #tpu.memory_space<vmem>>, vector<2x32xf32>
    %cst_47 = arith.constant dense<0.000000e+00> : vector<2x128xf32>
    %69 = tpu.matmul %68, %10, %cst_47 {dimension_numbers = #tpu.dot_dimension_numbers<[1], [0], [0], [1], [0, 0, 1, 1], [], []>} : vector<2x32xf32>, vector<32x128xf32>, vector<2x128xf32> -> vector<2x128xf32>
    %70 = arith.addf %67, %69 : vector<2x128xf32>
    %71 = arith.negf %70 : vector<2x128xf32>
    %72 = math.exp %71 : vector<2x128xf32>
    %cst_48 = arith.constant 1.000000e+00 : f32
    %73 = vector.broadcast %cst_48 : f32 to vector<2x128xf32>
    %74 = arith.addf %73, %72 : vector<2x128xf32>
    %75 = arith.divf %73, %74 : vector<2x128xf32>
    %76 = vector.extract_strided_slice %75 {offsets = [0, 0], sizes = [2, 32], strides = [1, 1]} : vector<2x128xf32> to vector<2x32xf32>
    %77 = vector.extract_strided_slice %75 {offsets = [0, 32], sizes = [2, 32], strides = [1, 1]} : vector<2x128xf32> to vector<2x32xf32>
    %78 = vector.extract_strided_slice %75 {offsets = [0, 96], sizes = [2, 32], strides = [1, 1]} : vector<2x128xf32> to vector<2x32xf32>
    %79 = vector.extract_strided_slice %70 {offsets = [0, 64], sizes = [2, 32], strides = [1, 1]} : vector<2x128xf32> to vector<2x32xf32>
    %80 = math.tanh %79 : vector<2x32xf32>
    %c0_49 = arith.constant 0 : index
    %c0_50 = arith.constant 0 : index
    %81 = vector.load %arg15[%c0_49, %c0_50] : memref<2x32xf32, #tpu.memory_space<vmem>>, vector<2x32xf32>
    %82 = arith.mulf %77, %81 : vector<2x32xf32>
    %83 = arith.mulf %76, %80 : vector<2x32xf32>
    %84 = arith.addf %82, %83 : vector<2x32xf32>
    %85 = math.tanh %84 : vector<2x32xf32>
    %86 = arith.mulf %78, %85 : vector<2x32xf32>
    %c0_51 = arith.constant 0 : index
    %c0_52 = arith.constant 0 : index
    %87 = vector.load %arg15[%c0_51, %c0_52] : memref<2x32xf32, #tpu.memory_space<vmem>>, vector<2x32xf32>
    tpu.vector_store %arg15[%c0_51, %c0_52], %84 {strides = array<i32>} : memref<2x32xf32, #tpu.memory_space<vmem>>, vector<2x32xf32>,
    %c0_53 = arith.constant 0 : index
    %c0_54 = arith.constant 0 : index
    %88 = vector.load %arg14[%c0_53, %c0_54] : memref<2x32xf32, #tpu.memory_space<vmem>>, vector<2x32xf32>
    tpu.vector_store %arg14[%c0_53, %c0_54], %86 {strides = array<i32>} : memref<2x32xf32, #tpu.memory_space<vmem>>, vector<2x32xf32>,
    %c2_55 = arith.constant 2 : index
    %c0_56 = arith.constant 0 : index
    %c0_57 = arith.constant 0 : index
    %89 = vector.load %arg8[%c2_55, %c0_56, %c0_57] : memref<8x2x32xf32, #tpu.memory_space<vmem>>, vector<1x2x32xf32>
    %90 = vector.shape_cast %89 : vector<1x2x32xf32> to vector<2x32xf32>
    %91 = vector.shape_cast %86 : vector<2x32xf32> to vector<1x2x32xf32>
    tpu.vector_store %arg8[%c2_55, %c0_56, %c0_57], %91 {strides = array<i32>} : memref<8x2x32xf32, #tpu.memory_space<vmem>>, vector<1x2x32xf32>,
    %c0_58 = arith.constant 0 : index
    %c2_59 = arith.constant 2 : index
    %c0_60 = arith.constant 0 : index
    %92 = vector.load %arg16[%c0_58, %c2_59, %c0_60] : memref<2x8x32xf32, #tpu.memory_space<vmem>>, vector<2x1x32xf32>
    %93 = vector.shape_cast %92 : vector<2x1x32xf32> to vector<2x32xf32>
    %94 = vector.shape_cast %86 : vector<2x32xf32> to vector<2x1x32xf32>
    tpu.vector_store %arg16[%c0_58, %c2_59, %c0_60], %94 {strides = array<i32>} : memref<2x8x32xf32, #tpu.memory_space<vmem>>, vector<2x1x32xf32>,
    %c6 = arith.constant 6 : index
    %c0_61 = arith.constant 0 : index
    %95 = vector.load %arg13[%c6, %c0_61] : memref<16x128xf32, #tpu.memory_space<vmem>>, vector<2x128xf32>
    %c0_62 = arith.constant 0 : index
    %c0_63 = arith.constant 0 : index
    %96 = vector.load %arg14[%c0_62, %c0_63] : memref<2x32xf32, #tpu.memory_space<vmem>>, vector<2x32xf32>
    %cst_64 = arith.constant dense<0.000000e+00> : vector<2x128xf32>
    %97 = tpu.matmul %96, %10, %cst_64 {dimension_numbers = #tpu.dot_dimension_numbers<[1], [0], [0], [1], [0, 0, 1, 1], [], []>} : vector<2x32xf32>, vector<32x128xf32>, vector<2x128xf32> -> vector<2x128xf32>
    %98 = arith.addf %95, %97 : vector<2x128xf32>
    %99 = arith.negf %98 : vector<2x128xf32>
    %100 = math.exp %99 : vector<2x128xf32>
    %cst_65 = arith.constant 1.000000e+00 : f32
    %101 = vector.broadcast %cst_65 : f32 to vector<2x128xf32>
    %102 = arith.addf %101, %100 : vector<2x128xf32>
    %103 = arith.divf %101, %102 : vector<2x128xf32>
    %104 = vector.extract_strided_slice %103 {offsets = [0, 0], sizes = [2, 32], strides = [1, 1]} : vector<2x128xf32> to vector<2x32xf32>
    %105 = vector.extract_strided_slice %103 {offsets = [0, 32], sizes = [2, 32], strides = [1, 1]} : vector<2x128xf32> to vector<2x32xf32>
    %106 = vector.extract_strided_slice %103 {offsets = [0, 96], sizes = [2, 32], strides = [1, 1]} : vector<2x128xf32> to vector<2x32xf32>
    %107 = vector.extract_strided_slice %98 {offsets = [0, 64], sizes = [2, 32], strides = [1, 1]} : vector<2x128xf32> to vector<2x32xf32>
    %108 = math.tanh %107 : vector<2x32xf32>
    %c0_66 = arith.constant 0 : index
    %c0_67 = arith.constant 0 : index
    %109 = vector.load %arg15[%c0_66, %c0_67] : memref<2x32xf32, #tpu.memory_space<vmem>>, vector<2x32xf32>
    %110 = arith.mulf %105, %109 : vector<2x32xf32>
    %111 = arith.mulf %104, %108 : vector<2x32xf32>
    %112 = arith.addf %110, %111 : vector<2x32xf32>
    %113 = math.tanh %112 : vector<2x32xf32>
    %114 = arith.mulf %106, %113 : vector<2x32xf32>
    %c0_68 = arith.constant 0 : index
    %c0_69 = arith.constant 0 : index
    %115 = vector.load %arg15[%c0_68, %c0_69] : memref<2x32xf32, #tpu.memory_space<vmem>>, vector<2x32xf32>
    tpu.vector_store %arg15[%c0_68, %c0_69], %112 {strides = array<i32>} : memref<2x32xf32, #tpu.memory_space<vmem>>, vector<2x32xf32>,
    %c0_70 = arith.constant 0 : index
    %c0_71 = arith.constant 0 : index
    %116 = vector.load %arg14[%c0_70, %c0_71] : memref<2x32xf32, #tpu.memory_space<vmem>>, vector<2x32xf32>
    tpu.vector_store %arg14[%c0_70, %c0_71], %114 {strides = array<i32>} : memref<2x32xf32, #tpu.memory_space<vmem>>, vector<2x32xf32>,
    %c3 = arith.constant 3 : index
    %c0_72 = arith.constant 0 : index
    %c0_73 = arith.constant 0 : index
    %117 = vector.load %arg8[%c3, %c0_72, %c0_73] : memref<8x2x32xf32, #tpu.memory_space<vmem>>, vector<1x2x32xf32>
    %118 = vector.shape_cast %117 : vector<1x2x32xf32> to vector<2x32xf32>
    %119 = vector.shape_cast %114 : vector<2x32xf32> to vector<1x2x32xf32>
    tpu.vector_store %arg8[%c3, %c0_72, %c0_73], %119 {strides = array<i32>} : memref<8x2x32xf32, #tpu.memory_space<vmem>>, vector<1x2x32xf32>,
    %c0_74 = arith.constant 0 : index
    %c3_75 = arith.constant 3 : index
    %c0_76 = arith.constant 0 : index
    %120 = vector.load %arg16[%c0_74, %c3_75, %c0_76] : memref<2x8x32xf32, #tpu.memory_space<vmem>>, vector<2x1x32xf32>
    %121 = vector.shape_cast %120 : vector<2x1x32xf32> to vector<2x32xf32>
    %122 = vector.shape_cast %114 : vector<2x32xf32> to vector<2x1x32xf32>
    tpu.vector_store %arg16[%c0_74, %c3_75, %c0_76], %122 {strides = array<i32>} : memref<2x8x32xf32, #tpu.memory_space<vmem>>, vector<2x1x32xf32>,
    %c8 = arith.constant 8 : index
    %c0_77 = arith.constant 0 : index
    %123 = vector.load %arg13[%c8, %c0_77] : memref<16x128xf32, #tpu.memory_space<vmem>>, vector<2x128xf32>
    %c0_78 = arith.constant 0 : index
    %c0_79 = arith.constant 0 : index
    %124 = vector.load %arg14[%c0_78, %c0_79] : memref<2x32xf32, #tpu.memory_space<vmem>>, vector<2x32xf32>
    %cst_80 = arith.constant dense<0.000000e+00> : vector<2x128xf32>
    %125 = tpu.matmul %124, %10, %cst_80 {dimension_numbers = #tpu.dot_dimension_numbers<[1], [0], [0], [1], [0, 0, 1, 1], [], []>} : vector<2x32xf32>, vector<32x128xf32>, vector<2x128xf32> -> vector<2x128xf32>
    %126 = arith.addf %123, %125 : vector<2x128xf32>
    %127 = arith.negf %126 : vector<2x128xf32>
    %128 = math.exp %127 : vector<2x128xf32>
    %cst_81 = arith.constant 1.000000e+00 : f32
    %129 = vector.broadcast %cst_81 : f32 to vector<2x128xf32>
    %130 = arith.addf %129, %128 : vector<2x128xf32>
    %131 = arith.divf %129, %130 : vector<2x128xf32>
    %132 = vector.extract_strided_slice %131 {offsets = [0, 0], sizes = [2, 32], strides = [1, 1]} : vector<2x128xf32> to vector<2x32xf32>
    %133 = vector.extract_strided_slice %131 {offsets = [0, 32], sizes = [2, 32], strides = [1, 1]} : vector<2x128xf32> to vector<2x32xf32>
    %134 = vector.extract_strided_slice %131 {offsets = [0, 96], sizes = [2, 32], strides = [1, 1]} : vector<2x128xf32> to vector<2x32xf32>
    %135 = vector.extract_strided_slice %126 {offsets = [0, 64], sizes = [2, 32], strides = [1, 1]} : vector<2x128xf32> to vector<2x32xf32>
    %136 = math.tanh %135 : vector<2x32xf32>
    %c0_82 = arith.constant 0 : index
    %c0_83 = arith.constant 0 : index
    %137 = vector.load %arg15[%c0_82, %c0_83] : memref<2x32xf32, #tpu.memory_space<vmem>>, vector<2x32xf32>
    %138 = arith.mulf %133, %137 : vector<2x32xf32>
    %139 = arith.mulf %132, %136 : vector<2x32xf32>
    %140 = arith.addf %138, %139 : vector<2x32xf32>
    %141 = math.tanh %140 : vector<2x32xf32>
    %142 = arith.mulf %134, %141 : vector<2x32xf32>
    %c0_84 = arith.constant 0 : index
    %c0_85 = arith.constant 0 : index
    %143 = vector.load %arg15[%c0_84, %c0_85] : memref<2x32xf32, #tpu.memory_space<vmem>>, vector<2x32xf32>
    tpu.vector_store %arg15[%c0_84, %c0_85], %140 {strides = array<i32>} : memref<2x32xf32, #tpu.memory_space<vmem>>, vector<2x32xf32>,
    %c0_86 = arith.constant 0 : index
    %c0_87 = arith.constant 0 : index
    %144 = vector.load %arg14[%c0_86, %c0_87] : memref<2x32xf32, #tpu.memory_space<vmem>>, vector<2x32xf32>
    tpu.vector_store %arg14[%c0_86, %c0_87], %142 {strides = array<i32>} : memref<2x32xf32, #tpu.memory_space<vmem>>, vector<2x32xf32>,
    %c4_88 = arith.constant 4 : index
    %c0_89 = arith.constant 0 : index
    %c0_90 = arith.constant 0 : index
    %145 = vector.load %arg8[%c4_88, %c0_89, %c0_90] : memref<8x2x32xf32, #tpu.memory_space<vmem>>, vector<1x2x32xf32>
    %146 = vector.shape_cast %145 : vector<1x2x32xf32> to vector<2x32xf32>
    %147 = vector.shape_cast %142 : vector<2x32xf32> to vector<1x2x32xf32>
    tpu.vector_store %arg8[%c4_88, %c0_89, %c0_90], %147 {strides = array<i32>} : memref<8x2x32xf32, #tpu.memory_space<vmem>>, vector<1x2x32xf32>,
    %c0_91 = arith.constant 0 : index
    %c4_92 = arith.constant 4 : index
    %c0_93 = arith.constant 0 : index
    %148 = vector.load %arg16[%c0_91, %c4_92, %c0_93] : memref<2x8x32xf32, #tpu.memory_space<vmem>>, vector<2x1x32xf32>
    %149 = vector.shape_cast %148 : vector<2x1x32xf32> to vector<2x32xf32>
    %150 = vector.shape_cast %142 : vector<2x32xf32> to vector<2x1x32xf32>
    tpu.vector_store %arg16[%c0_91, %c4_92, %c0_93], %150 {strides = array<i32>} : memref<2x8x32xf32, #tpu.memory_space<vmem>>, vector<2x1x32xf32>,
    %c10 = arith.constant 10 : index
    %c0_94 = arith.constant 0 : index
    %151 = vector.load %arg13[%c10, %c0_94] : memref<16x128xf32, #tpu.memory_space<vmem>>, vector<2x128xf32>
    %c0_95 = arith.constant 0 : index
    %c0_96 = arith.constant 0 : index
    %152 = vector.load %arg14[%c0_95, %c0_96] : memref<2x32xf32, #tpu.memory_space<vmem>>, vector<2x32xf32>
    %cst_97 = arith.constant dense<0.000000e+00> : vector<2x128xf32>
    %153 = tpu.matmul %152, %10, %cst_97 {dimension_numbers = #tpu.dot_dimension_numbers<[1], [0], [0], [1], [0, 0, 1, 1], [], []>} : vector<2x32xf32>, vector<32x128xf32>, vector<2x128xf32> -> vector<2x128xf32>
    %154 = arith.addf %151, %153 : vector<2x128xf32>
    %155 = arith.negf %154 : vector<2x128xf32>
    %156 = math.exp %155 : vector<2x128xf32>
    %cst_98 = arith.constant 1.000000e+00 : f32
    %157 = vector.broadcast %cst_98 : f32 to vector<2x128xf32>
    %158 = arith.addf %157, %156 : vector<2x128xf32>
    %159 = arith.divf %157, %158 : vector<2x128xf32>
    %160 = vector.extract_strided_slice %159 {offsets = [0, 0], sizes = [2, 32], strides = [1, 1]} : vector<2x128xf32> to vector<2x32xf32>
    %161 = vector.extract_strided_slice %159 {offsets = [0, 32], sizes = [2, 32], strides = [1, 1]} : vector<2x128xf32> to vector<2x32xf32>
    %162 = vector.extract_strided_slice %159 {offsets = [0, 96], sizes = [2, 32], strides = [1, 1]} : vector<2x128xf32> to vector<2x32xf32>
    %163 = vector.extract_strided_slice %154 {offsets = [0, 64], sizes = [2, 32], strides = [1, 1]} : vector<2x128xf32> to vector<2x32xf32>
    %164 = math.tanh %163 : vector<2x32xf32>
    %c0_99 = arith.constant 0 : index
    %c0_100 = arith.constant 0 : index
    %165 = vector.load %arg15[%c0_99, %c0_100] : memref<2x32xf32, #tpu.memory_space<vmem>>, vector<2x32xf32>
    %166 = arith.mulf %161, %165 : vector<2x32xf32>
    %167 = arith.mulf %160, %164 : vector<2x32xf32>
    %168 = arith.addf %166, %167 : vector<2x32xf32>
    %169 = math.tanh %168 : vector<2x32xf32>
    %170 = arith.mulf %162, %169 : vector<2x32xf32>
    %c0_101 = arith.constant 0 : index
    %c0_102 = arith.constant 0 : index
    %171 = vector.load %arg15[%c0_101, %c0_102] : memref<2x32xf32, #tpu.memory_space<vmem>>, vector<2x32xf32>
    tpu.vector_store %arg15[%c0_101, %c0_102], %168 {strides = array<i32>} : memref<2x32xf32, #tpu.memory_space<vmem>>, vector<2x32xf32>,
    %c0_103 = arith.constant 0 : index
    %c0_104 = arith.constant 0 : index
    %172 = vector.load %arg14[%c0_103, %c0_104] : memref<2x32xf32, #tpu.memory_space<vmem>>, vector<2x32xf32>
    tpu.vector_store %arg14[%c0_103, %c0_104], %170 {strides = array<i32>} : memref<2x32xf32, #tpu.memory_space<vmem>>, vector<2x32xf32>,
    %c5 = arith.constant 5 : index
    %c0_105 = arith.constant 0 : index
    %c0_106 = arith.constant 0 : index
    %173 = vector.load %arg8[%c5, %c0_105, %c0_106] : memref<8x2x32xf32, #tpu.memory_space<vmem>>, vector<1x2x32xf32>
    %174 = vector.shape_cast %173 : vector<1x2x32xf32> to vector<2x32xf32>
    %175 = vector.shape_cast %170 : vector<2x32xf32> to vector<1x2x32xf32>
    tpu.vector_store %arg8[%c5, %c0_105, %c0_106], %175 {strides = array<i32>} : memref<8x2x32xf32, #tpu.memory_space<vmem>>, vector<1x2x32xf32>,
    %c0_107 = arith.constant 0 : index
    %c5_108 = arith.constant 5 : index
    %c0_109 = arith.constant 0 : index
    %176 = vector.load %arg16[%c0_107, %c5_108, %c0_109] : memref<2x8x32xf32, #tpu.memory_space<vmem>>, vector<2x1x32xf32>
    %177 = vector.shape_cast %176 : vector<2x1x32xf32> to vector<2x32xf32>
    %178 = vector.shape_cast %170 : vector<2x32xf32> to vector<2x1x32xf32>
    tpu.vector_store %arg16[%c0_107, %c5_108, %c0_109], %178 {strides = array<i32>} : memref<2x8x32xf32, #tpu.memory_space<vmem>>, vector<2x1x32xf32>,
    %c12 = arith.constant 12 : index
    %c0_110 = arith.constant 0 : index
    %179 = vector.load %arg13[%c12, %c0_110] : memref<16x128xf32, #tpu.memory_space<vmem>>, vector<2x128xf32>
    %c0_111 = arith.constant 0 : index
    %c0_112 = arith.constant 0 : index
    %180 = vector.load %arg14[%c0_111, %c0_112] : memref<2x32xf32, #tpu.memory_space<vmem>>, vector<2x32xf32>
    %cst_113 = arith.constant dense<0.000000e+00> : vector<2x128xf32>
    %181 = tpu.matmul %180, %10, %cst_113 {dimension_numbers = #tpu.dot_dimension_numbers<[1], [0], [0], [1], [0, 0, 1, 1], [], []>} : vector<2x32xf32>, vector<32x128xf32>, vector<2x128xf32> -> vector<2x128xf32>
    %182 = arith.addf %179, %181 : vector<2x128xf32>
    %183 = arith.negf %182 : vector<2x128xf32>
    %184 = math.exp %183 : vector<2x128xf32>
    %cst_114 = arith.constant 1.000000e+00 : f32
    %185 = vector.broadcast %cst_114 : f32 to vector<2x128xf32>
    %186 = arith.addf %185, %184 : vector<2x128xf32>
    %187 = arith.divf %185, %186 : vector<2x128xf32>
    %188 = vector.extract_strided_slice %187 {offsets = [0, 0], sizes = [2, 32], strides = [1, 1]} : vector<2x128xf32> to vector<2x32xf32>
    %189 = vector.extract_strided_slice %187 {offsets = [0, 32], sizes = [2, 32], strides = [1, 1]} : vector<2x128xf32> to vector<2x32xf32>
    %190 = vector.extract_strided_slice %187 {offsets = [0, 96], sizes = [2, 32], strides = [1, 1]} : vector<2x128xf32> to vector<2x32xf32>
    %191 = vector.extract_strided_slice %182 {offsets = [0, 64], sizes = [2, 32], strides = [1, 1]} : vector<2x128xf32> to vector<2x32xf32>
    %192 = math.tanh %191 : vector<2x32xf32>
    %c0_115 = arith.constant 0 : index
    %c0_116 = arith.constant 0 : index
    %193 = vector.load %arg15[%c0_115, %c0_116] : memref<2x32xf32, #tpu.memory_space<vmem>>, vector<2x32xf32>
    %194 = arith.mulf %189, %193 : vector<2x32xf32>
    %195 = arith.mulf %188, %192 : vector<2x32xf32>
    %196 = arith.addf %194, %195 : vector<2x32xf32>
    %197 = math.tanh %196 : vector<2x32xf32>
    %198 = arith.mulf %190, %197 : vector<2x32xf32>
    %c0_117 = arith.constant 0 : index
    %c0_118 = arith.constant 0 : index
    %199 = vector.load %arg15[%c0_117, %c0_118] : memref<2x32xf32, #tpu.memory_space<vmem>>, vector<2x32xf32>
    tpu.vector_store %arg15[%c0_117, %c0_118], %196 {strides = array<i32>} : memref<2x32xf32, #tpu.memory_space<vmem>>, vector<2x32xf32>,
    %c0_119 = arith.constant 0 : index
    %c0_120 = arith.constant 0 : index
    %200 = vector.load %arg14[%c0_119, %c0_120] : memref<2x32xf32, #tpu.memory_space<vmem>>, vector<2x32xf32>
    tpu.vector_store %arg14[%c0_119, %c0_120], %198 {strides = array<i32>} : memref<2x32xf32, #tpu.memory_space<vmem>>, vector<2x32xf32>,
    %c6_121 = arith.constant 6 : index
    %c0_122 = arith.constant 0 : index
    %c0_123 = arith.constant 0 : index
    %201 = vector.load %arg8[%c6_121, %c0_122, %c0_123] : memref<8x2x32xf32, #tpu.memory_space<vmem>>, vector<1x2x32xf32>
    %202 = vector.shape_cast %201 : vector<1x2x32xf32> to vector<2x32xf32>
    %203 = vector.shape_cast %198 : vector<2x32xf32> to vector<1x2x32xf32>
    tpu.vector_store %arg8[%c6_121, %c0_122, %c0_123], %203 {strides = array<i32>} : memref<8x2x32xf32, #tpu.memory_space<vmem>>, vector<1x2x32xf32>,
    %c0_124 = arith.constant 0 : index
    %c6_125 = arith.constant 6 : index
    %c0_126 = arith.constant 0 : index
    %204 = vector.load %arg16[%c0_124, %c6_125, %c0_126] : memref<2x8x32xf32, #tpu.memory_space<vmem>>, vector<2x1x32xf32>
    %205 = vector.shape_cast %204 : vector<2x1x32xf32> to vector<2x32xf32>
    %206 = vector.shape_cast %198 : vector<2x32xf32> to vector<2x1x32xf32>
    tpu.vector_store %arg16[%c0_124, %c6_125, %c0_126], %206 {strides = array<i32>} : memref<2x8x32xf32, #tpu.memory_space<vmem>>, vector<2x1x32xf32>,
    %c14 = arith.constant 14 : index
    %c0_127 = arith.constant 0 : index
    %207 = vector.load %arg13[%c14, %c0_127] : memref<16x128xf32, #tpu.memory_space<vmem>>, vector<2x128xf32>
    %c0_128 = arith.constant 0 : index
    %c0_129 = arith.constant 0 : index
    %208 = vector.load %arg14[%c0_128, %c0_129] : memref<2x32xf32, #tpu.memory_space<vmem>>, vector<2x32xf32>
    %cst_130 = arith.constant dense<0.000000e+00> : vector<2x128xf32>
    %209 = tpu.matmul %208, %10, %cst_130 {dimension_numbers = #tpu.dot_dimension_numbers<[1], [0], [0], [1], [0, 0, 1, 1], [], []>} : vector<2x32xf32>, vector<32x128xf32>, vector<2x128xf32> -> vector<2x128xf32>
    %210 = arith.addf %207, %209 : vector<2x128xf32>
    %211 = arith.negf %210 : vector<2x128xf32>
    %212 = math.exp %211 : vector<2x128xf32>
    %cst_131 = arith.constant 1.000000e+00 : f32
    %213 = vector.broadcast %cst_131 : f32 to vector<2x128xf32>
    %214 = arith.addf %213, %212 : vector<2x128xf32>
    %215 = arith.divf %213, %214 : vector<2x128xf32>
    %216 = vector.extract_strided_slice %215 {offsets = [0, 0], sizes = [2, 32], strides = [1, 1]} : vector<2x128xf32> to vector<2x32xf32>
    %217 = vector.extract_strided_slice %215 {offsets = [0, 32], sizes = [2, 32], strides = [1, 1]} : vector<2x128xf32> to vector<2x32xf32>
    %218 = vector.extract_strided_slice %215 {offsets = [0, 96], sizes = [2, 32], strides = [1, 1]} : vector<2x128xf32> to vector<2x32xf32>
    %219 = vector.extract_strided_slice %210 {offsets = [0, 64], sizes = [2, 32], strides = [1, 1]} : vector<2x128xf32> to vector<2x32xf32>
    %220 = math.tanh %219 : vector<2x32xf32>
    %c0_132 = arith.constant 0 : index
    %c0_133 = arith.constant 0 : index
    %221 = vector.load %arg15[%c0_132, %c0_133] : memref<2x32xf32, #tpu.memory_space<vmem>>, vector<2x32xf32>
    %222 = arith.mulf %217, %221 : vector<2x32xf32>
    %223 = arith.mulf %216, %220 : vector<2x32xf32>
    %224 = arith.addf %222, %223 : vector<2x32xf32>
    %225 = math.tanh %224 : vector<2x32xf32>
    %226 = arith.mulf %218, %225 : vector<2x32xf32>
    %c0_134 = arith.constant 0 : index
    %c0_135 = arith.constant 0 : index
    %227 = vector.load %arg15[%c0_134, %c0_135] : memref<2x32xf32, #tpu.memory_space<vmem>>, vector<2x32xf32>
    tpu.vector_store %arg15[%c0_134, %c0_135], %224 {strides = array<i32>} : memref<2x32xf32, #tpu.memory_space<vmem>>, vector<2x32xf32>,
    %c0_136 = arith.constant 0 : index
    %c0_137 = arith.constant 0 : index
    %228 = vector.load %arg14[%c0_136, %c0_137] : memref<2x32xf32, #tpu.memory_space<vmem>>, vector<2x32xf32>
    tpu.vector_store %arg14[%c0_136, %c0_137], %226 {strides = array<i32>} : memref<2x32xf32, #tpu.memory_space<vmem>>, vector<2x32xf32>,
    %c7 = arith.constant 7 : index
    %c0_138 = arith.constant 0 : index
    %c0_139 = arith.constant 0 : index
    %229 = vector.load %arg8[%c7, %c0_138, %c0_139] : memref<8x2x32xf32, #tpu.memory_space<vmem>>, vector<1x2x32xf32>
    %230 = vector.shape_cast %229 : vector<1x2x32xf32> to vector<2x32xf32>
    %231 = vector.shape_cast %226 : vector<2x32xf32> to vector<1x2x32xf32>
    tpu.vector_store %arg8[%c7, %c0_138, %c0_139], %231 {strides = array<i32>} : memref<8x2x32xf32, #tpu.memory_space<vmem>>, vector<1x2x32xf32>,
    %c0_140 = arith.constant 0 : index
    %c7_141 = arith.constant 7 : index
    %c0_142 = arith.constant 0 : index
    %232 = vector.load %arg16[%c0_140, %c7_141, %c0_142] : memref<2x8x32xf32, #tpu.memory_space<vmem>>, vector<2x1x32xf32>
    %233 = vector.shape_cast %232 : vector<2x1x32xf32> to vector<2x32xf32>
    %234 = vector.shape_cast %226 : vector<2x32xf32> to vector<2x1x32xf32>
    tpu.vector_store %arg16[%c0_140, %c7_141, %c0_142], %234 {strides = array<i32>} : memref<2x8x32xf32, #tpu.memory_space<vmem>>, vector<2x1x32xf32>,
    %c1_i32 = arith.constant 1 : i32
    %235 = arith.cmpi eq, %arg0, %c1_i32 : i32
    %236 = arith.extui %235 : i1 to i32
    %c0_i32_143 = arith.constant 0 : i32
    %237 = arith.cmpi ne, %236, %c0_i32_143 : i32
    scf.if %237 {
      %c0_168 = arith.constant 0 : index
      %c0_169 = arith.constant 0 : index
      %265 = vector.load %arg14[%c0_168, %c0_169] : memref<2x32xf32, #tpu.memory_space<vmem>>, vector<2x32xf32>
      %c0_170 = arith.constant 0 : index
      %c0_171 = arith.constant 0 : index
      %266 = vector.load %arg9[%c0_170, %c0_171] : memref<2x32xf32, #tpu.memory_space<vmem>>, vector<2x32xf32>
      tpu.vector_store %arg9[%c0_170, %c0_171], %265 {strides = array<i32>} : memref<2x32xf32, #tpu.memory_space<vmem>>, vector<2x32xf32>,
      %c0_172 = arith.constant 0 : index
      %c0_173 = arith.constant 0 : index
      %267 = vector.load %arg15[%c0_172, %c0_173] : memref<2x32xf32, #tpu.memory_space<vmem>>, vector<2x32xf32>
      %c0_174 = arith.constant 0 : index
      %c0_175 = arith.constant 0 : index
      %268 = vector.load %arg10[%c0_174, %c0_175] : memref<2x32xf32, #tpu.memory_space<vmem>>, vector<2x32xf32>
      tpu.vector_store %arg10[%c0_174, %c0_175], %267 {strides = array<i32>} : memref<2x32xf32, #tpu.memory_space<vmem>>, vector<2x32xf32>,
    } else {
    }
    %c0_144 = arith.constant 0 : index
    %c0_145 = arith.constant 0 : index
    %c0_146 = arith.constant 0 : index
    %238 = vector.load %arg16[%c0_144, %c0_145, %c0_146] : memref<2x8x32xf32, #tpu.memory_space<vmem>>, vector<2x8x32xf32>
    %c0_147 = arith.constant 0 : index
    %c0_148 = arith.constant 0 : index
    %c0_149 = arith.constant 0 : index
    %239 = vector.load %arg7[%c0_147, %c0_148, %c0_149] : memref<2x16x32xf32, #tpu.memory_space<vmem>>, vector<2x16x32xf32>
    "tpu.trace_start"() <{level = 10 : i32, message = "bth,bsh->bts"}> : () -> ()
    %cst_150 = arith.constant dense<0.000000e+00> : vector<2x8x16xf32>
    %240 = tpu.matmul %238, %239, %cst_150 {dimension_numbers = #tpu.dot_dimension_numbers<[2], [2], [1], [1], [0, 0, 0, 1, 1, 1], [0], [0]>} : vector<2x8x32xf32>, vector<2x16x32xf32>, vector<2x8x16xf32> -> vector<2x8x16xf32>
    "tpu.trace_stop"() : () -> ()
    %cst_151 = arith.constant dense<0xFF800000> : vector<2x8xf32>
    %241 = vector.multi_reduction <maximumf>, %240, %cst_151 [2] : vector<2x8x16xf32> to vector<2x8xf32>
    %242 = vector.shape_cast %241 : vector<2x8xf32> to vector<2x8x1xf32>
    %243 = vector.broadcast %242 : vector<2x8x1xf32> to vector<2x8x16xf32>
    %244 = arith.subf %240, %243 : vector<2x8x16xf32>
    %245 = math.exp %244 : vector<2x8x16xf32>
    %cst_152 = arith.constant dense<0.000000e+00> : vector<2x8xf32>
    %246 = vector.multi_reduction <add>, %245, %cst_152 [2] : vector<2x8x16xf32> to vector<2x8xf32>
    %247 = vector.shape_cast %246 : vector<2x8xf32> to vector<2x8x1xf32>
    %248 = tpu.reciprocal %247 : vector<2x8x1xf32> -> vector<2x8x1xf32>
    %249 = vector.broadcast %248 : vector<2x8x1xf32> to vector<2x8x16xf32>
    %250 = arith.mulf %245, %249 : vector<2x8x16xf32>
    "tpu.trace_start"() <{level = 10 : i32, message = "bts,bsh->bth"}> : () -> ()
    %cst_153 = arith.constant dense<0.000000e+00> : vector<2x8x32xf32>
    %251 = tpu.matmul %250, %239, %cst_153 {dimension_numbers = #tpu.dot_dimension_numbers<[2], [1], [1], [2], [0, 0, 0, 1, 1, 2], [0], [0]>} : vector<2x8x16xf32>, vector<2x16x32xf32>, vector<2x8x32xf32> -> vector<2x8x32xf32>
    "tpu.trace_stop"() : () -> ()
    %252 = vector.extract_strided_slice %250 {offsets = [0, 0, 0], sizes = [1, 8, 16], strides = [1, 1, 1]} : vector<2x8x16xf32> to vector<1x8x16xf32>
    %253 = vector.shape_cast %252 : vector<1x8x16xf32> to vector<8x16xf32>
    %c0_154 = arith.constant 0 : index
    %c0_155 = arith.constant 0 : index
    %c0_156 = arith.constant 0 : index
    %254 = vector.load %arg11[%c0_154, %c0_155, %c0_156] : memref<8x2x16xf32, #tpu.memory_space<vmem>>, vector<8x1x16xf32>
    %255 = vector.shape_cast %254 : vector<8x1x16xf32> to vector<8x16xf32>
    %256 = vector.shape_cast %253 : vector<8x16xf32> to vector<8x1x16xf32>
    tpu.vector_store %arg11[%c0_154, %c0_155, %c0_156], %256 {strides = array<i32>} : memref<8x2x16xf32, #tpu.memory_space<vmem>>, vector<8x1x16xf32>,
    %257 = vector.extract_strided_slice %250 {offsets = [1, 0, 0], sizes = [1, 8, 16], strides = [1, 1, 1]} : vector<2x8x16xf32> to vector<1x8x16xf32>
    %258 = vector.shape_cast %257 : vector<1x8x16xf32> to vector<8x16xf32>
    %c0_157 = arith.constant 0 : index
    %c1_158 = arith.constant 1 : index
    %c0_159 = arith.constant 0 : index
    %259 = vector.load %arg11[%c0_157, %c1_158, %c0_159] : memref<8x2x16xf32, #tpu.memory_space<vmem>>, vector<8x1x16xf32>
    %260 = vector.shape_cast %259 : vector<8x1x16xf32> to vector<8x16xf32>
    %261 = vector.shape_cast %258 : vector<8x16xf32> to vector<8x1x16xf32>
    tpu.vector_store %arg11[%c0_157, %c1_158, %c0_159], %261 {strides = array<i32>} : memref<8x2x16xf32, #tpu.memory_space<vmem>>, vector<8x1x16xf32>,
    %c0_160 = arith.constant 0 : index
    %c0_161 = arith.constant 0 : index
    %c0_162 = arith.constant 0 : index
    %262 = vector.load %arg12[%c0_160, %c0_161, %c0_162] : memref<2x8x64xf32, #tpu.memory_space<vmem>>, vector<2x8x32xf32>
    tpu.vector_store %arg12[%c0_160, %c0_161, %c0_162], %251 {strides = array<i32>} : memref<2x8x64xf32, #tpu.memory_space<vmem>>, vector<2x8x32xf32>,
    %c0_163 = arith.constant 0 : index
    %c0_164 = arith.constant 0 : index
    %c0_165 = arith.constant 0 : index
    %263 = vector.load %arg16[%c0_163, %c0_164, %c0_165] : memref<2x8x32xf32, #tpu.memory_space<vmem>>, vector<2x8x32xf32>
    %c0_166 = arith.constant 0 : index
    %c0_167 = arith.constant 0 : index
    %c32 = arith.constant 32 : index
    %264 = vector.load %arg12[%c0_166, %c0_167, %c32] : memref<2x8x64xf32, #tpu.memory_space<vmem>>, vector<2x8x32xf32>
    tpu.vector_store %arg12[%c0_166, %c0_167, %c32], %263 {strides = array<i32>} : memref<2x8x64xf32, #tpu.memory_space<vmem>>, vector<2x8x32xf32>,
    return
  }
  func.func @transform_0(%arg0: i32) -> (i32, i32) {
    %c0_i32 = arith.constant 0 : i32
    %c0_i32_0 = arith.constant 0 : i32
    return %arg0, %c0_i32 : i32, i32
  }
  func.func @transform_1(%arg0: i32) -> (i32, i32) {
    %c0_i32 = arith.constant 0 : i32
    %c0_i32_0 = arith.constant 0 : i32
    %c0_i32_1 = arith.constant 0 : i32
    return %c0_i32, %c0_i32_0 : i32, i32
  }
  func.func @transform_2(%arg0: i32) -> (i32, i32) {
    %c0_i32 = arith.constant 0 : i32
    %c0_i32_0 = arith.constant 0 : i32
    %c0_i32_1 = arith.constant 0 : i32
    return %c0_i32, %c0_i32_0 : i32, i32
  }
  func.func @transform_3(%arg0: i32) -> (i32, i32) {
    %c0_i32 = arith.constant 0 : i32
    %c0_i32_0 = arith.constant 0 : i32
    %c0_i32_1 = arith.constant 0 : i32
    return %c0_i32, %c0_i32_0 : i32, i32
  }
  func.func @transform_4(%arg0: i32) -> (i32, i32) {
    %c0_i32 = arith.constant 0 : i32
    %c0_i32_0 = arith.constant 0 : i32
    %c0_i32_1 = arith.constant 0 : i32
    return %c0_i32, %c0_i32_0 : i32, i32
  }
  func.func @transform_5(%arg0: i32) -> (i32, i32) {
    %c0_i32 = arith.constant 0 : i32
    %c0_i32_0 = arith.constant 0 : i32
    %c0_i32_1 = arith.constant 0 : i32
    return %c0_i32, %c0_i32_0 : i32, i32
  }
  func.func @transform_6(%arg0: i32) -> (i32, i32, i32) {
    %c0_i32 = arith.constant 0 : i32
    %c0_i32_0 = arith.constant 0 : i32
    %c0_i32_1 = arith.constant 0 : i32
    %c0_i32_2 = arith.constant 0 : i32
    return %c0_i32, %c0_i32_0, %c0_i32_1 : i32, i32, i32
  }
  func.func @transform_7(%arg0: i32) -> (i32, i32, i32) {
    %c0_i32 = arith.constant 0 : i32
    %c0_i32_0 = arith.constant 0 : i32
    %c0_i32_1 = arith.constant 0 : i32
    return %arg0, %c0_i32, %c0_i32_0 : i32, i32, i32
  }
  func.func @transform_8(%arg0: i32) -> (i32, i32) {
    %c0_i32 = arith.constant 0 : i32
    %c0_i32_0 = arith.constant 0 : i32
    %c0_i32_1 = arith.constant 0 : i32
    return %c0_i32, %c0_i32_0 : i32, i32
  }
  func.func @transform_9(%arg0: i32) -> (i32, i32) {
    %c0_i32 = arith.constant 0 : i32
    %c0_i32_0 = arith.constant 0 : i32
    %c0_i32_1 = arith.constant 0 : i32
    return %c0_i32, %c0_i32_0 : i32, i32
  }
  func.func @transform_10(%arg0: i32) -> (i32, i32, i32) {
    %c0_i32 = arith.constant 0 : i32
    %c0_i32_0 = arith.constant 0 : i32
    %c0_i32_1 = arith.constant 0 : i32
    return %arg0, %c0_i32, %c0_i32_0 : i32, i32, i32
  }
  func.func @transform_11(%arg0: i32) -> (i32, i32, i32) {
    %c0_i32 = arith.constant 0 : i32
    %c0_i32_0 = arith.constant 0 : i32
    %c0_i32_1 = arith.constant 0 : i32
    return %c0_i32, %arg0, %c0_i32_0 : i32, i32, i32
  }
}

</mosaic_0001>

<llo_original>
// kernel: seq_decoder_forward.1
$region0: #{seq_decoder_forward.1}
  #allocation0 [shape = 'u32[]', space=smem, size = 0x4, offset = 0x4, fixed_abs, tag = 'smem constant byte address 0x4 - core index']
  #allocation1 [shape = 'u32[144,128]{1,0:T(1,128)}', space=vmem, size = 0x12000, scoped, tag = 'internal scratch']
  #allocation2 [shape = 'f32[16,128]{1,0:T(8,128)}', space=vmem, size = 0x2000, scoped, tag = 'scratch operand']
  #allocation3 [shape = 'f32[2,32]{1,0:T(2,128)}', space=vmem, size = 0x400, scoped, tag = 'scratch operand']
  #allocation4 [shape = 'f32[2,32]{1,0:T(2,128)}', space=vmem, size = 0x400, scoped, tag = 'scratch operand']
  #allocation5 [shape = 'f32[2,8,32]{2,1,0:T(8,128)}', space=vmem, size = 0x2000, scoped, tag = 'scratch operand']
  %s0 = inlined_call_operand.vmem [shape: f32[32,32], index: 0, kind: input, shape index: {}]
  %s1 = inlined_call_operand.vmem [shape: f32[32,128], index: 1, kind: input, shape index: {}]
  %s2 = inlined_call_operand.hbm [shape: f32[32,128], index: 2, kind: input, shape index: {}]
  %s3 = inlined_call_operand.vmem [shape: f32[1,128], index: 3, kind: input, shape index: {}]
  %s4 = inlined_call_operand.vmem [shape: f32[2,32], index: 4, kind: input, shape index: {}]
  %s5 = inlined_call_operand.vmem [shape: f32[2,32], index: 5, kind: input, shape index: {}]
  %s6 = inlined_call_operand.vmem [shape: f32[2,16,32], index: 6, kind: input, shape index: {}]
  %s7 = inlined_call_operand.vmem [shape: f32[16,2,32], index: 7, kind: output, shape index: {0}]
  %s8 = inlined_call_operand.hbm [shape: f32[2,32], index: 8, kind: output, shape index: {1}]
  %s9 = inlined_call_operand.hbm [shape: f32[2,32], index: 9, kind: output, shape index: {2}]
  %s10 = inlined_call_operand.hbm [shape: f32[16,2,16], index: 10, kind: output, shape index: {3}]
  %s11 = inlined_call_operand.hbm [shape: f32[2,16,64], index: 11, kind: output, shape index: {4}]
  %12 = xla_tuple %s7, %s8, %s9, %s10, %s11
  %s13 = sld [smem:[#allocation0]]
  $region105: #{seq_decoder_forward.1} parent=0
    _
  %s15 = ssub.s32 1, %s13
  %s16 = scalar_select 0, %s15, %s13
  $region1: #{seq_decoder_forward.1} parent=0
    #allocation6 [shape = 'u8[16384]{0}', space=vmem, size = 0x4000, scoped, tag = 'input window, operand 2, single buffered']
    #allocation7 [shape = 's32[2]{0}', space=sflag, size = 0x8, scoped, tag = 'scoped memory for seq_decoder_forward.1']
    #allocation8 [shape = 's32[2]{0}', space=sflag, size = 0x8, scoped, tag = 'scoped memory for seq_decoder_forward.1']
    #allocation9 [shape = 'u8[1024]{0}', space=vmem, size = 0x400, scoped, tag = 'output window, operand 1, single buffered']
    #allocation10 [shape = 'u8[1024]{0}', space=vmem, size = 0x400, scoped, tag = 'output window, operand 2, single buffered']
    #allocation11 [shape = 's32[1]{0}', space=sflag, size = 0x4, scoped, tag = 'scoped memory for seq_decoder_forward.1']
    #allocation12 [shape = 'u8[16384]{0}', space=vmem, size = 0x4000, scoped, tag = 'output window, operand 3']
    #allocation13 [shape = 'u8[16384]{0}', space=vmem, size = 0x4000, scoped, tag = 'output window, operand 4']
    %17 = vsyncpa [#allocation7], 0
    %18 = vsyncpa [#allocation8], 0
    %19 = vsyncpa [#allocation11], 0
    loop: start=0, step=1, limit=4
    $region2: #{seq_decoder_forward.1} parent=1 // loop_pre_header
      _
    $region3: #{seq_decoder_forward.1} parent=1 // loop_header
      %s21 = sphi 0, %s25
      %p22 = scmp.ge.s32.totalorder %s21, 4
      %s31 = sphi 0, %s33
      %s34 = sphi 0, %s31
      %s35 = sphi 0, %s34
      %s51 = sphi 0, %s35
      %s55 = sphi 0, %s55
      %s57 = sphi 0, %s55
      %s58 = sphi 0, %s57
      %s72 = sphi 0, %s58
      %s76 = sphi 0, %s76
      %s78 = sphi 0, %s76
      %s79 = sphi 0, %s78
      %s93 = sphi 0, %s79
      %s97 = sphi 0, %s97
      %s99 = sphi 0, %s97
      %s100 = sphi 0, %s99
      %s114 = sphi 0, %s100
      %s118 = sphi 0, %s118
      %s120 = sphi 0, %s118
      %s121 = sphi 0, %s120
      %s135 = sphi 0, %s121
      %s139 = sphi 0, %s139
      %s141 = sphi 0, %s139
      %s142 = sphi 0, %s141
      %s156 = sphi 0, %s142
      %s160 = sphi 0, %s160
      %s162 = sphi 0, %s160
      %s163 = sphi 0, %s162
      %s177 = sphi 0, %s163
      %s183 = sphi 0, %s185
      %s186 = sphi 0, %s183
      %s187 = sphi 0, %s186
      %s203 = sphi 0, %s187
      %s207 = sphi 0, %s207
      %s209 = sphi 0, %s207
      %s210 = sphi 0, %s209
      %s224 = sphi 0, %s210
      %s228 = sphi 0, %s228
      %s230 = sphi 0, %s228
      %s231 = sphi 0, %s230
      %s245 = sphi 0, %s231
      %s251 = sphi 0, %s253
      %s254 = sphi 0, %s251
      %s255 = sphi 0, %s254
      %s271 = sphi 0, %s255
      %s277 = sphi 0, %s279
      %s280 = sphi 0, %s277
      %s281 = sphi 0, %s280
      %s297 = sphi 0, %s281
    $region4: #{seq_decoder_forward.1} parent=1 // loop_header_branch
      %24 = sbr.rel (%p22) target = $region8
    $region5: #{seq_decoder_forward.1} parent=1 // loop_body
      %s26 = ssub.s32 %s21, 1
      %s27 = ssub.s32 %s21, 2
      %s28 = sadd.s32 %s21, 1
      %s29 = ssub.s32 %s21, %s28
      %p30 = scmp.eq.s32.totalorder %s29, 0
      %s32 = sadd.s32 %s31, 1
      %s33 = scalar_select %p30, %s31, %s32
      %p36 = pneg %p30
      %p37 = scmp.eq.s32.totalorder %s21, 1
      %p38 = por %p36, %p37
      %p39 = scmp.ne.s32.totalorder %s31, %s34
      %p40 = scmp.eq.s32.totalorder %s21, 0
      %p41 = por %p39, %p40
      %p42 = scmp.ne.s32.totalorder %s31, %s34
      %p43 = scmp.eq.s32.totalorder %s26, 1
      %p44 = por %p42, %p43
      %p45 = scmp.ne.s32.totalorder %s34, %s35
      %p46 = scmp.eq.s32.totalorder %s26, 0
      %p47 = por %p45, %p46
      %p48 = scmp.ne.s32.totalorder %s34, %s35
      %p49 = scmp.eq.s32.totalorder %s27, 1
      %p50 = por %p48, %p49
      %p52 = scmp.ne.s32.totalorder %s35, %s51
      %p53 = scmp.eq.s32.totalorder %s27, 0
      %p54 = por %p52, %p53
      %s56 = sadd.s32 %s55, 1
      %p59 = scmp.eq.s32.totalorder %s21, 1
      %p60 = scmp.ne.s32.totalorder %s55, %s57
      %p61 = scmp.eq.s32.totalorder %s21, 0
      %p62 = por %p60, %p61
      %p63 = scmp.ne.s32.totalorder %s55, %s57
      %p64 = scmp.eq.s32.totalorder %s26, 1
      %p65 = por %p63, %p64
      %p66 = scmp.ne.s32.totalorder %s57, %s58
      %p67 = scmp.eq.s32.totalorder %s26, 0
      %p68 = por %p66, %p67
      %p69 = scmp.ne.s32.totalorder %s57, %s58
      %p70 = scmp.eq.s32.totalorder %s27, 1
      %p71 = por %p69, %p70
      %p73 = scmp.ne.s32.totalorder %s58, %s72
      %p74 = scmp.eq.s32.totalorder %s27, 0
      %p75 = por %p73, %p74
      %s77 = sadd.s32 %s76, 1
      %p80 = scmp.eq.s32.totalorder %s21, 1
      %p81 = scmp.ne.s32.totalorder %s76, %s78
      %p82 = scmp.eq.s32.totalorder %s21, 0
      %p83 = por %p81, %p82
      %p84 = scmp.ne.s32.totalorder %s76, %s78
      %p85 = scmp.eq.s32.totalorder %s26, 1
      %p86 = por %p84, %p85
      %p87 = scmp.ne.s32.totalorder %s78, %s79
      %p88 = scmp.eq.s32.totalorder %s26, 0
      %p89 = por %p87, %p88
      %p90 = scmp.ne.s32.totalorder %s78, %s79
      %p91 = scmp.eq.s32.totalorder %s27, 1
      %p92 = por %p90, %p91
      %p94 = scmp.ne.s32.totalorder %s79, %s93
      %p95 = scmp.eq.s32.totalorder %s27, 0
      %p96 = por %p94, %p95
      %s98 = sadd.s32 %s97, 1
      %p101 = scmp.eq.s32.totalorder %s21, 1
      %p102 = scmp.ne.s32.totalorder %s97, %s99
      %p103 = scmp.eq.s32.totalorder %s21, 0
      %p104 = por %p102, %p103
      %p105 = scmp.ne.s32.totalorder %s97, %s99
      %p106 = scmp.eq.s32.totalorder %s26, 1
      %p107 = por %p105, %p106
      %p108 = scmp.ne.s32.totalorder %s99, %s100
      %p109 = scmp.eq.s32.totalorder %s26, 0
      %p110 = por %p108, %p109
      %p111 = scmp.ne.s32.totalorder %s99, %s100
      %p112 = scmp.eq.s32.totalorder %s27, 1
      %p113 = por %p111, %p112
      %p115 = scmp.ne.s32.totalorder %s100, %s114
      %p116 = scmp.eq.s32.totalorder %s27, 0
      %p117 = por %p115, %p116
      %s119 = sadd.s32 %s118, 1
      %p122 = scmp.eq.s32.totalorder %s21, 1
      %p123 = scmp.ne.s32.totalorder %s118, %s120
      %p124 = scmp.eq.s32.totalorder %s21, 0
      %p125 = por %p123, %p124
      %p126 = scmp.ne.s32.totalorder %s118, %s120
      %p127 = scmp.eq.s32.totalorder %s26, 1
      %p128 = por %p126, %p127
      %p129 = scmp.ne.s32.totalorder %s120, %s121
      %p130 = scmp.eq.s32.totalorder %s26, 0
      %p131 = por %p129, %p130
      %p132 = scmp.ne.s32.totalorder %s120, %s121
      %p133 = scmp.eq.s32.totalorder %s27, 1
      %p134 = por %p132, %p133
      %p136 = scmp.ne.s32.totalorder %s121, %s135
      %p137 = scmp.eq.s32.totalorder %s27, 0
      %p138 = por %p136, %p137
      %s140 = sadd.s32 %s139, 1
      %p143 = scmp.eq.s32.totalorder %s21, 1
      %p144 = scmp.ne.s32.totalorder %s139, %s141
      %p145 = scmp.eq.s32.totalorder %s21, 0
      %p146 = por %p144, %p145
      %p147 = scmp.ne.s32.totalorder %s139, %s141
      %p148 = scmp.eq.s32.totalorder %s26, 1
      %p149 = por %p147, %p148
      %p150 = scmp.ne.s32.totalorder %s141, %s142
      %p151 = scmp.eq.s32.totalorder %s26, 0
      %p152 = por %p150, %p151
      %p153 = scmp.ne.s32.totalorder %s141, %s142
      %p154 = scmp.eq.s32.totalorder %s27, 1
      %p155 = por %p153, %p154
      %p157 = scmp.ne.s32.totalorder %s142, %s156
      %p158 = scmp.eq.s32.totalorder %s27, 0
      %p159 = por %p157, %p158
      %s161 = sadd.s32 %s160, 1
      %p164 = scmp.eq.s32.totalorder %s21, 1
      %p165 = scmp.ne.s32.totalorder %s160, %s162
      %p166 = scmp.eq.s32.totalorder %s21, 0
      %p167 = por %p165, %p166
      %p168 = scmp.ne.s32.totalorder %s160, %s162
      %p169 = scmp.eq.s32.totalorder %s26, 1
      %p170 = por %p168, %p169
      %p171 = scmp.ne.s32.totalorder %s162, %s163
      %p172 = scmp.eq.s32.totalorder %s26, 0
      %p173 = por %p171, %p172
      %p174 = scmp.ne.s32.totalorder %s162, %s163
      %p175 = scmp.eq.s32.totalorder %s27, 1
      %p176 = por %p174, %p175
      %p178 = scmp.ne.s32.totalorder %s163, %s177
      %p179 = scmp.eq.s32.totalorder %s27, 0
      %p180 = por %p178, %p179
      %s181 = ssub.s32 %s21, %s28
      %p182 = scmp.eq.s32.totalorder %s181, 0
      %s184 = sadd.s32 %s183, 1
      %s185 = scalar_select %p182, %s183, %s184
      %p188 = pneg %p182
      %p189 = scmp.eq.s32.totalorder %s21, 1
      %p190 = por %p188, %p189
      %p191 = scmp.ne.s32.totalorder %s183, %s186
      %p192 = scmp.eq.s32.totalorder %s21, 0
      %p193 = por %p191, %p192
      %p194 = scmp.ne.s32.totalorder %s183, %s186
      %p195 = scmp.eq.s32.totalorder %s26, 1
      %p196 = por %p194, %p195
      %p197 = scmp.ne.s32.totalorder %s186, %s187
      %p198 = scmp.eq.s32.totalorder %s26, 0
      %p199 = por %p197, %p198
      %p200 = scmp.ne.s32.totalorder %s186, %s187
      %p201 = scmp.eq.s32.totalorder %s27, 1
      %p202 = por %p200, %p201
      %p204 = scmp.ne.s32.totalorder %s187, %s203
      %p205 = scmp.eq.s32.totalorder %s27, 0
      %p206 = por %p204, %p205
      %s208 = sadd.s32 %s207, 1
      %p211 = scmp.eq.s32.totalorder %s21, 1
      %p212 = scmp.ne.s32.totalorder %s207, %s209
      %p213 = scmp.eq.s32.totalorder %s21, 0
      %p214 = por %p212, %p213
      %p215 = scmp.ne.s32.totalorder %s207, %s209
      %p216 = scmp.eq.s32.totalorder %s26, 1
      %p217 = por %p215, %p216
      %p218 = scmp.ne.s32.totalorder %s209, %s210
      %p219 = scmp.eq.s32.totalorder %s26, 0
      %p220 = por %p218, %p219
      %p221 = scmp.ne.s32.totalorder %s209, %s210
      %p222 = scmp.eq.s32.totalorder %s27, 1
      %p223 = por %p221, %p222
      %p225 = scmp.ne.s32.totalorder %s210, %s224
      %p226 = scmp.eq.s32.totalorder %s27, 0
      %p227 = por %p225, %p226
      %s229 = sadd.s32 %s228, 1
      %p232 = scmp.eq.s32.totalorder %s21, 1
      %p233 = scmp.ne.s32.totalorder %s228, %s230
      %p234 = scmp.eq.s32.totalorder %s21, 0
      %p235 = por %p233, %p234
      %p236 = scmp.ne.s32.totalorder %s228, %s230
      %p237 = scmp.eq.s32.totalorder %s26, 1
      %p238 = por %p236, %p237
      %p239 = scmp.ne.s32.totalorder %s230, %s231
      %p240 = scmp.eq.s32.totalorder %s26, 0
      %p241 = por %p239, %p240
      %p242 = scmp.ne.s32.totalorder %s230, %s231
      %p243 = scmp.eq.s32.totalorder %s27, 1
      %p244 = por %p242, %p243
      %p246 = scmp.ne.s32.totalorder %s231, %s245
      %p247 = scmp.eq.s32.totalorder %s27, 0
      %p248 = por %p246, %p247
      %s249 = ssub.s32 %s21, %s28
      %p250 = scmp.eq.s32.totalorder %s249, 0
      %s252 = sadd.s32 %s251, 1
      %s253 = scalar_select %p250, %s251, %s252
      %p256 = pneg %p250
      %p257 = scmp.eq.s32.totalorder %s21, 1
      %p258 = por %p256, %p257
      %p259 = scmp.ne.s32.totalorder %s251, %s254
      %p260 = scmp.eq.s32.totalorder %s21, 0
      %p261 = por %p259, %p260
      %p262 = scmp.ne.s32.totalorder %s251, %s254
      %p263 = scmp.eq.s32.totalorder %s26, 1
      %p264 = por %p262, %p263
      %p265 = scmp.ne.s32.totalorder %s254, %s255
      %p266 = scmp.eq.s32.totalorder %s26, 0
      %p267 = por %p265, %p266
      %p268 = scmp.ne.s32.totalorder %s254, %s255
      %p269 = scmp.eq.s32.totalorder %s27, 1
      %p270 = por %p268, %p269
      %p272 = scmp.ne.s32.totalorder %s255, %s271
      %p273 = scmp.eq.s32.totalorder %s27, 0
      %p274 = por %p272, %p273
      %s275 = ssub.s32 %s21, %s28
      %p276 = scmp.eq.s32.totalorder %s275, 0
      %s278 = sadd.s32 %s277, 1
      %s279 = scalar_select %p276, %s277, %s278
      %p282 = pneg %p276
      %p283 = scmp.eq.s32.totalorder %s21, 1
      %p284 = por %p282, %p283
      %p285 = scmp.ne.s32.totalorder %s277, %s280
      %p286 = scmp.eq.s32.totalorder %s21, 0
      %p287 = por %p285, %p286
      %p288 = scmp.ne.s32.totalorder %s277, %s280
      %p289 = scmp.eq.s32.totalorder %s26, 1
      %p290 = por %p288, %p289
      %p291 = scmp.ne.s32.totalorder %s280, %s281
      %p292 = scmp.eq.s32.totalorder %s26, 0
      %p293 = por %p291, %p292
      %p294 = scmp.ne.s32.totalorder %s280, %s281
      %p295 = scmp.eq.s32.totalorder %s27, 1
      %p296 = por %p294, %p295
      %p298 = scmp.ne.s32.totalorder %s281, %s297
      %p299 = scmp.eq.s32.totalorder %s27, 0
      %p300 = por %p298, %p299
      %p301 = scmp.le.s32.totalorder 1, %s21
      %p302 = scmp.lt.s32.totalorder %s21, 3
      %p303 = pnand %p301, %p302
      %p304 = pneg %p303
      // Predicated region
      $region9: #{seq_decoder_forward.1} parent=5 // pred_check
        _
      $region10: #{seq_decoder_forward.1} parent=5 // pred_check_branch
        %306 = sbr.rel (%p303) target = $region12
      $region11: #{seq_decoder_forward.1} parent=5 // pred_region
        %s307 = ssub.s32 %s21, 1
        // Predicated region
        $region13: #{seq_decoder_forward.1} parent=11 // pred_check
          %p308 = pneg %p68
        $region14: #{seq_decoder_forward.1} parent=11 // pred_check_branch
          %310 = sbr.rel (%p308) target = $region16
        $region15: #{seq_decoder_forward.1} parent=11 // pred_region
          _
        $region16: #{seq_decoder_forward.1} parent=11 // pred_fallthru
          _
        // Predicated region
        $region17: #{seq_decoder_forward.1} parent=11 // pred_check
          %p311 = pneg %p89
        $region18: #{seq_decoder_forward.1} parent=11 // pred_check_branch
          %313 = sbr.rel (%p311) target = $region20
        $region19: #{seq_decoder_forward.1} parent=11 // pred_region
          %s315 = ssub.s32 512, 512
          %316 = vsyncadd [#allocation7], %s315
          %s317 = sshll.u32 [#allocation6], 4
          %s318 = int_to_ptr.vmem [resolvable:$true] %s317
          %323 = dma.hbm_to_vmem [thread:$0]  %s2, 512, %s318, [#allocation7], 128, 128, 8
        $region20: #{seq_decoder_forward.1} parent=11 // pred_fallthru
          _
        // Predicated region
        $region21: #{seq_decoder_forward.1} parent=11 // pred_check
          %p324 = pneg %p110
        $region22: #{seq_decoder_forward.1} parent=11 // pred_check_branch
          %326 = sbr.rel (%p324) target = $region24
        $region23: #{seq_decoder_forward.1} parent=11 // pred_region
          _
        $region24: #{seq_decoder_forward.1} parent=11 // pred_fallthru
          _
        // Predicated region
        $region25: #{seq_decoder_forward.1} parent=11 // pred_check
          %p327 = pneg %p131
        $region26: #{seq_decoder_forward.1} parent=11 // pred_check_branch
          %329 = sbr.rel (%p327) target = $region28
        $region27: #{seq_decoder_forward.1} parent=11 // pred_region
          _
        $region28: #{seq_decoder_forward.1} parent=11 // pred_fallthru
          _
        // Predicated region
        $region29: #{seq_decoder_forward.1} parent=11 // pred_check
          %p330 = pneg %p152
        $region30: #{seq_decoder_forward.1} parent=11 // pred_check_branch
          %332 = sbr.rel (%p330) target = $region32
        $region31: #{seq_decoder_forward.1} parent=11 // pred_region
          _
        $region32: #{seq_decoder_forward.1} parent=11 // pred_fallthru
          _
        // Predicated region
        $region33: #{seq_decoder_forward.1} parent=11 // pred_check
          %p333 = pneg %p173
        $region34: #{seq_decoder_forward.1} parent=11 // pred_check_branch
          %335 = sbr.rel (%p333) target = $region36
        $region35: #{seq_decoder_forward.1} parent=11 // pred_region
          _
        $region36: #{seq_decoder_forward.1} parent=11 // pred_fallthru
          _
      $region12: #{seq_decoder_forward.1} parent=5 // pred_fallthru
        _
      %p336 = scmp.lt.s32.totalorder %s21, 2
      // Predicated region
      $region37: #{seq_decoder_forward.1} parent=5 // pred_check
        %p337 = pneg %p336
      $region38: #{seq_decoder_forward.1} parent=5 // pred_check_branch
        %339 = sbr.rel (%p337) target = $region40
      $region39: #{seq_decoder_forward.1} parent=5 // pred_region
        // Predicated region
        $region41: #{seq_decoder_forward.1} parent=39 // pred_check
          %p340 = pneg %p41
        $region42: #{seq_decoder_forward.1} parent=39 // pred_check_branch
          %342 = sbr.rel (%p340) target = $region44
        $region43: #{seq_decoder_forward.1} parent=39 // pred_region
          %s343 = smul.u32 2, %s21
          %p344 = scmp.lt.s32.totalorder %s343, 3
          %s345 = scalar_select %p344, %s343, 3
          %s346 = smul.addr %s345, 8
          %s347 = scalar_lea.vmem %s0, %s346
          %s348 = smul.u32 2, %s21
        $region44: #{seq_decoder_forward.1} parent=39 // pred_fallthru
          _
      $region40: #{seq_decoder_forward.1} parent=5 // pred_fallthru
        _
      %p349 = scmp.le.s32.totalorder 1, %s21
      %p350 = scmp.lt.s32.totalorder %s21, 3
      %p351 = pnand %p349, %p350
      %p352 = pneg %p351
      // Predicated region
      $region45: #{seq_decoder_forward.1} parent=5 // pred_check
        _
      $region46: #{seq_decoder_forward.1} parent=5 // pred_check_branch
        %354 = sbr.rel (%p351) target = $region48
      $region47: #{seq_decoder_forward.1} parent=5 // pred_region
        %s355 = ssub.s32 %s21, 1
        // Predicated region
        $region49: #{seq_decoder_forward.1} parent=47 // pred_check
          %p356 = pneg %p89
        $region50: #{seq_decoder_forward.1} parent=47 // pred_check_branch
          %358 = sbr.rel (%p356) target = $region52
        $region51: #{seq_decoder_forward.1} parent=47 // pred_region
          %359 = dma.done [#allocation7], 512
        $region52: #{seq_decoder_forward.1} parent=47 // pred_fallthru
          _
        %s360 = smul.u32 2, %s26
        %p361 = scmp.lt.s32.totalorder %s360, 3
        %s362 = scalar_select %p361, %s360, 3
        %s363 = smul.addr %s362, 8
        %s364 = scalar_lea.vmem %s0, %s363
        %p365 = pneg %p47
        %p366 = pneg %p44
        %p367 = pneg %p68
        %p368 = pneg %p65
        %p369 = pneg %p89
        %p370 = pneg %p86
        %p371 = pneg %p110
        %p372 = pneg %p107
        %p373 = pneg %p131
        %p374 = pneg %p128
        %p375 = pneg %p152
        %p376 = pneg %p149
        %p377 = pneg %p173
        %p378 = pneg %p170
        %p379 = pneg %p199
        %p380 = pneg %p196
        %s381 = smul.u32 8, %s26
        %p382 = scmp.lt.s32.totalorder %s381, 15
        %s383 = scalar_select %p382, %s381, 15
        %s384 = smul.addr %s383, 2
        %s385 = scalar_lea.vmem %s7, %s384
        %p386 = pneg %p220
        %p387 = pneg %p217
        %p388 = pneg %p241
        %p389 = pneg %p238
        %p390 = pneg %p267
        %p391 = pneg %p264
        %s392 = sand.u32 %s26, 1
        %s393 = scalar_lea.sflag [#allocation8], %s392
        %s394 = sand.u32 %s254, 1
        %s395 = smul.addr %s394, 16
        %s396 = scalar_lea.vmem [#allocation12], %s395
        %p397 = pneg %p293
        %p398 = pneg %p290
        %s399 = sand.u32 %s26, 1
        %s400 = scalar_lea.sflag [#allocation8], %s399
        %s401 = sand.u32 %s280, 1
        %s402 = smul.addr %s401, 16
        %s403 = scalar_lea.vmem [#allocation13], %s402
        %s404 = smul.u32 2, %s26
        %p405 = scmp.lt.s32.totalorder %s404, 3
        %s406 = scalar_select %p405, %s404, 3
        %s407 = smul.addr %s406, 8
        %s408 = scalar_lea.vmem %s0, %s407
        %s409 = smul.u32 2, %s26
        %s410 = smul.u32 8, %s26
        %p411 = scmp.lt.s32.totalorder %s410, 15
        %s412 = scalar_select %p411, %s410, 15
        %s413 = smul.addr %s412, 2
        %s414 = scalar_lea.vmem %s7, %s413
        %s415 = smul.u32 8, %s26
        %s416 = smul.u32 8, %s26
        %p417 = scmp.eq.s32.totalorder %s26, 0
        // Predicated region
        $region53: #{seq_decoder_forward.1} parent=47 // pred_check
          %p418 = pneg %p417
        $region54: #{seq_decoder_forward.1} parent=47 // pred_check_branch
          %420 = sbr.rel (%p418) target = $region56
        $region55: #{seq_decoder_forward.1} parent=47 // pred_region
          %v421 = vld [vmem:[%s4] sm:$0x3]
          %vm422 = vcmask 254976
          %423 = vst.msk [vmem:[#allocation3] sm:$0x3] %vm422, %v421
          %v424 = vld [vmem:[%s5] sm:$0x3]
          %425 = vst.msk [vmem:[#allocation4] sm:$0x3] %vm422, %v424
        $region56: #{seq_decoder_forward.1} parent=47 // pred_fallthru
          _
        %v426 = vld [vmem:[%s408] sm:$0xff]
        %v427 = vld [vmem:[%s408 + $0x8] sm:$0xff]
        %v428 = vld [vmem:[%s1] sm:$0xff]
        %v429 = vld [vmem:[%s1 + $0x8] sm:$0xff]
        %v430 = vld [vmem:[%s1 + $0x10] sm:$0xff]
        %v431 = vld [vmem:[%s1 + $0x18] sm:$0xff]
        %v432 = vld [vmem:[%s3] sm:$0x1]
        %v434 = vlaneseq
        %v435 = vshrl.u32 %v434, 7
        %v436 = vsub.s32 0, %v435
        %v437 = vrot.slane %v432, %v436
        %vm439 = vcmask 261120
        %v441 = vsel %vm439, %v426, 0
        %v444 = vsel %vm439, %v427, 0
        %446 = vmatprep.subr.mxu0 0.0
        %447 = vmatpush1.msra.mxu0 0.0
        %448 = vmatprep.subr.mxu0 0.0
        %449 = vmatpush1.msra.mxu0 0.0
        %450 = vmatprep.subr.mxu0 0.0
        %451 = vmatpush1.msra.mxu0 0.0
        %452 = vmatprep.subr.mxu0 0.0
        %453 = vmatpush1.msra.mxu0 0.0
        %454 = vmatprep.subr.mxu0 0.0
        %455 = vmatpush1.msra.mxu0 0.0
        %456 = vmatprep.subr.mxu0 0.0
        %457 = vmatpush1.msra.mxu0 0.0
        %458 = vmatprep.subr.mxu0 0.0
        %459 = vmatpush1.msra.mxu0 0.0
        %460 = vmatprep.subr.mxu0 0.0
        %461 = vmatpush1.msra.mxu0 0.0
        %462 = vmatprep.subr.mxu0 0.0
        %463 = vmatpush1.msra.mxu0 0.0
        %464 = vmatprep.subr.mxu0 0.0
        %465 = vmatpush1.msra.mxu0 0.0
        %466 = vmatprep.subr.mxu0 0.0
        %467 = vmatpush1.msra.mxu0 0.0
        %468 = vmatprep.subr.mxu0 0.0
        %469 = vmatpush1.msra.mxu0 0.0
        %470 = vmatprep.subr.mxu0 0.0
        %471 = vmatpush1.msra.mxu0 %v431
        %472 = vmatprep.subr.mxu0 0.0
        %473 = vmatpush1.msra.mxu0 %v430
        %474 = vmatprep.subr.mxu0 0.0
        %475 = vmatpush1.msra.mxu0 %v429
        %476 = vmatprep.subr.mxu0 0.0
        %477 = vmatpush1.msra.mxu0 %v428
        %478 = vmatprep.subr.mxu0 0.0
        %479 = vmatpush2.msra.mxu0 0.0
        %480 = vmatprep.subr.mxu0 0.0
        %481 = vmatpush2.msra.mxu0 0.0
        %482 = vmatprep.subr.mxu0 0.0
        %483 = vmatpush2.msra.mxu0 0.0
        %484 = vmatprep.subr.mxu0 0.0
        %485 = vmatpush2.msra.mxu0 0.0
        %486 = vmatprep.subr.mxu0 0.0
        %487 = vmatpush2.msra.mxu0 0.0
        %488 = vmatprep.subr.mxu0 0.0
        %489 = vmatpush2.msra.mxu0 0.0
        %490 = vmatprep.subr.mxu0 0.0
        %491 = vmatpush2.msra.mxu0 0.0
        %492 = vmatprep.subr.mxu0 0.0
        %493 = vmatpush2.msra.mxu0 0.0
        %494 = vmatprep.subr.mxu0 0.0
        %495 = vmatpush2.msra.mxu0 0.0
        %496 = vmatprep.subr.mxu0 0.0
        %497 = vmatpush2.msra.mxu0 0.0
        %498 = vmatprep.subr.mxu0 0.0
        %499 = vmatpush2.msra.mxu0 0.0
        %500 = vmatprep.subr.mxu0 0.0
        %501 = vmatpush2.msra.mxu0 0.0
        %502 = vmatprep.subr.mxu0 0.0
        %503 = vmatpush2.msra.mxu0 0.0
        %504 = vmatprep.subr.mxu0 0.0
        %505 = vmatpush2.msra.mxu0 0.0
        %506 = vmatprep.subr.mxu0 0.0
        %507 = vmatpush2.msra.mxu0 0.0
        %508 = vmatprep.subr.mxu0 0.0
        %509 = vmatpush2.msra.mxu0 0.0
        %510 = vmatprep.mubr.f32.mxu0 0.0
        %511 = vmatmul.mubr.f32.gmra.mxu0 %v441
        %v512 = vpop.f32.mrf.mxu0
        %v513 = vadd.f32 %v437, %v512
        %v514 = vpop.f32.mrf.mxu0
        %515 = vmatprep.mubr.f32.mxu0 0.0
        %516 = vmatmul.mubr.f32.gmra.mxu0 %v444
        %v517 = vpop.f32.mrf.mxu0
        %v518 = vadd.f32 %v437, %v517
        %v519 = vpop.f32.mrf.mxu0
        %520 = vdwg.mxu0
        %521 = vst [vmem:[#allocation2] sm:$0xff] %v513
        %522 = vst [vmem:[#allocation2 + $0x8] sm:$0xff] %v518
        %v523 = vld [vmem:[#allocation6] sm:$0xff]
        %v524 = vld [vmem:[#allocation6 + $0x8] sm:$0xff]
        %v525 = vld [vmem:[#allocation6 + $0x10] sm:$0xff]
        %v526 = vld [vmem:[#allocation6 + $0x18] sm:$0xff]
        %v527 = vld [vmem:[#allocation2] sm:$0x3]
        %v528 = vld [vmem:[#allocation3] sm:$0x3]
        %v530 = vsel %vm439, %v528, 0
        %532 = vmatprep.subr.mxu0 0.0
        %533 = vmatpush1.msra.mxu0 0.0
        %534 = vmatprep.subr.mxu0 0.0
        %535 = vmatpush1.msra.mxu0 0.0
        %536 = vmatprep.subr.mxu0 0.0
        %537 = vmatpush1.msra.mxu0 0.0
        %538 = vmatprep.subr.mxu0 0.0
        %539 = vmatpush1.msra.mxu0 0.0
        %540 = vmatprep.subr.mxu0 0.0
        %541 = vmatpush1.msra.mxu0 0.0
        %542 = vmatprep.subr.mxu0 0.0
        %543 = vmatpush1.msra.mxu0 0.0
        %544 = vmatprep.subr.mxu0 0.0
        %545 = vmatpush1.msra.mxu0 0.0
        %546 = vmatprep.subr.mxu0 0.0
        %547 = vmatpush1.msra.mxu0 0.0
        %548 = vmatprep.subr.mxu0 0.0
        %549 = vmatpush1.msra.mxu0 0.0
        %550 = vmatprep.subr.mxu0 0.0
        %551 = vmatpush1.msra.mxu0 0.0
        %552 = vmatprep.subr.mxu0 0.0
        %553 = vmatpush1.msra.mxu0 0.0
        %554 = vmatprep.subr.mxu0 0.0
        %555 = vmatpush1.msra.mxu0 0.0
        %556 = vmatprep.subr.mxu0 0.0
        %557 = vmatpush1.msra.mxu0 %v526
        %558 = vmatprep.subr.mxu0 0.0
        %559 = vmatpush1.msra.mxu0 %v525
        %560 = vmatprep.subr.mxu0 0.0
        %561 = vmatpush1.msra.mxu0 %v524
        %562 = vmatprep.subr.mxu0 0.0
        %563 = vmatpush1.msra.mxu0 %v523
        %564 = vmatprep.subr.mxu0 0.0
        %565 = vmatpush2.msra.mxu0 0.0
        %566 = vmatprep.subr.mxu0 0.0
        %567 = vmatpush2.msra.mxu0 0.0
        %568 = vmatprep.subr.mxu0 0.0
        %569 = vmatpush2.msra.mxu0 0.0
        %570 = vmatprep.subr.mxu0 0.0
        %571 = vmatpush2.msra.mxu0 0.0
        %572 = vmatprep.subr.mxu0 0.0
        %573 = vmatpush2.msra.mxu0 0.0
        %574 = vmatprep.subr.mxu0 0.0
        %575 = vmatpush2.msra.mxu0 0.0
        %576 = vmatprep.subr.mxu0 0.0
        %577 = vmatpush2.msra.mxu0 0.0
        %578 = vmatprep.subr.mxu0 0.0
        %579 = vmatpush2.msra.mxu0 0.0
        %580 = vmatprep.subr.mxu0 0.0
        %581 = vmatpush2.msra.mxu0 0.0
        %582 = vmatprep.subr.mxu0 0.0
        %583 = vmatpush2.msra.mxu0 0.0
        %584 = vmatprep.subr.mxu0 0.0
        %585 = vmatpush2.msra.mxu0 0.0
        %586 = vmatprep.subr.mxu0 0.0
        %587 = vmatpush2.msra.mxu0 0.0
        %588 = vmatprep.subr.mxu0 0.0
        %589 = vmatpush2.msra.mxu0 0.0
        %590 = vmatprep.subr.mxu0 0.0
        %591 = vmatpush2.msra.mxu0 0.0
        %592 = vmatprep.subr.mxu0 0.0
        %593 = vmatpush2.msra.mxu0 0.0
        %594 = vmatprep.subr.mxu0 0.0
        %595 = vmatpush2.msra.mxu0 0.0
        %596 = vmatprep.mubr.f32.mxu0 0.0
        %597 = vmatmul.mubr.f32.gmra.mxu0 %v530
        %v598 = vpop.f32.mrf.mxu0
        %v599 = vadd.f32 0.0, %v598
        %v600 = vpop.f32.mrf.mxu0
        %601 = vdwg.mxu0
        %v602 = vadd.f32 %v527, %v599
        %v603 = vxor.u32 %v602, 2147483648
        %v604 = vmul.f32 %v603, 1.442695
        %v605 = vpow.pop %v604
        %v606 = vadd.f32 %v605, 1.0
        %v607 = vrcp.pop %v606
        %v608 = vmul.f32 1.0, %v607
        %v609 = vtanh.pop %v602
        %v610 = vld [vmem:[#allocation4] sm:$0x3]
        %612 = vrot.lane.b32.xlu0 %v610, 32
        %v613 = vpop.permute.xlu0 %612
        %v615 = vmul.f32 %v608, %v613
        %617 = vrot.lane.b32.xlu0 %v609, 64
        %v618 = vpop.permute.xlu0 %617
        %v620 = vmul.f32 %v608, %v618
        %622 = vrot.lane.b32.xlu0 %v620, 32
        %v623 = vpop.permute.xlu0 %622
        %v625 = vadd.f32 %v615, %v623
        %v626 = vtanh.pop %v625
        %628 = vrot.lane.b32.xlu0 %v626, 64
        %v629 = vpop.permute.xlu0 %628
        %v631 = vmul.f32 %v608, %v629
        %633 = vrot.lane.b32.xlu0 %v625, 96
        %v634 = vpop.permute.xlu0 %633
        %vm636 = vcmask 254976
        %637 = vst.msk [vmem:[#allocation4] sm:$0x3] %vm636, %v634
        %639 = vrot.lane.b32.xlu0 %v631, 32
        %v640 = vpop.permute.xlu0 %639
        %642 = vst.msk [vmem:[#allocation3] sm:$0x3] %vm636, %v640
        %643 = vst.msk [vmem:[%s414] sm:$0x3] %vm636, %v640
        %v645 = vunpack.c.l.s4 1966171168
        %v646 = vunpack.c.0.s8 %v645
        %v647 = vlaneseq
        %v648 = vshrl.u32 %v647, 7
        %v649 = vsub.s32 %v646, %v648
        %v650 = vrot.slane %v631, %v649
        %v651 = vcombine.high %v650, %v650
        %v653 = vunpack.c.l.s4 1966171168
        %v654 = vunpack.c.0.s8 %v653
        %v655 = vlaneseq
        %v656 = vshrl.u32 %v655, 7
        %v657 = vsub.s32 %v654, %v656
        %v658 = vrot.slane %v650, %v657
        %v660 = vunpack.c.l.s4 1966171168
        %v661 = vunpack.c.0.s8 %v660
        %v662 = vlaneseq
        %v663 = vshrl.u32 %v662, 7
        %v664 = vsub.s32 %v661, %v663
        %v665 = vrot.slane %v651, %v664
        %v666 = vlaneseq
        %v667 = vshrl.u32 %v666, 7
        %v668 = vsub.s32 0, %v667
        %v669 = vrot.slane %v658, %v668
        %v670 = vlaneseq
        %v671 = vshrl.u32 %v670, 7
        %v672 = vsub.s32 0, %v671
        %v673 = vrot.slane %v665, %v672
        %674 = vrot.lane.b32.xlu0 %v669, 32
        %v675 = vpop.permute.xlu0 %674
        %676 = vrot.lane.b32.xlu0 %v673, 32
        %v677 = vpop.permute.xlu0 %676
        %vm680 = vcmask 253952
        %681 = vst.msk [vmem:[#allocation5] sm:$0x1] %vm680, %v675
        %682 = vst.msk [vmem:[#allocation5 + $0x8] sm:$0x1] %vm680, %v677
        %v683 = vld [vmem:[#allocation2 + $0x2] sm:$0x3]
        %v684 = vld [vmem:[#allocation3] sm:$0x3]
        %v686 = vsel %vm439, %v684, 0
        %688 = vmatprep.subr.mxu0 0.0
        %689 = vmatpush1.msra.mxu0 0.0
        %690 = vmatprep.subr.mxu0 0.0
        %691 = vmatpush1.msra.mxu0 0.0
        %692 = vmatprep.subr.mxu0 0.0
        %693 = vmatpush1.msra.mxu0 0.0
        %694 = vmatprep.subr.mxu0 0.0
        %695 = vmatpush1.msra.mxu0 0.0
        %696 = vmatprep.subr.mxu0 0.0
        %697 = vmatpush1.msra.mxu0 0.0
        %698 = vmatprep.subr.mxu0 0.0
        %699 = vmatpush1.msra.mxu0 0.0
        %700 = vmatprep.subr.mxu0 0.0
        %701 = vmatpush1.msra.mxu0 0.0
        %702 = vmatprep.subr.mxu0 0.0
        %703 = vmatpush1.msra.mxu0 0.0
        %704 = vmatprep.subr.mxu0 0.0
        %705 = vmatpush1.msra.mxu0 0.0
        %706 = vmatprep.subr.mxu0 0.0
        %707 = vmatpush1.msra.mxu0 0.0
        %708 = vmatprep.subr.mxu0 0.0
        %709 = vmatpush1.msra.mxu0 0.0
        %710 = vmatprep.subr.mxu0 0.0
        %711 = vmatpush1.msra.mxu0 0.0
        %712 = vmatprep.subr.mxu0 0.0
        %713 = vmatpush1.msra.mxu0 %v526
        %714 = vmatprep.subr.mxu0 0.0
        %715 = vmatpush1.msra.mxu0 %v525
        %716 = vmatprep.subr.mxu0 0.0
        %717 = vmatpush1.msra.mxu0 %v524
        %718 = vmatprep.subr.mxu0 0.0
        %719 = vmatpush1.msra.mxu0 %v523
        %720 = vmatprep.subr.mxu0 0.0
        %721 = vmatpush2.msra.mxu0 0.0
        %722 = vmatprep.subr.mxu0 0.0
        %723 = vmatpush2.msra.mxu0 0.0
        %724 = vmatprep.subr.mxu0 0.0
        %725 = vmatpush2.msra.mxu0 0.0
        %726 = vmatprep.subr.mxu0 0.0
        %727 = vmatpush2.msra.mxu0 0.0
        %728 = vmatprep.subr.mxu0 0.0
        %729 = vmatpush2.msra.mxu0 0.0
        %730 = vmatprep.subr.mxu0 0.0
        %731 = vmatpush2.msra.mxu0 0.0
        %732 = vmatprep.subr.mxu0 0.0
        %733 = vmatpush2.msra.mxu0 0.0
        %734 = vmatprep.subr.mxu0 0.0
        %735 = vmatpush2.msra.mxu0 0.0
        %736 = vmatprep.subr.mxu0 0.0
        %737 = vmatpush2.msra.mxu0 0.0
        %738 = vmatprep.subr.mxu0 0.0
        %739 = vmatpush2.msra.mxu0 0.0
        %740 = vmatprep.subr.mxu0 0.0
        %741 = vmatpush2.msra.mxu0 0.0
        %742 = vmatprep.subr.mxu0 0.0
        %743 = vmatpush2.msra.mxu0 0.0
        %744 = vmatprep.subr.mxu0 0.0
        %745 = vmatpush2.msra.mxu0 0.0
        %746 = vmatprep.subr.mxu0 0.0
        %747 = vmatpush2.msra.mxu0 0.0
        %748 = vmatprep.subr.mxu0 0.0
        %749 = vmatpush2.msra.mxu0 0.0
        %750 = vmatprep.subr.mxu0 0.0
        %751 = vmatpush2.msra.mxu0 0.0
        %752 = vmatprep.mubr.f32.mxu0 0.0
        %753 = vmatmul.mubr.f32.gmra.mxu0 %v686
        %v754 = vpop.f32.mrf.mxu0
        %v755 = vadd.f32 0.0, %v754
        %v756 = vpop.f32.mrf.mxu0
        %757 = vdwg.mxu0
        %v758 = vadd.f32 %v683, %v755
        %v759 = vxor.u32 %v758, 2147483648
        %v760 = vmul.f32 %v759, 1.442695
        %v761 = vpow.pop %v760
        %v762 = vadd.f32 %v761, 1.0
        %v763 = vrcp.pop %v762
        %v764 = vmul.f32 1.0, %v763
        %v765 = vtanh.pop %v758
        %v766 = vld [vmem:[#allocation4] sm:$0x3]
        %768 = vrot.lane.b32.xlu0 %v766, 32
        %v769 = vpop.permute.xlu0 %768
        %v771 = vmul.f32 %v764, %v769
        %773 = vrot.lane.b32.xlu0 %v765, 64
        %v774 = vpop.permute.xlu0 %773
        %v776 = vmul.f32 %v764, %v774
        %778 = vrot.lane.b32.xlu0 %v776, 32
        %v779 = vpop.permute.xlu0 %778
        %v781 = vadd.f32 %v771, %v779
        %v782 = vtanh.pop %v781
        %784 = vrot.lane.b32.xlu0 %v782, 64
        %v785 = vpop.permute.xlu0 %784
        %v787 = vmul.f32 %v764, %v785
        %789 = vrot.lane.b32.xlu0 %v781, 96
        %v790 = vpop.permute.xlu0 %789
        %792 = vst.msk [vmem:[#allocation4] sm:$0x3] %vm636, %v790
        %794 = vrot.lane.b32.xlu0 %v787, 32
        %v795 = vpop.permute.xlu0 %794
        %797 = vst.msk [vmem:[#allocation3] sm:$0x3] %vm636, %v795
        %s798 = scalar_lea.vmem %s414, 2
        %799 = vst.msk [vmem:[%s798] sm:$0x3] %vm636, %v795
        %v801 = vunpack.c.l.s4 1966171168
        %v802 = vunpack.c.0.s8 %v801
        %v803 = vlaneseq
        %v804 = vshrl.u32 %v803, 7
        %v805 = vsub.s32 %v802, %v804
        %v806 = vrot.slane %v787, %v805
        %v807 = vcombine.high %v806, %v806
        %v809 = vunpack.c.l.s4 1966171168
        %v810 = vunpack.c.0.s8 %v809
        %v811 = vlaneseq
        %v812 = vshrl.u32 %v811, 7
        %v813 = vsub.s32 %v810, %v812
        %v814 = vrot.slane %v806, %v813
        %v816 = vunpack.c.l.s4 1966171168
        %v817 = vunpack.c.0.s8 %v816
        %v818 = vlaneseq
        %v819 = vshrl.u32 %v818, 7
        %v820 = vsub.s32 %v817, %v819
        %v821 = vrot.slane %v807, %v820
        %v822 = vlaneseq
        %v823 = vshrl.u32 %v822, 7
        %v824 = vsub.s32 0, %v823
        %v825 = vrot.slane %v814, %v824
        %v826 = vlaneseq
        %v827 = vshrl.u32 %v826, 7
        %v828 = vsub.s32 0, %v827
        %v829 = vrot.slane %v821, %v828
        %830 = vrot.lane.b32.xlu0 %v825, 32
        %v831 = vpop.permute.xlu0 %830
        %832 = vrot.lane.b32.xlu0 %v829, 32
        %v833 = vpop.permute.xlu0 %832
        %836 = vst.msk [vmem:[#allocation5 + $0x1] sm:$0x1] %vm680, %v831
        %837 = vst.msk [vmem:[#allocation5 + $0x9] sm:$0x1] %vm680, %v833
        %v838 = vld [vmem:[#allocation2 + $0x4] sm:$0x3]
        %v839 = vld [vmem:[#allocation3] sm:$0x3]
        %v841 = vsel %vm439, %v839, 0
        %843 = vmatprep.subr.mxu0 0.0
        %844 = vmatpush1.msra.mxu0 0.0
        %845 = vmatprep.subr.mxu0 0.0
        %846 = vmatpush1.msra.mxu0 0.0
        %847 = vmatprep.subr.mxu0 0.0
        %848 = vmatpush1.msra.mxu0 0.0
        %849 = vmatprep.subr.mxu0 0.0
        %850 = vmatpush1.msra.mxu0 0.0
        %851 = vmatprep.subr.mxu0 0.0
        %852 = vmatpush1.msra.mxu0 0.0
        %853 = vmatprep.subr.mxu0 0.0
        %854 = vmatpush1.msra.mxu0 0.0
        %855 = vmatprep.subr.mxu0 0.0
        %856 = vmatpush1.msra.mxu0 0.0
        %857 = vmatprep.subr.mxu0 0.0
        %858 = vmatpush1.msra.mxu0 0.0
        %859 = vmatprep.subr.mxu0 0.0
        %860 = vmatpush1.msra.mxu0 0.0
        %861 = vmatprep.subr.mxu0 0.0
        %862 = vmatpush1.msra.mxu0 0.0
        %863 = vmatprep.subr.mxu0 0.0
        %864 = vmatpush1.msra.mxu0 0.0
        %865 = vmatprep.subr.mxu0 0.0
        %866 = vmatpush1.msra.mxu0 0.0
        %867 = vmatprep.subr.mxu0 0.0
        %868 = vmatpush1.msra.mxu0 %v526
        %869 = vmatprep.subr.mxu0 0.0
        %870 = vmatpush1.msra.mxu0 %v525
        %871 = vmatprep.subr.mxu0 0.0
        %872 = vmatpush1.msra.mxu0 %v524
        %873 = vmatprep.subr.mxu0 0.0
        %874 = vmatpush1.msra.mxu0 %v523
        %875 = vmatprep.subr.mxu0 0.0
        %876 = vmatpush2.msra.mxu0 0.0
        %877 = vmatprep.subr.mxu0 0.0
        %878 = vmatpush2.msra.mxu0 0.0
        %879 = vmatprep.subr.mxu0 0.0
        %880 = vmatpush2.msra.mxu0 0.0
        %881 = vmatprep.subr.mxu0 0.0
        %882 = vmatpush2.msra.mxu0 0.0
        %883 = vmatprep.subr.mxu0 0.0
        %884 = vmatpush2.msra.mxu0 0.0
        %885 = vmatprep.subr.mxu0 0.0
        %886 = vmatpush2.msra.mxu0 0.0
        %887 = vmatprep.subr.mxu0 0.0
        %888 = vmatpush2.msra.mxu0 0.0
        %889 = vmatprep.subr.mxu0 0.0
        %890 = vmatpush2.msra.mxu0 0.0
        %891 = vmatprep.subr.mxu0 0.0
        %892 = vmatpush2.msra.mxu0 0.0
        %893 = vmatprep.subr.mxu0 0.0
        %894 = vmatpush2.msra.mxu0 0.0
        %895 = vmatprep.subr.mxu0 0.0
        %896 = vmatpush2.msra.mxu0 0.0
        %897 = vmatprep.subr.mxu0 0.0
        %898 = vmatpush2.msra.mxu0 0.0
        %899 = vmatprep.subr.mxu0 0.0
        %900 = vmatpush2.msra.mxu0 0.0
        %901 = vmatprep.subr.mxu0 0.0
        %902 = vmatpush2.msra.mxu0 0.0
        %903 = vmatprep.subr.mxu0 0.0
        %904 = vmatpush2.msra.mxu0 0.0
        %905 = vmatprep.subr.mxu0 0.0
        %906 = vmatpush2.msra.mxu0 0.0
        %907 = vmatprep.mubr.f32.mxu0 0.0
        %908 = vmatmul.mubr.f32.gmra.mxu0 %v841
        %v909 = vpop.f32.mrf.mxu0
        %v910 = vadd.f32 0.0, %v909
        %v911 = vpop.f32.mrf.mxu0
        %912 = vdwg.mxu0
        %v913 = vadd.f32 %v838, %v910
        %v914 = vxor.u32 %v913, 2147483648
        %v915 = vmul.f32 %v914, 1.442695
        %v916 = vpow.pop %v915
        %v917 = vadd.f32 %v916, 1.0
        %v918 = vrcp.pop %v917
        %v919 = vmul.f32 1.0, %v918
        %v920 = vtanh.pop %v913
        %v921 = vld [vmem:[#allocation4] sm:$0x3]
        %923 = vrot.lane.b32.xlu0 %v921, 32
        %v924 = vpop.permute.xlu0 %923
        %v926 = vmul.f32 %v919, %v924
        %928 = vrot.lane.b32.xlu0 %v920, 64
        %v929 = vpop.permute.xlu0 %928
        %v931 = vmul.f32 %v919, %v929
        %933 = vrot.lane.b32.xlu0 %v931, 32
        %v934 = vpop.permute.xlu0 %933
        %v936 = vadd.f32 %v926, %v934
        %v937 = vtanh.pop %v936
        %939 = vrot.lane.b32.xlu0 %v937, 64
        %v940 = vpop.permute.xlu0 %939
        %v942 = vmul.f32 %v919, %v940
        %944 = vrot.lane.b32.xlu0 %v936, 96
        %v945 = vpop.permute.xlu0 %944
        %947 = vst.msk [vmem:[#allocation4] sm:$0x3] %vm636, %v945
        %949 = vrot.lane.b32.xlu0 %v942, 32
        %v950 = vpop.permute.xlu0 %949
        %952 = vst.msk [vmem:[#allocation3] sm:$0x3] %vm636, %v950
        %s953 = scalar_lea.vmem %s414, 4
        %954 = vst.msk [vmem:[%s953] sm:$0x3] %vm636, %v950
        %v956 = vunpack.c.l.s4 1966171168
        %v957 = vunpack.c.0.s8 %v956
        %v958 = vlaneseq
        %v959 = vshrl.u32 %v958, 7
        %v960 = vsub.s32 %v957, %v959
        %v961 = vrot.slane %v942, %v960
        %v962 = vcombine.high %v961, %v961
        %v964 = vunpack.c.l.s4 1966171168
        %v965 = vunpack.c.0.s8 %v964
        %v966 = vlaneseq
        %v967 = vshrl.u32 %v966, 7
        %v968 = vsub.s32 %v965, %v967
        %v969 = vrot.slane %v961, %v968
        %v971 = vunpack.c.l.s4 1966171168
        %v972 = vunpack.c.0.s8 %v971
        %v973 = vlaneseq
        %v974 = vshrl.u32 %v973, 7
        %v975 = vsub.s32 %v972, %v974
        %v976 = vrot.slane %v962, %v975
        %v977 = vlaneseq
        %v978 = vshrl.u32 %v977, 7
        %v979 = vsub.s32 0, %v978
        %v980 = vrot.slane %v969, %v979
        %v981 = vlaneseq
        %v982 = vshrl.u32 %v981, 7
        %v983 = vsub.s32 0, %v982
        %v984 = vrot.slane %v976, %v983
        %985 = vrot.lane.b32.xlu0 %v980, 32
        %v986 = vpop.permute.xlu0 %985
        %987 = vrot.lane.b32.xlu0 %v984, 32
        %v988 = vpop.permute.xlu0 %987
        %991 = vst.msk [vmem:[#allocation5 + $0x2] sm:$0x1] %vm680, %v986
        %992 = vst.msk [vmem:[#allocation5 + $0xa] sm:$0x1] %vm680, %v988
        %v993 = vld [vmem:[#allocation2 + $0x6] sm:$0x3]
        %v994 = vld [vmem:[#allocation3] sm:$0x3]
        %v996 = vsel %vm439, %v994, 0
        %998 = vmatprep.subr.mxu0 0.0
        %999 = vmatpush1.msra.mxu0 0.0
        %1000 = vmatprep.subr.mxu0 0.0
        %1001 = vmatpush1.msra.mxu0 0.0
        %1002 = vmatprep.subr.mxu0 0.0
        %1003 = vmatpush1.msra.mxu0 0.0
        %1004 = vmatprep.subr.mxu0 0.0
        %1005 = vmatpush1.msra.mxu0 0.0
        %1006 = vmatprep.subr.mxu0 0.0
        %1007 = vmatpush1.msra.mxu0 0.0
        %1008 = vmatprep.subr.mxu0 0.0
        %1009 = vmatpush1.msra.mxu0 0.0
        %1010 = vmatprep.subr.mxu0 0.0
        %1011 = vmatpush1.msra.mxu0 0.0
        %1012 = vmatprep.subr.mxu0 0.0
        %1013 = vmatpush1.msra.mxu0 0.0
        %1014 = vmatprep.subr.mxu0 0.0
        %1015 = vmatpush1.msra.mxu0 0.0
        %1016 = vmatprep.subr.mxu0 0.0
        %1017 = vmatpush1.msra.mxu0 0.0
        %1018 = vmatprep.subr.mxu0 0.0
        %1019 = vmatpush1.msra.mxu0 0.0
        %1020 = vmatprep.subr.mxu0 0.0
        %1021 = vmatpush1.msra.mxu0 0.0
        %1022 = vmatprep.subr.mxu0 0.0
        %1023 = vmatpush1.msra.mxu0 %v526
        %1024 = vmatprep.subr.mxu0 0.0
        %1025 = vmatpush1.msra.mxu0 %v525
        %1026 = vmatprep.subr.mxu0 0.0
        %1027 = vmatpush1.msra.mxu0 %v524
        %1028 = vmatprep.subr.mxu0 0.0
        %1029 = vmatpush1.msra.mxu0 %v523
        %1030 = vmatprep.subr.mxu0 0.0
        %1031 = vmatpush2.msra.mxu0 0.0
        %1032 = vmatprep.subr.mxu0 0.0
        %1033 = vmatpush2.msra.mxu0 0.0
        %1034 = vmatprep.subr.mxu0 0.0
        %1035 = vmatpush2.msra.mxu0 0.0
        %1036 = vmatprep.subr.mxu0 0.0
        %1037 = vmatpush2.msra.mxu0 0.0
        %1038 = vmatprep.subr.mxu0 0.0
        %1039 = vmatpush2.msra.mxu0 0.0
        %1040 = vmatprep.subr.mxu0 0.0
        %1041 = vmatpush2.msra.mxu0 0.0
        %1042 = vmatprep.subr.mxu0 0.0
        %1043 = vmatpush2.msra.mxu0 0.0
        %1044 = vmatprep.subr.mxu0 0.0
        %1045 = vmatpush2.msra.mxu0 0.0
        %1046 = vmatprep.subr.mxu0 0.0
        %1047 = vmatpush2.msra.mxu0 0.0
        %1048 = vmatprep.subr.mxu0 0.0
        %1049 = vmatpush2.msra.mxu0 0.0
        %1050 = vmatprep.subr.mxu0 0.0
        %1051 = vmatpush2.msra.mxu0 0.0
        %1052 = vmatprep.subr.mxu0 0.0
        %1053 = vmatpush2.msra.mxu0 0.0
        %1054 = vmatprep.subr.mxu0 0.0
        %1055 = vmatpush2.msra.mxu0 0.0
        %1056 = vmatprep.subr.mxu0 0.0
        %1057 = vmatpush2.msra.mxu0 0.0
        %1058 = vmatprep.subr.mxu0 0.0
        %1059 = vmatpush2.msra.mxu0 0.0
        %1060 = vmatprep.subr.mxu0 0.0
        %1061 = vmatpush2.msra.mxu0 0.0
        %1062 = vmatprep.mubr.f32.mxu0 0.0
        %1063 = vmatmul.mubr.f32.gmra.mxu0 %v996
        %v1064 = vpop.f32.mrf.mxu0
        %v1065 = vadd.f32 0.0, %v1064
        %v1066 = vpop.f32.mrf.mxu0
        %1067 = vdwg.mxu0
        %v1068 = vadd.f32 %v993, %v1065
        %v1069 = vxor.u32 %v1068, 2147483648
        %v1070 = vmul.f32 %v1069, 1.442695
        %v1071 = vpow.pop %v1070
        %v1072 = vadd.f32 %v1071, 1.0
        %v1073 = vrcp.pop %v1072
        %v1074 = vmul.f32 1.0, %v1073
        %v1075 = vtanh.pop %v1068
        %v1076 = vld [vmem:[#allocation4] sm:$0x3]
        %1078 = vrot.lane.b32.xlu0 %v1076, 32
        %v1079 = vpop.permute.xlu0 %1078
        %v1081 = vmul.f32 %v1074, %v1079
        %1083 = vrot.lane.b32.xlu0 %v1075, 64
        %v1084 = vpop.permute.xlu0 %1083
        %v1086 = vmul.f32 %v1074, %v1084
        %1088 = vrot.lane.b32.xlu0 %v1086, 32
        %v1089 = vpop.permute.xlu0 %1088
        %v1091 = vadd.f32 %v1081, %v1089
        %v1092 = vtanh.pop %v1091
        %1094 = vrot.lane.b32.xlu0 %v1092, 64
        %v1095 = vpop.permute.xlu0 %1094
        %v1097 = vmul.f32 %v1074, %v1095
        %1099 = vrot.lane.b32.xlu0 %v1091, 96
        %v1100 = vpop.permute.xlu0 %1099
        %1102 = vst.msk [vmem:[#allocation4] sm:$0x3] %vm636, %v1100
        %1104 = vrot.lane.b32.xlu0 %v1097, 32
        %v1105 = vpop.permute.xlu0 %1104
        %1107 = vst.msk [vmem:[#allocation3] sm:$0x3] %vm636, %v1105
        %s1108 = scalar_lea.vmem %s414, 6
        %1109 = vst.msk [vmem:[%s1108] sm:$0x3] %vm636, %v1105
        %v1111 = vunpack.c.l.s4 1966171168
        %v1112 = vunpack.c.0.s8 %v1111
        %v1113 = vlaneseq
        %v1114 = vshrl.u32 %v1113, 7
        %v1115 = vsub.s32 %v1112, %v1114
        %v1116 = vrot.slane %v1097, %v1115
        %v1117 = vcombine.high %v1116, %v1116
        %v1119 = vunpack.c.l.s4 1966171168
        %v1120 = vunpack.c.0.s8 %v1119
        %v1121 = vlaneseq
        %v1122 = vshrl.u32 %v1121, 7
        %v1123 = vsub.s32 %v1120, %v1122
        %v1124 = vrot.slane %v1116, %v1123
        %v1126 = vunpack.c.l.s4 1966171168
        %v1127 = vunpack.c.0.s8 %v1126
        %v1128 = vlaneseq
        %v1129 = vshrl.u32 %v1128, 7
        %v1130 = vsub.s32 %v1127, %v1129
        %v1131 = vrot.slane %v1117, %v1130
        %v1132 = vlaneseq
        %v1133 = vshrl.u32 %v1132, 7
        %v1134 = vsub.s32 0, %v1133
        %v1135 = vrot.slane %v1124, %v1134
        %v1136 = vlaneseq
        %v1137 = vshrl.u32 %v1136, 7
        %v1138 = vsub.s32 0, %v1137
        %v1139 = vrot.slane %v1131, %v1138
        %1140 = vrot.lane.b32.xlu0 %v1135, 32
        %v1141 = vpop.permute.xlu0 %1140
        %1142 = vrot.lane.b32.xlu0 %v1139, 32
        %v1143 = vpop.permute.xlu0 %1142
        %1146 = vst.msk [vmem:[#allocation5 + $0x3] sm:$0x1] %vm680, %v1141
        %1147 = vst.msk [vmem:[#allocation5 + $0xb] sm:$0x1] %vm680, %v1143
        %v1148 = vld [vmem:[#allocation2 + $0x8] sm:$0x3]
        %v1149 = vld [vmem:[#allocation3] sm:$0x3]
        %v1151 = vsel %vm439, %v1149, 0
        %1153 = vmatprep.subr.mxu0 0.0
        %1154 = vmatpush1.msra.mxu0 0.0
        %1155 = vmatprep.subr.mxu0 0.0
        %1156 = vmatpush1.msra.mxu0 0.0
        %1157 = vmatprep.subr.mxu0 0.0
        %1158 = vmatpush1.msra.mxu0 0.0
        %1159 = vmatprep.subr.mxu0 0.0
        %1160 = vmatpush1.msra.mxu0 0.0
        %1161 = vmatprep.subr.mxu0 0.0
        %1162 = vmatpush1.msra.mxu0 0.0
        %1163 = vmatprep.subr.mxu0 0.0
        %1164 = vmatpush1.msra.mxu0 0.0
        %1165 = vmatprep.subr.mxu0 0.0
        %1166 = vmatpush1.msra.mxu0 0.0
        %1167 = vmatprep.subr.mxu0 0.0
        %1168 = vmatpush1.msra.mxu0 0.0
        %1169 = vmatprep.subr.mxu0 0.0
        %1170 = vmatpush1.msra.mxu0 0.0
        %1171 = vmatprep.subr.mxu0 0.0
        %1172 = vmatpush1.msra.mxu0 0.0
        %1173 = vmatprep.subr.mxu0 0.0
        %1174 = vmatpush1.msra.mxu0 0.0
        %1175 = vmatprep.subr.mxu0 0.0
        %1176 = vmatpush1.msra.mxu0 0.0
        %1177 = vmatprep.subr.mxu0 0.0
        %1178 = vmatpush1.msra.mxu0 %v526
        %1179 = vmatprep.subr.mxu0 0.0
        %1180 = vmatpush1.msra.mxu0 %v525
        %1181 = vmatprep.subr.mxu0 0.0
        %1182 = vmatpush1.msra.mxu0 %v524
        %1183 = vmatprep.subr.mxu0 0.0
        %1184 = vmatpush1.msra.mxu0 %v523
        %1185 = vmatprep.subr.mxu0 0.0
        %1186 = vmatpush2.msra.mxu0 0.0
        %1187 = vmatprep.subr.mxu0 0.0
        %1188 = vmatpush2.msra.mxu0 0.0
        %1189 = vmatprep.subr.mxu0 0.0
        %1190 = vmatpush2.msra.mxu0 0.0
        %1191 = vmatprep.subr.mxu0 0.0
        %1192 = vmatpush2.msra.mxu0 0.0
        %1193 = vmatprep.subr.mxu0 0.0
        %1194 = vmatpush2.msra.mxu0 0.0
        %1195 = vmatprep.subr.mxu0 0.0
        %1196 = vmatpush2.msra.mxu0 0.0
        %1197 = vmatprep.subr.mxu0 0.0
        %1198 = vmatpush2.msra.mxu0 0.0
        %1199 = vmatprep.subr.mxu0 0.0
        %1200 = vmatpush2.msra.mxu0 0.0
        %1201 = vmatprep.subr.mxu0 0.0
        %1202 = vmatpush2.msra.mxu0 0.0
        %1203 = vmatprep.subr.mxu0 0.0
        %1204 = vmatpush2.msra.mxu0 0.0
        %1205 = vmatprep.subr.mxu0 0.0
        %1206 = vmatpush2.msra.mxu0 0.0
        %1207 = vmatprep.subr.mxu0 0.0
        %1208 = vmatpush2.msra.mxu0 0.0
        %1209 = vmatprep.subr.mxu0 0.0
        %1210 = vmatpush2.msra.mxu0 0.0
        %1211 = vmatprep.subr.mxu0 0.0
        %1212 = vmatpush2.msra.mxu0 0.0
        %1213 = vmatprep.subr.mxu0 0.0
        %1214 = vmatpush2.msra.mxu0 0.0
        %1215 = vmatprep.subr.mxu0 0.0
        %1216 = vmatpush2.msra.mxu0 0.0
        %1217 = vmatprep.mubr.f32.mxu0 0.0
        %1218 = vmatmul.mubr.f32.gmra.mxu0 %v1151
        %v1219 = vpop.f32.mrf.mxu0
        %v1220 = vadd.f32 0.0, %v1219
        %v1221 = vpop.f32.mrf.mxu0
        %1222 = vdwg.mxu0
        %v1223 = vadd.f32 %v1148, %v1220
        %v1224 = vxor.u32 %v1223, 2147483648
        %v1225 = vmul.f32 %v1224, 1.442695
        %v1226 = vpow.pop %v1225
        %v1227 = vadd.f32 %v1226, 1.0
        %v1228 = vrcp.pop %v1227
        %v1229 = vmul.f32 1.0, %v1228
        %v1230 = vtanh.pop %v1223
        %v1231 = vld [vmem:[#allocation4] sm:$0x3]
        %1233 = vrot.lane.b32.xlu0 %v1231, 32
        %v1234 = vpop.permute.xlu0 %1233
        %v1236 = vmul.f32 %v1229, %v1234
        %1238 = vrot.lane.b32.xlu0 %v1230, 64
        %v1239 = vpop.permute.xlu0 %1238
        %v1241 = vmul.f32 %v1229, %v1239
        %1243 = vrot.lane.b32.xlu0 %v1241, 32
        %v1244 = vpop.permute.xlu0 %1243
        %v1246 = vadd.f32 %v1236, %v1244
        %v1247 = vtanh.pop %v1246
        %1249 = vrot.lane.b32.xlu0 %v1247, 64
        %v1250 = vpop.permute.xlu0 %1249
        %v1252 = vmul.f32 %v1229, %v1250
        %1254 = vrot.lane.b32.xlu0 %v1246, 96
        %v1255 = vpop.permute.xlu0 %1254
        %1257 = vst.msk [vmem:[#allocation4] sm:$0x3] %vm636, %v1255
        %1259 = vrot.lane.b32.xlu0 %v1252, 32
        %v1260 = vpop.permute.xlu0 %1259
        %1262 = vst.msk [vmem:[#allocation3] sm:$0x3] %vm636, %v1260
        %s1263 = scalar_lea.vmem %s414, 8
        %1264 = vst.msk [vmem:[%s1263] sm:$0x3] %vm636, %v1260
        %v1266 = vunpack.c.l.s4 1966171168
        %v1267 = vunpack.c.0.s8 %v1266
        %v1268 = vlaneseq
        %v1269 = vshrl.u32 %v1268, 7
        %v1270 = vsub.s32 %v1267, %v1269
        %v1271 = vrot.slane %v1252, %v1270
        %v1272 = vcombine.high %v1271, %v1271
        %v1274 = vunpack.c.l.s4 1966171168
        %v1275 = vunpack.c.0.s8 %v1274
        %v1276 = vlaneseq
        %v1277 = vshrl.u32 %v1276, 7
        %v1278 = vsub.s32 %v1275, %v1277
        %v1279 = vrot.slane %v1271, %v1278
        %v1281 = vunpack.c.l.s4 1966171168
        %v1282 = vunpack.c.0.s8 %v1281
        %v1283 = vlaneseq
        %v1284 = vshrl.u32 %v1283, 7
        %v1285 = vsub.s32 %v1282, %v1284
        %v1286 = vrot.slane %v1272, %v1285
        %v1287 = vlaneseq
        %v1288 = vshrl.u32 %v1287, 7
        %v1289 = vsub.s32 0, %v1288
        %v1290 = vrot.slane %v1279, %v1289
        %v1291 = vlaneseq
        %v1292 = vshrl.u32 %v1291, 7
        %v1293 = vsub.s32 0, %v1292
        %v1294 = vrot.slane %v1286, %v1293
        %1295 = vrot.lane.b32.xlu0 %v1290, 32
        %v1296 = vpop.permute.xlu0 %1295
        %1297 = vrot.lane.b32.xlu0 %v1294, 32
        %v1298 = vpop.permute.xlu0 %1297
        %1301 = vst.msk [vmem:[#allocation5 + $0x4] sm:$0x1] %vm680, %v1296
        %1302 = vst.msk [vmem:[#allocation5 + $0xc] sm:$0x1] %vm680, %v1298
        %v1303 = vld [vmem:[#allocation2 + $0xa] sm:$0x3]
        %v1304 = vld [vmem:[#allocation3] sm:$0x3]
        %v1306 = vsel %vm439, %v1304, 0
        %1308 = vmatprep.subr.mxu0 0.0
        %1309 = vmatpush1.msra.mxu0 0.0
        %1310 = vmatprep.subr.mxu0 0.0
        %1311 = vmatpush1.msra.mxu0 0.0
        %1312 = vmatprep.subr.mxu0 0.0
        %1313 = vmatpush1.msra.mxu0 0.0
        %1314 = vmatprep.subr.mxu0 0.0
        %1315 = vmatpush1.msra.mxu0 0.0
        %1316 = vmatprep.subr.mxu0 0.0
        %1317 = vmatpush1.msra.mxu0 0.0
        %1318 = vmatprep.subr.mxu0 0.0
        %1319 = vmatpush1.msra.mxu0 0.0
        %1320 = vmatprep.subr.mxu0 0.0
        %1321 = vmatpush1.msra.mxu0 0.0
        %1322 = vmatprep.subr.mxu0 0.0
        %1323 = vmatpush1.msra.mxu0 0.0
        %1324 = vmatprep.subr.mxu0 0.0
        %1325 = vmatpush1.msra.mxu0 0.0
        %1326 = vmatprep.subr.mxu0 0.0
        %1327 = vmatpush1.msra.mxu0 0.0
        %1328 = vmatprep.subr.mxu0 0.0
        %1329 = vmatpush1.msra.mxu0 0.0
        %1330 = vmatprep.subr.mxu0 0.0
        %1331 = vmatpush1.msra.mxu0 0.0
        %1332 = vmatprep.subr.mxu0 0.0
        %1333 = vmatpush1.msra.mxu0 %v526
        %1334 = vmatprep.subr.mxu0 0.0
        %1335 = vmatpush1.msra.mxu0 %v525
        %1336 = vmatprep.subr.mxu0 0.0
        %1337 = vmatpush1.msra.mxu0 %v524
        %1338 = vmatprep.subr.mxu0 0.0
        %1339 = vmatpush1.msra.mxu0 %v523
        %1340 = vmatprep.subr.mxu0 0.0
        %1341 = vmatpush2.msra.mxu0 0.0
        %1342 = vmatprep.subr.mxu0 0.0
        %1343 = vmatpush2.msra.mxu0 0.0
        %1344 = vmatprep.subr.mxu0 0.0
        %1345 = vmatpush2.msra.mxu0 0.0
        %1346 = vmatprep.subr.mxu0 0.0
        %1347 = vmatpush2.msra.mxu0 0.0
        %1348 = vmatprep.subr.mxu0 0.0
        %1349 = vmatpush2.msra.mxu0 0.0
        %1350 = vmatprep.subr.mxu0 0.0
        %1351 = vmatpush2.msra.mxu0 0.0
        %1352 = vmatprep.subr.mxu0 0.0
        %1353 = vmatpush2.msra.mxu0 0.0
        %1354 = vmatprep.subr.mxu0 0.0
        %1355 = vmatpush2.msra.mxu0 0.0
        %1356 = vmatprep.subr.mxu0 0.0
        %1357 = vmatpush2.msra.mxu0 0.0
        %1358 = vmatprep.subr.mxu0 0.0
        %1359 = vmatpush2.msra.mxu0 0.0
        %1360 = vmatprep.subr.mxu0 0.0
        %1361 = vmatpush2.msra.mxu0 0.0
        %1362 = vmatprep.subr.mxu0 0.0
        %1363 = vmatpush2.msra.mxu0 0.0
        %1364 = vmatprep.subr.mxu0 0.0
        %1365 = vmatpush2.msra.mxu0 0.0
        %1366 = vmatprep.subr.mxu0 0.0
        %1367 = vmatpush2.msra.mxu0 0.0
        %1368 = vmatprep.subr.mxu0 0.0
        %1369 = vmatpush2.msra.mxu0 0.0
        %1370 = vmatprep.subr.mxu0 0.0
        %1371 = vmatpush2.msra.mxu0 0.0
        %1372 = vmatprep.mubr.f32.mxu0 0.0
        %1373 = vmatmul.mubr.f32.gmra.mxu0 %v1306
        %v1374 = vpop.f32.mrf.mxu0
        %v1375 = vadd.f32 0.0, %v1374
        %v1376 = vpop.f32.mrf.mxu0
        %1377 = vdwg.mxu0
        %v1378 = vadd.f32 %v1303, %v1375
        %v1379 = vxor.u32 %v1378, 2147483648
        %v1380 = vmul.f32 %v1379, 1.442695
        %v1381 = vpow.pop %v1380
        %v1382 = vadd.f32 %v1381, 1.0
        %v1383 = vrcp.pop %v1382
        %v1384 = vmul.f32 1.0, %v1383
        %v1385 = vtanh.pop %v1378
        %v1386 = vld [vmem:[#allocation4] sm:$0x3]
        %1388 = vrot.lane.b32.xlu0 %v1386, 32
        %v1389 = vpop.permute.xlu0 %1388
        %v1391 = vmul.f32 %v1384, %v1389
        %1393 = vrot.lane.b32.xlu0 %v1385, 64
        %v1394 = vpop.permute.xlu0 %1393
        %v1396 = vmul.f32 %v1384, %v1394
        %1398 = vrot.lane.b32.xlu0 %v1396, 32
        %v1399 = vpop.permute.xlu0 %1398
        %v1401 = vadd.f32 %v1391, %v1399
        %v1402 = vtanh.pop %v1401
        %1404 = vrot.lane.b32.xlu0 %v1402, 64
        %v1405 = vpop.permute.xlu0 %1404
        %v1407 = vmul.f32 %v1384, %v1405
        %1409 = vrot.lane.b32.xlu0 %v1401, 96
        %v1410 = vpop.permute.xlu0 %1409
        %1412 = vst.msk [vmem:[#allocation4] sm:$0x3] %vm636, %v1410
        %1414 = vrot.lane.b32.xlu0 %v1407, 32
        %v1415 = vpop.permute.xlu0 %1414
        %1417 = vst.msk [vmem:[#allocation3] sm:$0x3] %vm636, %v1415
        %s1418 = scalar_lea.vmem %s414, 10
        %1419 = vst.msk [vmem:[%s1418] sm:$0x3] %vm636, %v1415
        %v1421 = vunpack.c.l.s4 1966171168
        %v1422 = vunpack.c.0.s8 %v1421
        %v1423 = vlaneseq
        %v1424 = vshrl.u32 %v1423, 7
        %v1425 = vsub.s32 %v1422, %v1424
        %v1426 = vrot.slane %v1407, %v1425
        %v1427 = vcombine.high %v1426, %v1426
        %v1429 = vunpack.c.l.s4 1966171168
        %v1430 = vunpack.c.0.s8 %v1429
        %v1431 = vlaneseq
        %v1432 = vshrl.u32 %v1431, 7
        %v1433 = vsub.s32 %v1430, %v1432
        %v1434 = vrot.slane %v1426, %v1433
        %v1436 = vunpack.c.l.s4 1966171168
        %v1437 = vunpack.c.0.s8 %v1436
        %v1438 = vlaneseq
        %v1439 = vshrl.u32 %v1438, 7
        %v1440 = vsub.s32 %v1437, %v1439
        %v1441 = vrot.slane %v1427, %v1440
        %v1442 = vlaneseq
        %v1443 = vshrl.u32 %v1442, 7
        %v1444 = vsub.s32 0, %v1443
        %v1445 = vrot.slane %v1434, %v1444
        %v1446 = vlaneseq
        %v1447 = vshrl.u32 %v1446, 7
        %v1448 = vsub.s32 0, %v1447
        %v1449 = vrot.slane %v1441, %v1448
        %1450 = vrot.lane.b32.xlu0 %v1445, 32
        %v1451 = vpop.permute.xlu0 %1450
        %1452 = vrot.lane.b32.xlu0 %v1449, 32
        %v1453 = vpop.permute.xlu0 %1452
        %1456 = vst.msk [vmem:[#allocation5 + $0x5] sm:$0x1] %vm680, %v1451
        %1457 = vst.msk [vmem:[#allocation5 + $0xd] sm:$0x1] %vm680, %v1453
        %v1458 = vld [vmem:[#allocation2 + $0xc] sm:$0x3]
        %v1459 = vld [vmem:[#allocation3] sm:$0x3]
        %v1461 = vsel %vm439, %v1459, 0
        %1463 = vmatprep.subr.mxu0 0.0
        %1464 = vmatpush1.msra.mxu0 0.0
        %1465 = vmatprep.subr.mxu0 0.0
        %1466 = vmatpush1.msra.mxu0 0.0
        %1467 = vmatprep.subr.mxu0 0.0
        %1468 = vmatpush1.msra.mxu0 0.0
        %1469 = vmatprep.subr.mxu0 0.0
        %1470 = vmatpush1.msra.mxu0 0.0
        %1471 = vmatprep.subr.mxu0 0.0
        %1472 = vmatpush1.msra.mxu0 0.0
        %1473 = vmatprep.subr.mxu0 0.0
        %1474 = vmatpush1.msra.mxu0 0.0
        %1475 = vmatprep.subr.mxu0 0.0
        %1476 = vmatpush1.msra.mxu0 0.0
        %1477 = vmatprep.subr.mxu0 0.0
        %1478 = vmatpush1.msra.mxu0 0.0
        %1479 = vmatprep.subr.mxu0 0.0
        %1480 = vmatpush1.msra.mxu0 0.0
        %1481 = vmatprep.subr.mxu0 0.0
        %1482 = vmatpush1.msra.mxu0 0.0
        %1483 = vmatprep.subr.mxu0 0.0
        %1484 = vmatpush1.msra.mxu0 0.0
        %1485 = vmatprep.subr.mxu0 0.0
        %1486 = vmatpush1.msra.mxu0 0.0
        %1487 = vmatprep.subr.mxu0 0.0
        %1488 = vmatpush1.msra.mxu0 %v526
        %1489 = vmatprep.subr.mxu0 0.0
        %1490 = vmatpush1.msra.mxu0 %v525
        %1491 = vmatprep.subr.mxu0 0.0
        %1492 = vmatpush1.msra.mxu0 %v524
        %1493 = vmatprep.subr.mxu0 0.0
        %1494 = vmatpush1.msra.mxu0 %v523
        %1495 = vmatprep.subr.mxu0 0.0
        %1496 = vmatpush2.msra.mxu0 0.0
        %1497 = vmatprep.subr.mxu0 0.0
        %1498 = vmatpush2.msra.mxu0 0.0
        %1499 = vmatprep.subr.mxu0 0.0
        %1500 = vmatpush2.msra.mxu0 0.0
        %1501 = vmatprep.subr.mxu0 0.0
        %1502 = vmatpush2.msra.mxu0 0.0
        %1503 = vmatprep.subr.mxu0 0.0
        %1504 = vmatpush2.msra.mxu0 0.0
        %1505 = vmatprep.subr.mxu0 0.0
        %1506 = vmatpush2.msra.mxu0 0.0
        %1507 = vmatprep.subr.mxu0 0.0
        %1508 = vmatpush2.msra.mxu0 0.0
        %1509 = vmatprep.subr.mxu0 0.0
        %1510 = vmatpush2.msra.mxu0 0.0
        %1511 = vmatprep.subr.mxu0 0.0
        %1512 = vmatpush2.msra.mxu0 0.0
        %1513 = vmatprep.subr.mxu0 0.0
        %1514 = vmatpush2.msra.mxu0 0.0
        %1515 = vmatprep.subr.mxu0 0.0
        %1516 = vmatpush2.msra.mxu0 0.0
        %1517 = vmatprep.subr.mxu0 0.0
        %1518 = vmatpush2.msra.mxu0 0.0
        %1519 = vmatprep.subr.mxu0 0.0
        %1520 = vmatpush2.msra.mxu0 0.0
        %1521 = vmatprep.subr.mxu0 0.0
        %1522 = vmatpush2.msra.mxu0 0.0
        %1523 = vmatprep.subr.mxu0 0.0
        %1524 = vmatpush2.msra.mxu0 0.0
        %1525 = vmatprep.subr.mxu0 0.0
        %1526 = vmatpush2.msra.mxu0 0.0
        %1527 = vmatprep.mubr.f32.mxu0 0.0
        %1528 = vmatmul.mubr.f32.gmra.mxu0 %v1461
        %v1529 = vpop.f32.mrf.mxu0
        %v1530 = vadd.f32 0.0, %v1529
        %v1531 = vpop.f32.mrf.mxu0
        %1532 = vdwg.mxu0
        %v1533 = vadd.f32 %v1458, %v1530
        %v1534 = vxor.u32 %v1533, 2147483648
        %v1535 = vmul.f32 %v1534, 1.442695
        %v1536 = vpow.pop %v1535
        %v1537 = vadd.f32 %v1536, 1.0
        %v1538 = vrcp.pop %v1537
        %v1539 = vmul.f32 1.0, %v1538
        %v1540 = vtanh.pop %v1533
        %v1541 = vld [vmem:[#allocation4] sm:$0x3]
        %1543 = vrot.lane.b32.xlu0 %v1541, 32
        %v1544 = vpop.permute.xlu0 %1543
        %v1546 = vmul.f32 %v1539, %v1544
        %1548 = vrot.lane.b32.xlu0 %v1540, 64
        %v1549 = vpop.permute.xlu0 %1548
        %v1551 = vmul.f32 %v1539, %v1549
        %1553 = vrot.lane.b32.xlu0 %v1551, 32
        %v1554 = vpop.permute.xlu0 %1553
        %v1556 = vadd.f32 %v1546, %v1554
        %v1557 = vtanh.pop %v1556
        %1559 = vrot.lane.b32.xlu0 %v1557, 64
        %v1560 = vpop.permute.xlu0 %1559
        %v1562 = vmul.f32 %v1539, %v1560
        %1564 = vrot.lane.b32.xlu0 %v1556, 96
        %v1565 = vpop.permute.xlu0 %1564
        %1567 = vst.msk [vmem:[#allocation4] sm:$0x3] %vm636, %v1565
        %1569 = vrot.lane.b32.xlu0 %v1562, 32
        %v1570 = vpop.permute.xlu0 %1569
        %1572 = vst.msk [vmem:[#allocation3] sm:$0x3] %vm636, %v1570
        %s1573 = scalar_lea.vmem %s414, 12
        %1574 = vst.msk [vmem:[%s1573] sm:$0x3] %vm636, %v1570
        %v1576 = vunpack.c.l.s4 1966171168
        %v1577 = vunpack.c.0.s8 %v1576
        %v1578 = vlaneseq
        %v1579 = vshrl.u32 %v1578, 7
        %v1580 = vsub.s32 %v1577, %v1579
        %v1581 = vrot.slane %v1562, %v1580
        %v1582 = vcombine.high %v1581, %v1581
        %v1584 = vunpack.c.l.s4 1966171168
        %v1585 = vunpack.c.0.s8 %v1584
        %v1586 = vlaneseq
        %v1587 = vshrl.u32 %v1586, 7
        %v1588 = vsub.s32 %v1585, %v1587
        %v1589 = vrot.slane %v1581, %v1588
        %v1591 = vunpack.c.l.s4 1966171168
        %v1592 = vunpack.c.0.s8 %v1591
        %v1593 = vlaneseq
        %v1594 = vshrl.u32 %v1593, 7
        %v1595 = vsub.s32 %v1592, %v1594
        %v1596 = vrot.slane %v1582, %v1595
        %v1597 = vlaneseq
        %v1598 = vshrl.u32 %v1597, 7
        %v1599 = vsub.s32 0, %v1598
        %v1600 = vrot.slane %v1589, %v1599
        %v1601 = vlaneseq
        %v1602 = vshrl.u32 %v1601, 7
        %v1603 = vsub.s32 0, %v1602
        %v1604 = vrot.slane %v1596, %v1603
        %1605 = vrot.lane.b32.xlu0 %v1600, 32
        %v1606 = vpop.permute.xlu0 %1605
        %1607 = vrot.lane.b32.xlu0 %v1604, 32
        %v1608 = vpop.permute.xlu0 %1607
        %1611 = vst.msk [vmem:[#allocation5 + $0x6] sm:$0x1] %vm680, %v1606
        %1612 = vst.msk [vmem:[#allocation5 + $0xe] sm:$0x1] %vm680, %v1608
        %v1613 = vld [vmem:[#allocation2 + $0xe] sm:$0x3]
        %v1614 = vld [vmem:[#allocation3] sm:$0x3]
        %v1616 = vsel %vm439, %v1614, 0
        %1618 = vmatprep.subr.mxu0 0.0
        %1619 = vmatpush1.msra.mxu0 0.0
        %1620 = vmatprep.subr.mxu0 0.0
        %1621 = vmatpush1.msra.mxu0 0.0
        %1622 = vmatprep.subr.mxu0 0.0
        %1623 = vmatpush1.msra.mxu0 0.0
        %1624 = vmatprep.subr.mxu0 0.0
        %1625 = vmatpush1.msra.mxu0 0.0
        %1626 = vmatprep.subr.mxu0 0.0
        %1627 = vmatpush1.msra.mxu0 0.0
        %1628 = vmatprep.subr.mxu0 0.0
        %1629 = vmatpush1.msra.mxu0 0.0
        %1630 = vmatprep.subr.mxu0 0.0
        %1631 = vmatpush1.msra.mxu0 0.0
        %1632 = vmatprep.subr.mxu0 0.0
        %1633 = vmatpush1.msra.mxu0 0.0
        %1634 = vmatprep.subr.mxu0 0.0
        %1635 = vmatpush1.msra.mxu0 0.0
        %1636 = vmatprep.subr.mxu0 0.0
        %1637 = vmatpush1.msra.mxu0 0.0
        %1638 = vmatprep.subr.mxu0 0.0
        %1639 = vmatpush1.msra.mxu0 0.0
        %1640 = vmatprep.subr.mxu0 0.0
        %1641 = vmatpush1.msra.mxu0 0.0
        %1642 = vmatprep.subr.mxu0 0.0
        %1643 = vmatpush1.msra.mxu0 %v526
        %1644 = vmatprep.subr.mxu0 0.0
        %1645 = vmatpush1.msra.mxu0 %v525
        %1646 = vmatprep.subr.mxu0 0.0
        %1647 = vmatpush1.msra.mxu0 %v524
        %1648 = vmatprep.subr.mxu0 0.0
        %1649 = vmatpush1.msra.mxu0 %v523
        %1650 = vmatprep.subr.mxu0 0.0
        %1651 = vmatpush2.msra.mxu0 0.0
        %1652 = vmatprep.subr.mxu0 0.0
        %1653 = vmatpush2.msra.mxu0 0.0
        %1654 = vmatprep.subr.mxu0 0.0
        %1655 = vmatpush2.msra.mxu0 0.0
        %1656 = vmatprep.subr.mxu0 0.0
        %1657 = vmatpush2.msra.mxu0 0.0
        %1658 = vmatprep.subr.mxu0 0.0
        %1659 = vmatpush2.msra.mxu0 0.0
        %1660 = vmatprep.subr.mxu0 0.0
        %1661 = vmatpush2.msra.mxu0 0.0
        %1662 = vmatprep.subr.mxu0 0.0
        %1663 = vmatpush2.msra.mxu0 0.0
        %1664 = vmatprep.subr.mxu0 0.0
        %1665 = vmatpush2.msra.mxu0 0.0
        %1666 = vmatprep.subr.mxu0 0.0
        %1667 = vmatpush2.msra.mxu0 0.0
        %1668 = vmatprep.subr.mxu0 0.0
        %1669 = vmatpush2.msra.mxu0 0.0
        %1670 = vmatprep.subr.mxu0 0.0
        %1671 = vmatpush2.msra.mxu0 0.0
        %1672 = vmatprep.subr.mxu0 0.0
        %1673 = vmatpush2.msra.mxu0 0.0
        %1674 = vmatprep.subr.mxu0 0.0
        %1675 = vmatpush2.msra.mxu0 0.0
        %1676 = vmatprep.subr.mxu0 0.0
        %1677 = vmatpush2.msra.mxu0 0.0
        %1678 = vmatprep.subr.mxu0 0.0
        %1679 = vmatpush2.msra.mxu0 0.0
        %1680 = vmatprep.subr.mxu0 0.0
        %1681 = vmatpush2.msra.mxu0 0.0
        %1682 = vmatprep.mubr.f32.mxu0 0.0
        %1683 = vmatmul.mubr.f32.gmra.mxu0 %v1616
        %v1684 = vpop.f32.mrf.mxu0
        %v1685 = vadd.f32 0.0, %v1684
        %v1686 = vpop.f32.mrf.mxu0
        %1687 = vdwg.mxu0
        %v1688 = vadd.f32 %v1613, %v1685
        %v1689 = vxor.u32 %v1688, 2147483648
        %v1690 = vmul.f32 %v1689, 1.442695
        %v1691 = vpow.pop %v1690
        %v1692 = vadd.f32 %v1691, 1.0
        %v1693 = vrcp.pop %v1692
        %v1694 = vmul.f32 1.0, %v1693
        %v1695 = vtanh.pop %v1688
        %v1696 = vld [vmem:[#allocation4] sm:$0x3]
        %1698 = vrot.lane.b32.xlu0 %v1696, 32
        %v1699 = vpop.permute.xlu0 %1698
        %v1701 = vmul.f32 %v1694, %v1699
        %1703 = vrot.lane.b32.xlu0 %v1695, 64
        %v1704 = vpop.permute.xlu0 %1703
        %v1706 = vmul.f32 %v1694, %v1704
        %1708 = vrot.lane.b32.xlu0 %v1706, 32
        %v1709 = vpop.permute.xlu0 %1708
        %v1711 = vadd.f32 %v1701, %v1709
        %v1712 = vtanh.pop %v1711
        %1714 = vrot.lane.b32.xlu0 %v1712, 64
        %v1715 = vpop.permute.xlu0 %1714
        %v1717 = vmul.f32 %v1694, %v1715
        %1719 = vrot.lane.b32.xlu0 %v1711, 96
        %v1720 = vpop.permute.xlu0 %1719
        %1722 = vst.msk [vmem:[#allocation4] sm:$0x3] %vm636, %v1720
        %1724 = vrot.lane.b32.xlu0 %v1717, 32
        %v1725 = vpop.permute.xlu0 %1724
        %1727 = vst.msk [vmem:[#allocation3] sm:$0x3] %vm636, %v1725
        %s1728 = scalar_lea.vmem %s414, 14
        %1729 = vst.msk [vmem:[%s1728] sm:$0x3] %vm636, %v1725
        %v1731 = vunpack.c.l.s4 1966171168
        %v1732 = vunpack.c.0.s8 %v1731
        %v1733 = vlaneseq
        %v1734 = vshrl.u32 %v1733, 7
        %v1735 = vsub.s32 %v1732, %v1734
        %v1736 = vrot.slane %v1717, %v1735
        %v1737 = vcombine.high %v1736, %v1736
        %v1739 = vunpack.c.l.s4 1966171168
        %v1740 = vunpack.c.0.s8 %v1739
        %v1741 = vlaneseq
        %v1742 = vshrl.u32 %v1741, 7
        %v1743 = vsub.s32 %v1740, %v1742
        %v1744 = vrot.slane %v1736, %v1743
        %v1746 = vunpack.c.l.s4 1966171168
        %v1747 = vunpack.c.0.s8 %v1746
        %v1748 = vlaneseq
        %v1749 = vshrl.u32 %v1748, 7
        %v1750 = vsub.s32 %v1747, %v1749
        %v1751 = vrot.slane %v1737, %v1750
        %v1752 = vlaneseq
        %v1753 = vshrl.u32 %v1752, 7
        %v1754 = vsub.s32 0, %v1753
        %v1755 = vrot.slane %v1744, %v1754
        %v1756 = vlaneseq
        %v1757 = vshrl.u32 %v1756, 7
        %v1758 = vsub.s32 0, %v1757
        %v1759 = vrot.slane %v1751, %v1758
        %1760 = vrot.lane.b32.xlu0 %v1755, 32
        %v1761 = vpop.permute.xlu0 %1760
        %1762 = vrot.lane.b32.xlu0 %v1759, 32
        %v1763 = vpop.permute.xlu0 %1762
        %1766 = vst.msk [vmem:[#allocation5 + $0x7] sm:$0x1] %vm680, %v1761
        %1767 = vst.msk [vmem:[#allocation5 + $0xf] sm:$0x1] %vm680, %v1763
        %p1768 = scmp.eq.s32.totalorder %s26, 1
        // Predicated region
        $region57: #{seq_decoder_forward.1} parent=47 // pred_check
          %p1769 = pneg %p1768
        $region58: #{seq_decoder_forward.1} parent=47 // pred_check_branch
          %1771 = sbr.rel (%p1769) target = $region60
        $region59: #{seq_decoder_forward.1} parent=47 // pred_region
          %v1772 = vld [vmem:[#allocation3] sm:$0x3]
          %1773 = vst.msk [vmem:[#allocation9] sm:$0x3] %vm636, %v1772
          %v1774 = vld [vmem:[#allocation4] sm:$0x3]
          %1775 = vst.msk [vmem:[#allocation10] sm:$0x3] %vm636, %v1774
        $region60: #{seq_decoder_forward.1} parent=47 // pred_fallthru
          _
        %v1776 = vld [vmem:[#allocation5] sm:$0xff]
        %v1777 = vld [vmem:[#allocation5 + $0x8] sm:$0xff]
        %v1778 = vld [vmem:[%s6] sm:$0xff]
        %v1779 = vld [vmem:[%s6 + $0x8] sm:$0xff]
        %v1780 = vld [vmem:[%s6 + $0x10] sm:$0xff]
        %v1781 = vld [vmem:[%s6 + $0x18] sm:$0xff]
        %v1783 = vsel %vm439, %v1776, 0
        %v1786 = vsel %vm439, %v1778, 0
        %v1789 = vsel %vm439, %v1779, 0
        %1791 = vmatprep.subr.mxu0 0.0
        %1792 = vmatpush1.xpose.msra.mxu0 0.0
        %1793 = vmatprep.subr.mxu0 0.0
        %1794 = vmatpush1.xpose.msra.mxu0 0.0
        %1795 = vmatprep.subr.mxu0 0.0
        %1796 = vmatpush1.xpose.msra.mxu0 0.0
        %1797 = vmatprep.subr.mxu0 0.0
        %1798 = vmatpush1.xpose.msra.mxu0 0.0
        %1799 = vmatprep.subr.mxu0 0.0
        %1800 = vmatpush1.xpose.msra.mxu0 0.0
        %1801 = vmatprep.subr.mxu0 0.0
        %1802 = vmatpush1.xpose.msra.mxu0 0.0
        %1803 = vmatprep.subr.mxu0 0.0
        %1804 = vmatpush1.xpose.msra.mxu0 0.0
        %1805 = vmatprep.subr.mxu0 0.0
        %1806 = vmatpush1.xpose.msra.mxu0 0.0
        %1807 = vmatprep.subr.mxu0 0.0
        %1808 = vmatpush1.xpose.msra.mxu0 0.0
        %1809 = vmatprep.subr.mxu0 0.0
        %1810 = vmatpush1.xpose.msra.mxu0 0.0
        %1811 = vmatprep.subr.mxu0 0.0
        %1812 = vmatpush1.xpose.msra.mxu0 0.0
        %1813 = vmatprep.subr.mxu0 0.0
        %1814 = vmatpush1.xpose.msra.mxu0 0.0
        %1815 = vmatprep.subr.mxu0 0.0
        %1816 = vmatpush1.xpose.msra.mxu0 0.0
        %1817 = vmatprep.subr.mxu0 0.0
        %1818 = vmatpush1.xpose.msra.mxu0 0.0
        %1819 = vmatprep.subr.mxu0 0.0
        %1820 = vmatpush1.xpose.msra.mxu0 %v1789
        %1821 = vmatprep.subr.mxu0 0.0
        %1822 = vmatpush1.xpose.msra.mxu0 %v1786
        %1823 = vmatprep.subr.mxu0 0.0
        %1824 = vmatpush2.xpose.msra.mxu0 0.0
        %1825 = vmatprep.subr.mxu0 0.0
        %1826 = vmatpush2.xpose.msra.mxu0 0.0
        %1827 = vmatprep.subr.mxu0 0.0
        %1828 = vmatpush2.xpose.msra.mxu0 0.0
        %1829 = vmatprep.subr.mxu0 0.0
        %1830 = vmatpush2.xpose.msra.mxu0 0.0
        %1831 = vmatprep.subr.mxu0 0.0
        %1832 = vmatpush2.xpose.msra.mxu0 0.0
        %1833 = vmatprep.subr.mxu0 0.0
        %1834 = vmatpush2.xpose.msra.mxu0 0.0
        %1835 = vmatprep.subr.mxu0 0.0
        %1836 = vmatpush2.xpose.msra.mxu0 0.0
        %1837 = vmatprep.subr.mxu0 0.0
        %1838 = vmatpush2.xpose.msra.mxu0 0.0
        %1839 = vmatprep.subr.mxu0 0.0
        %1840 = vmatpush2.xpose.msra.mxu0 0.0
        %1841 = vmatprep.subr.mxu0 0.0
        %1842 = vmatpush2.xpose.msra.mxu0 0.0
        %1843 = vmatprep.subr.mxu0 0.0
        %1844 = vmatpush2.xpose.msra.mxu0 0.0
        %1845 = vmatprep.subr.mxu0 0.0
        %1846 = vmatpush2.xpose.msra.mxu0 0.0
        %1847 = vmatprep.subr.mxu0 0.0
        %1848 = vmatpush2.xpose.msra.mxu0 0.0
        %1849 = vmatprep.subr.mxu0 0.0
        %1850 = vmatpush2.xpose.msra.mxu0 0.0
        %1851 = vmatprep.subr.mxu0 0.0
        %1852 = vmatpush2.xpose.msra.mxu0 0.0
        %1853 = vmatprep.subr.mxu0 0.0
        %1854 = vmatpush2.xpose.msra.mxu0 0.0
        %1855 = vmatprep.mubr.f32.mxu0 0.0
        %1856 = vmatmul.mubr.f32.gmra.mxu0 %v1783
        %v1857 = vpop.f32.mrf.mxu0
        %v1858 = vadd.f32 0.0, %v1857
        %v1859 = vpop.f32.mrf.mxu0
        %1860 = vdwg.mxu0
        %v1862 = vsel %vm439, %v1777, 0
        %v1865 = vsel %vm439, %v1780, 0
        %v1868 = vsel %vm439, %v1781, 0
        %1870 = vmatprep.subr.mxu0 0.0
        %1871 = vmatpush1.xpose.msra.mxu0 0.0
        %1872 = vmatprep.subr.mxu0 0.0
        %1873 = vmatpush1.xpose.msra.mxu0 0.0
        %1874 = vmatprep.subr.mxu0 0.0
        %1875 = vmatpush1.xpose.msra.mxu0 0.0
        %1876 = vmatprep.subr.mxu0 0.0
        %1877 = vmatpush1.xpose.msra.mxu0 0.0
        %1878 = vmatprep.subr.mxu0 0.0
        %1879 = vmatpush1.xpose.msra.mxu0 0.0
        %1880 = vmatprep.subr.mxu0 0.0
        %1881 = vmatpush1.xpose.msra.mxu0 0.0
        %1882 = vmatprep.subr.mxu0 0.0
        %1883 = vmatpush1.xpose.msra.mxu0 0.0
        %1884 = vmatprep.subr.mxu0 0.0
        %1885 = vmatpush1.xpose.msra.mxu0 0.0
        %1886 = vmatprep.subr.mxu0 0.0
        %1887 = vmatpush1.xpose.msra.mxu0 0.0
        %1888 = vmatprep.subr.mxu0 0.0
        %1889 = vmatpush1.xpose.msra.mxu0 0.0
        %1890 = vmatprep.subr.mxu0 0.0
        %1891 = vmatpush1.xpose.msra.mxu0 0.0
        %1892 = vmatprep.subr.mxu0 0.0
        %1893 = vmatpush1.xpose.msra.mxu0 0.0
        %1894 = vmatprep.subr.mxu0 0.0
        %1895 = vmatpush1.xpose.msra.mxu0 0.0
        %1896 = vmatprep.subr.mxu0 0.0
        %1897 = vmatpush1.xpose.msra.mxu0 0.0
        %1898 = vmatprep.subr.mxu0 0.0
        %1899 = vmatpush1.xpose.msra.mxu0 %v1868
        %1900 = vmatprep.subr.mxu0 0.0
        %1901 = vmatpush1.xpose.msra.mxu0 %v1865
        %1902 = vmatprep.subr.mxu0 0.0
        %1903 = vmatpush2.xpose.msra.mxu0 0.0
        %1904 = vmatprep.subr.mxu0 0.0
        %1905 = vmatpush2.xpose.msra.mxu0 0.0
        %1906 = vmatprep.subr.mxu0 0.0
        %1907 = vmatpush2.xpose.msra.mxu0 0.0
        %1908 = vmatprep.subr.mxu0 0.0
        %1909 = vmatpush2.xpose.msra.mxu0 0.0
        %1910 = vmatprep.subr.mxu0 0.0
        %1911 = vmatpush2.xpose.msra.mxu0 0.0
        %1912 = vmatprep.subr.mxu0 0.0
        %1913 = vmatpush2.xpose.msra.mxu0 0.0
        %1914 = vmatprep.subr.mxu0 0.0
        %1915 = vmatpush2.xpose.msra.mxu0 0.0
        %1916 = vmatprep.subr.mxu0 0.0
        %1917 = vmatpush2.xpose.msra.mxu0 0.0
        %1918 = vmatprep.subr.mxu0 0.0
        %1919 = vmatpush2.xpose.msra.mxu0 0.0
        %1920 = vmatprep.subr.mxu0 0.0
        %1921 = vmatpush2.xpose.msra.mxu0 0.0
        %1922 = vmatprep.subr.mxu0 0.0
        %1923 = vmatpush2.xpose.msra.mxu0 0.0
        %1924 = vmatprep.subr.mxu0 0.0
        %1925 = vmatpush2.xpose.msra.mxu0 0.0
        %1926 = vmatprep.subr.mxu0 0.0
        %1927 = vmatpush2.xpose.msra.mxu0 0.0
        %1928 = vmatprep.subr.mxu0 0.0
        %1929 = vmatpush2.xpose.msra.mxu0 0.0
        %1930 = vmatprep.subr.mxu0 0.0
        %1931 = vmatpush2.xpose.msra.mxu0 0.0
        %1932 = vmatprep.subr.mxu0 0.0
        %1933 = vmatpush2.xpose.msra.mxu0 0.0
        %1934 = vmatprep.mubr.f32.mxu0 0.0
        %1935 = vmatmul.mubr.f32.gmra.mxu0 %v1862
        %v1936 = vpop.f32.mrf.mxu0
        %v1937 = vadd.f32 0.0, %v1936
        %v1938 = vpop.f32.mrf.mxu0
        %1939 = vdwg.mxu0
        %vm1940 = vcmask 130048
        %v1941 = vsel %vm1940, %v1858, -inf
        %1942 = vmax.xlane.f32.xlu0 %v1941
        %v1943 = vpop.xlane.xlu0 %1942
        %v1944 = vsel %vm1940, %v1937, -inf
        %1945 = vmax.xlane.f32.xlu0 %v1944
        %v1946 = vpop.xlane.xlu0 %1945
        %v1947 = vsub.f32 %v1858, %v1943
        %v1948 = vsub.f32 %v1937, %v1946
        %v1949 = vmul.f32 %v1947, 1.442695
        %v1950 = vpow.pop %v1949
        %v1951 = vmul.f32 %v1948, 1.442695
        %v1952 = vpow.pop %v1951
        %v1953 = vsel %vm1940, %v1950, 0.0
        %1954 = vadd.xlane.f32.xlu0 %v1953
        %v1955 = vpop.xlane.xlu0 %1954
        %v1956 = vsel %vm1940, %v1952, 0.0
        %1957 = vadd.xlane.f32.xlu0 %v1956
        %v1958 = vpop.xlane.xlu0 %1957
        %v1959 = vrcp.pop %v1955
        %v1960 = vrcp.pop %v1958
        %v1961 = vmul.f32 %v1950, %v1959
        %v1962 = vmul.f32 %v1952, %v1960
        %v1964 = vsel %vm1940, %v1961, 0
        %1966 = vmatprep.subr.mxu0 0.0
        %1967 = vmatpush1.msra.mxu0 0.0
        %1968 = vmatprep.subr.mxu0 0.0
        %1969 = vmatpush1.msra.mxu0 0.0
        %1970 = vmatprep.subr.mxu0 0.0
        %1971 = vmatpush1.msra.mxu0 0.0
        %1972 = vmatprep.subr.mxu0 0.0
        %1973 = vmatpush1.msra.mxu0 0.0
        %1974 = vmatprep.subr.mxu0 0.0
        %1975 = vmatpush1.msra.mxu0 0.0
        %1976 = vmatprep.subr.mxu0 0.0
        %1977 = vmatpush1.msra.mxu0 0.0
        %1978 = vmatprep.subr.mxu0 0.0
        %1979 = vmatpush1.msra.mxu0 0.0
        %1980 = vmatprep.subr.mxu0 0.0
        %1981 = vmatpush1.msra.mxu0 0.0
        %1982 = vmatprep.subr.mxu0 0.0
        %1983 = vmatpush1.msra.mxu0 0.0
        %1984 = vmatprep.subr.mxu0 0.0
        %1985 = vmatpush1.msra.mxu0 0.0
        %1986 = vmatprep.subr.mxu0 0.0
        %1987 = vmatpush1.msra.mxu0 0.0
        %1988 = vmatprep.subr.mxu0 0.0
        %1989 = vmatpush1.msra.mxu0 0.0
        %1990 = vmatprep.subr.mxu0 0.0
        %1991 = vmatpush1.msra.mxu0 0.0
        %1992 = vmatprep.subr.mxu0 0.0
        %1993 = vmatpush1.msra.mxu0 0.0
        %1994 = vmatprep.subr.mxu0 0.0
        %1995 = vmatpush1.msra.mxu0 %v1779
        %1996 = vmatprep.subr.mxu0 0.0
        %1997 = vmatpush1.msra.mxu0 %v1778
        %1998 = vmatprep.subr.mxu0 0.0
        %1999 = vmatpush2.msra.mxu0 0.0
        %2000 = vmatprep.subr.mxu0 0.0
        %2001 = vmatpush2.msra.mxu0 0.0
        %2002 = vmatprep.subr.mxu0 0.0
        %2003 = vmatpush2.msra.mxu0 0.0
        %2004 = vmatprep.subr.mxu0 0.0
        %2005 = vmatpush2.msra.mxu0 0.0
        %2006 = vmatprep.subr.mxu0 0.0
        %2007 = vmatpush2.msra.mxu0 0.0
        %2008 = vmatprep.subr.mxu0 0.0
        %2009 = vmatpush2.msra.mxu0 0.0
        %2010 = vmatprep.subr.mxu0 0.0
        %2011 = vmatpush2.msra.mxu0 0.0
        %2012 = vmatprep.subr.mxu0 0.0
        %2013 = vmatpush2.msra.mxu0 0.0
        %2014 = vmatprep.subr.mxu0 0.0
        %2015 = vmatpush2.msra.mxu0 0.0
        %2016 = vmatprep.subr.mxu0 0.0
        %2017 = vmatpush2.msra.mxu0 0.0
        %2018 = vmatprep.subr.mxu0 0.0
        %2019 = vmatpush2.msra.mxu0 0.0
        %2020 = vmatprep.subr.mxu0 0.0
        %2021 = vmatpush2.msra.mxu0 0.0
        %2022 = vmatprep.subr.mxu0 0.0
        %2023 = vmatpush2.msra.mxu0 0.0
        %2024 = vmatprep.subr.mxu0 0.0
        %2025 = vmatpush2.msra.mxu0 0.0
        %2026 = vmatprep.subr.mxu0 0.0
        %2027 = vmatpush2.msra.mxu0 0.0
        %2028 = vmatprep.subr.mxu0 0.0
        %2029 = vmatpush2.msra.mxu0 0.0
        %2030 = vmatprep.mubr.f32.mxu0 0.0
        %2031 = vmatmul.mubr.f32.gmra.mxu0 %v1964
        %v2032 = vpop.f32.mrf.mxu0
        %v2033 = vadd.f32 0.0, %v2032
        %v2034 = vpop.f32.mrf.mxu0
        %2035 = vdwg.mxu0
        %v2037 = vsel %vm1940, %v1962, 0
        %2039 = vmatprep.subr.mxu0 0.0
        %2040 = vmatpush1.msra.mxu0 0.0
        %2041 = vmatprep.subr.mxu0 0.0
        %2042 = vmatpush1.msra.mxu0 0.0
        %2043 = vmatprep.subr.mxu0 0.0
        %2044 = vmatpush1.msra.mxu0 0.0
        %2045 = vmatprep.subr.mxu0 0.0
        %2046 = vmatpush1.msra.mxu0 0.0
        %2047 = vmatprep.subr.mxu0 0.0
        %2048 = vmatpush1.msra.mxu0 0.0
        %2049 = vmatprep.subr.mxu0 0.0
        %2050 = vmatpush1.msra.mxu0 0.0
        %2051 = vmatprep.subr.mxu0 0.0
        %2052 = vmatpush1.msra.mxu0 0.0
        %2053 = vmatprep.subr.mxu0 0.0
        %2054 = vmatpush1.msra.mxu0 0.0
        %2055 = vmatprep.subr.mxu0 0.0
        %2056 = vmatpush1.msra.mxu0 0.0
        %2057 = vmatprep.subr.mxu0 0.0
        %2058 = vmatpush1.msra.mxu0 0.0
        %2059 = vmatprep.subr.mxu0 0.0
        %2060 = vmatpush1.msra.mxu0 0.0
        %2061 = vmatprep.subr.mxu0 0.0
        %2062 = vmatpush1.msra.mxu0 0.0
        %2063 = vmatprep.subr.mxu0 0.0
        %2064 = vmatpush1.msra.mxu0 0.0
        %2065 = vmatprep.subr.mxu0 0.0
        %2066 = vmatpush1.msra.mxu0 0.0
        %2067 = vmatprep.subr.mxu0 0.0
        %2068 = vmatpush1.msra.mxu0 %v1781
        %2069 = vmatprep.subr.mxu0 0.0
        %2070 = vmatpush1.msra.mxu0 %v1780
        %2071 = vmatprep.subr.mxu0 0.0
        %2072 = vmatpush2.msra.mxu0 0.0
        %2073 = vmatprep.subr.mxu0 0.0
        %2074 = vmatpush2.msra.mxu0 0.0
        %2075 = vmatprep.subr.mxu0 0.0
        %2076 = vmatpush2.msra.mxu0 0.0
        %2077 = vmatprep.subr.mxu0 0.0
        %2078 = vmatpush2.msra.mxu0 0.0
        %2079 = vmatprep.subr.mxu0 0.0
        %2080 = vmatpush2.msra.mxu0 0.0
        %2081 = vmatprep.subr.mxu0 0.0
        %2082 = vmatpush2.msra.mxu0 0.0
        %2083 = vmatprep.subr.mxu0 0.0
        %2084 = vmatpush2.msra.mxu0 0.0
        %2085 = vmatprep.subr.mxu0 0.0
        %2086 = vmatpush2.msra.mxu0 0.0
        %2087 = vmatprep.subr.mxu0 0.0
        %2088 = vmatpush2.msra.mxu0 0.0
        %2089 = vmatprep.subr.mxu0 0.0
        %2090 = vmatpush2.msra.mxu0 0.0
        %2091 = vmatprep.subr.mxu0 0.0
        %2092 = vmatpush2.msra.mxu0 0.0
        %2093 = vmatprep.subr.mxu0 0.0
        %2094 = vmatpush2.msra.mxu0 0.0
        %2095 = vmatprep.subr.mxu0 0.0
        %2096 = vmatpush2.msra.mxu0 0.0
        %2097 = vmatprep.subr.mxu0 0.0
        %2098 = vmatpush2.msra.mxu0 0.0
        %2099 = vmatprep.subr.mxu0 0.0
        %2100 = vmatpush2.msra.mxu0 0.0
        %2101 = vmatprep.subr.mxu0 0.0
        %2102 = vmatpush2.msra.mxu0 0.0
        %2103 = vmatprep.mubr.f32.mxu0 0.0
        %2104 = vmatmul.mubr.f32.gmra.mxu0 %v2037
        %v2105 = vpop.f32.mrf.mxu0
        %v2106 = vadd.f32 0.0, %v2105
        %v2107 = vpop.f32.mrf.mxu0
        %2108 = vdwg.mxu0
        %v2109 = vcombine.high %v1961, %v1961
        %v2111 = vunpack.c.l.s4 1966171168
        %v2112 = vunpack.c.0.s8 %v2111
        %v2113 = vlaneseq
        %v2114 = vshrl.u32 %v2113, 7
        %v2115 = vsub.s32 %v2112, %v2114
        %v2116 = vrot.slane %v1961, %v2115
        %v2118 = vunpack.c.l.s4 1966171168
        %v2119 = vunpack.c.0.s8 %v2118
        %v2120 = vlaneseq
        %v2121 = vshrl.u32 %v2120, 7
        %v2122 = vsub.s32 %v2119, %v2121
        %v2123 = vrot.slane %v2109, %v2122
        %v2124 = vcombine.high %v2116, %v2116
        %v2125 = vcombine.high %v2123, %v2123
        %v2127 = vunpack.c.l.s4 1966171168
        %v2128 = vunpack.c.0.s8 %v2127
        %v2129 = vlaneseq
        %v2130 = vshrl.u32 %v2129, 7
        %v2131 = vsub.s32 %v2128, %v2130
        %v2132 = vrot.slane %v2116, %v2131
        %v2134 = vunpack.c.l.s4 1966171168
        %v2135 = vunpack.c.0.s8 %v2134
        %v2136 = vlaneseq
        %v2137 = vshrl.u32 %v2136, 7
        %v2138 = vsub.s32 %v2135, %v2137
        %v2139 = vrot.slane %v2123, %v2138
        %v2141 = vunpack.c.l.s4 1966171168
        %v2142 = vunpack.c.0.s8 %v2141
        %v2143 = vlaneseq
        %v2144 = vshrl.u32 %v2143, 7
        %v2145 = vsub.s32 %v2142, %v2144
        %v2146 = vrot.slane %v2124, %v2145
        %v2148 = vunpack.c.l.s4 1966171168
        %v2149 = vunpack.c.0.s8 %v2148
        %v2150 = vlaneseq
        %v2151 = vshrl.u32 %v2150, 7
        %v2152 = vsub.s32 %v2149, %v2151
        %v2153 = vrot.slane %v2125, %v2152
        %v2154 = vcombine.high %v2132, %v2132
        %v2155 = vcombine.high %v2139, %v2139
        %v2156 = vcombine.high %v2146, %v2146
        %v2157 = vcombine.high %v2153, %v2153
        %vm2166 = vcmask 122880
        %2167 = vst.msk [vmem:[%s396] sm:$0x1] %vm2166, %v2132
        %2168 = vst.msk [vmem:[%s396 + $0x2] sm:$0x1] %vm2166, %v2146
        %2169 = vst.msk [vmem:[%s396 + $0x4] sm:$0x1] %vm2166, %v2154
        %2170 = vst.msk [vmem:[%s396 + $0x6] sm:$0x1] %vm2166, %v2156
        %2171 = vst.msk [vmem:[%s396 + $0x8] sm:$0x1] %vm2166, %v2139
        %2172 = vst.msk [vmem:[%s396 + $0xa] sm:$0x1] %vm2166, %v2153
        %2173 = vst.msk [vmem:[%s396 + $0xc] sm:$0x1] %vm2166, %v2155
        %2174 = vst.msk [vmem:[%s396 + $0xe] sm:$0x1] %vm2166, %v2157
        %v2175 = vcombine.high %v1962, %v1962
        %v2177 = vunpack.c.l.s4 1966171168
        %v2178 = vunpack.c.0.s8 %v2177
        %v2179 = vlaneseq
        %v2180 = vshrl.u32 %v2179, 7
        %v2181 = vsub.s32 %v2178, %v2180
        %v2182 = vrot.slane %v1962, %v2181
        %v2184 = vunpack.c.l.s4 1966171168
        %v2185 = vunpack.c.0.s8 %v2184
        %v2186 = vlaneseq
        %v2187 = vshrl.u32 %v2186, 7
        %v2188 = vsub.s32 %v2185, %v2187
        %v2189 = vrot.slane %v2175, %v2188
        %v2190 = vcombine.high %v2182, %v2182
        %v2191 = vcombine.high %v2189, %v2189
        %v2193 = vunpack.c.l.s4 1966171168
        %v2194 = vunpack.c.0.s8 %v2193
        %v2195 = vlaneseq
        %v2196 = vshrl.u32 %v2195, 7
        %v2197 = vsub.s32 %v2194, %v2196
        %v2198 = vrot.slane %v2182, %v2197
        %v2200 = vunpack.c.l.s4 1966171168
        %v2201 = vunpack.c.0.s8 %v2200
        %v2202 = vlaneseq
        %v2203 = vshrl.u32 %v2202, 7
        %v2204 = vsub.s32 %v2201, %v2203
        %v2205 = vrot.slane %v2189, %v2204
        %v2207 = vunpack.c.l.s4 1966171168
        %v2208 = vunpack.c.0.s8 %v2207
        %v2209 = vlaneseq
        %v2210 = vshrl.u32 %v2209, 7
        %v2211 = vsub.s32 %v2208, %v2210
        %v2212 = vrot.slane %v2190, %v2211
        %v2214 = vunpack.c.l.s4 1966171168
        %v2215 = vunpack.c.0.s8 %v2214
        %v2216 = vlaneseq
        %v2217 = vshrl.u32 %v2216, 7
        %v2218 = vsub.s32 %v2215, %v2217
        %v2219 = vrot.slane %v2191, %v2218
        %v2220 = vcombine.high %v2198, %v2198
        %v2221 = vcombine.high %v2205, %v2205
        %v2222 = vcombine.high %v2212, %v2212
        %v2223 = vcombine.high %v2219, %v2219
        %2232 = vst.msk [vmem:[%s396 + $0x1] sm:$0x1] %vm2166, %v2198
        %2233 = vst.msk [vmem:[%s396 + $0x3] sm:$0x1] %vm2166, %v2212
        %2234 = vst.msk [vmem:[%s396 + $0x5] sm:$0x1] %vm2166, %v2220
        %2235 = vst.msk [vmem:[%s396 + $0x7] sm:$0x1] %vm2166, %v2222
        %2236 = vst.msk [vmem:[%s396 + $0x9] sm:$0x1] %vm2166, %v2205
        %2237 = vst.msk [vmem:[%s396 + $0xb] sm:$0x1] %vm2166, %v2219
        %2238 = vst.msk [vmem:[%s396 + $0xd] sm:$0x1] %vm2166, %v2221
        %2239 = vst.msk [vmem:[%s396 + $0xf] sm:$0x1] %vm2166, %v2223
        %2240 = vst.msk [vmem:[%s403] sm:$0xff] %vm439, %v2033
        %2241 = vst.msk [vmem:[%s403 + $0x8] sm:$0xff] %vm439, %v2106
        %v2242 = vld [vmem:[#allocation5] sm:$0xff]
        %v2243 = vld [vmem:[#allocation5 + $0x8] sm:$0xff]
        %2246 = vrot.lane.b32.xlu0 %v2242, 32
        %v2247 = vpop.permute.xlu0 %2246
        %2248 = vrot.lane.b32.xlu0 %v2243, 32
        %v2249 = vpop.permute.xlu0 %2248
        %vm2252 = vcmask 523520
        %2253 = vst.msk [vmem:[%s403] sm:$0xff] %vm2252, %v2247
        %2254 = vst.msk [vmem:[%s403 + $0x8] sm:$0xff] %vm2252, %v2249
        %s2255 = smul.u32 8, %s26
        %p2256 = scmp.lt.s32.totalorder %s2255, 15
        %s2257 = scalar_select %p2256, %s2255, 15
        %s2258 = smul.addr %s2257, 2
        %s2259 = scalar_lea.vmem %s7, %s2258
        %s2260 = sand.u32 %s26, 1
        %s2261 = scalar_lea.sflag [#allocation8], %s2260
        %s2262 = sand.u32 %s254, 1
        %s2263 = smul.addr %s2262, 16
        %s2264 = scalar_lea.vmem [#allocation12], %s2263
        %s2265 = sand.u32 %s26, 1
        %s2266 = scalar_lea.sflag [#allocation8], %s2265
        %s2267 = sand.u32 %s280, 1
        %s2268 = smul.addr %s2267, 16
        %s2269 = scalar_lea.vmem [#allocation13], %s2268
        // Predicated region
        $region61: #{seq_decoder_forward.1} parent=47 // pred_check
          %p2270 = pneg %p196
        $region62: #{seq_decoder_forward.1} parent=47 // pred_check_branch
          %2272 = sbr.rel (%p2270) target = $region64
        $region63: #{seq_decoder_forward.1} parent=47 // pred_region
          %s2273 = smul.u32 8, %s26
        $region64: #{seq_decoder_forward.1} parent=47 // pred_fallthru
          _
        // Predicated region
        $region65: #{seq_decoder_forward.1} parent=47 // pred_check
          %p2274 = pneg %p217
        $region66: #{seq_decoder_forward.1} parent=47 // pred_check_branch
          %2276 = sbr.rel (%p2274) target = $region68
        $region67: #{seq_decoder_forward.1} parent=47 // pred_region
          %s2278 = ssub.s32 32, 32
          %2279 = vsyncadd [#allocation8], %s2278
          %s2281 = sshll.u32 [#allocation9], 4
          %s2282 = int_to_ptr.vmem [resolvable:$true] %s2281
          %2284 = dma.vmem_to_hbm [thread:$0]  %s2282, 32, %s8, [#allocation8]
        $region68: #{seq_decoder_forward.1} parent=47 // pred_fallthru
          _
        // Predicated region
        $region69: #{seq_decoder_forward.1} parent=47 // pred_check
          %p2285 = pneg %p238
        $region70: #{seq_decoder_forward.1} parent=47 // pred_check_branch
          %2287 = sbr.rel (%p2285) target = $region72
        $region71: #{seq_decoder_forward.1} parent=47 // pred_region
          %s2289 = ssub.s32 32, 32
          %2290 = vsyncadd [#allocation11], %s2289
          %s2292 = sshll.u32 [#allocation10], 4
          %s2293 = int_to_ptr.vmem [resolvable:$true] %s2292
          %2295 = dma.vmem_to_hbm [thread:$0]  %s2293, 32, %s9, [#allocation11]
        $region72: #{seq_decoder_forward.1} parent=47 // pred_fallthru
          _
        // Predicated region
        $region73: #{seq_decoder_forward.1} parent=47 // pred_check
          %p2296 = pneg %p264
        $region74: #{seq_decoder_forward.1} parent=47 // pred_check_branch
          %2298 = sbr.rel (%p2296) target = $region76
        $region75: #{seq_decoder_forward.1} parent=47 // pred_region
          %s2299 = smul.u32 8, %s26
          %s2301 = ssub.s32 256, 256
          %2302 = vsyncadd %s2261, %s2301
          %s2303 = smul.addr %s2299, 32
          %s2304 = scalar_lea.hbm %s10, %s2303
          %s2305 = sshll.u32 %s2264, 4
          %s2306 = int_to_ptr.vmem [resolvable:$true] %s2305
          %2311 = dma.vmem_to_hbm [thread:$0]  %s2306, 256, %s2304, %s2261, 32, 32, 2
        $region76: #{seq_decoder_forward.1} parent=47 // pred_fallthru
          _
        // Predicated region
        $region77: #{seq_decoder_forward.1} parent=47 // pred_check
          %p2312 = pneg %p290
        $region78: #{seq_decoder_forward.1} parent=47 // pred_check_branch
          %2314 = sbr.rel (%p2312) target = $region80
        $region79: #{seq_decoder_forward.1} parent=47 // pred_region
          %s2316 = ssub.s32 256, 256
          %2317 = vsyncadd %s2266, %s2316
          %s2318 = smul.addr %s26, 128
          %s2319 = scalar_lea.hbm %s11, %s2318
          %s2320 = sshll.u32 %s2269, 4
          %s2321 = int_to_ptr.vmem [resolvable:$true] %s2320
          %2326 = dma.vmem_to_hbm [thread:$0]  %s2321, 256, %s2319, %s2266, 128, 256, 8
        $region80: #{seq_decoder_forward.1} parent=47 // pred_fallthru
          _
        // Predicated region
        $region81: #{seq_decoder_forward.1} parent=47 // pred_check
          %p2327 = pneg %p217
        $region82: #{seq_decoder_forward.1} parent=47 // pred_check_branch
          %2329 = sbr.rel (%p2327) target = $region84
        $region83: #{seq_decoder_forward.1} parent=47 // pred_region
          %2330 = dma.done [#allocation8], 32
        $region84: #{seq_decoder_forward.1} parent=47 // pred_fallthru
          _
        // Predicated region
        $region85: #{seq_decoder_forward.1} parent=47 // pred_check
          %p2331 = pneg %p238
        $region86: #{seq_decoder_forward.1} parent=47 // pred_check_branch
          %2333 = sbr.rel (%p2331) target = $region88
        $region87: #{seq_decoder_forward.1} parent=47 // pred_region
          %2334 = dma.done [#allocation11], 32
        $region88: #{seq_decoder_forward.1} parent=47 // pred_fallthru
          _
      $region48: #{seq_decoder_forward.1} parent=5 // pred_fallthru
        _
      %p2335 = scmp.le.s32.totalorder 2, %s21
      // Predicated region
      $region89: #{seq_decoder_forward.1} parent=5 // pred_check
        %p2336 = pneg %p2335
      $region90: #{seq_decoder_forward.1} parent=5 // pred_check_branch
        %2338 = sbr.rel (%p2336) target = $region92
      $region91: #{seq_decoder_forward.1} parent=5 // pred_region
        %s2339 = ssub.s32 %s21, 2
        // Predicated region
        $region93: #{seq_decoder_forward.1} parent=91 // pred_check
          %p2340 = pneg %p202
        $region94: #{seq_decoder_forward.1} parent=91 // pred_check_branch
          %2342 = sbr.rel (%p2340) target = $region96
        $region95: #{seq_decoder_forward.1} parent=91 // pred_region
          %s2343 = smul.u32 8, %s27
          %p2344 = scmp.lt.s32.totalorder %s2343, 15
          %s2345 = scalar_select %p2344, %s2343, 15
          %s2346 = smul.addr %s2345, 2
          %s2347 = scalar_lea.vmem %s7, %s2346
        $region96: #{seq_decoder_forward.1} parent=91 // pred_fallthru
          _
        // Predicated region
        $region97: #{seq_decoder_forward.1} parent=91 // pred_check
          %p2348 = pneg %p270
        $region98: #{seq_decoder_forward.1} parent=91 // pred_check_branch
          %2350 = sbr.rel (%p2348) target = $region100
        $region99: #{seq_decoder_forward.1} parent=91 // pred_region
          %s2351 = sand.u32 %s27, 1
          %s2352 = scalar_lea.sflag [#allocation8], %s2351
          %s2353 = sand.u32 %s255, 1
          %s2354 = smul.addr %s2353, 16
          %s2355 = scalar_lea.vmem [#allocation12], %s2354
          %2356 = dma.done %s2352, 256
        $region100: #{seq_decoder_forward.1} parent=91 // pred_fallthru
          _
        // Predicated region
        $region101: #{seq_decoder_forward.1} parent=91 // pred_check
          %p2357 = pneg %p296
        $region102: #{seq_decoder_forward.1} parent=91 // pred_check_branch
          %2359 = sbr.rel (%p2357) target = $region104
        $region103: #{seq_decoder_forward.1} parent=91 // pred_region
          %s2360 = sand.u32 %s27, 1
          %s2361 = scalar_lea.sflag [#allocation8], %s2360
          %s2362 = sand.u32 %s281, 1
          %s2363 = smul.addr %s2362, 16
          %s2364 = scalar_lea.vmem [#allocation13], %s2363
          %2365 = dma.done %s2361, 256
        $region104: #{seq_decoder_forward.1} parent=91 // pred_fallthru
          _
      $region92: #{seq_decoder_forward.1} parent=5 // pred_fallthru
        _
    $region6: #{seq_decoder_forward.1} parent=1 // loop_footer
      %s25 = sadd.s32 1, %s21
    $region7: #{seq_decoder_forward.1} parent=1 // loop_footer_branch
      %20 = sbr.rel target = $region3
    $region8: #{seq_decoder_forward.1} parent=1 // loop_exit
      _
    %2366 = vsyncpa [#allocation7], 1
    %s2367 = scalar_lea.sflag [#allocation7], 1
    %2368 = vsyncpa %s2367, 1
    %2369 = vsyncpa [#allocation8], 1
    %s2370 = scalar_lea.sflag [#allocation8], 1
    %2371 = vsyncpa %s2370, 1
    %2372 = vsyncpa [#allocation11], 1

</llo_original>
